<compile_context>
chip_gen: v7x
topology: tpu7x:2x2x1
jax: 0.10.0
libtpu: 0.0.40
codegen_flags: <defaults>
</compile_context>

<pallas_src>
import jax
import jax.numpy as jnp
from jax import lax
from jax.experimental import pallas as pl
from jax.experimental.pallas import tpu as pltpu


_ACC_VREG_BUDGET = 16  # ~vregs the f32 row-chunk accumulator may occupy


# ----------------------------- Pallas kernel --------------------------------
def _dw5x5_kernel(w_ref, x_ref, o_ref, xp_ref):
    """Depthwise 5x5 SAME conv for one (batch, channel-block), NHWC layout.

    w_ref  : (25, Cb)         VMEM  taps, k = dy*5 + dx, lane vector per tap
    x_ref  : (H, W, Cb)       VMEM  input block  (W on sublanes, C on lanes)
    o_ref  : (H, W, Cb)       VMEM  output block
    xp_ref : (H+4, W+10, Cb)  VMEM  f32 scratch: zero-halo padded input
                              (interior at column COL0=8 -> aligned store)
    """
    H, W, Cb = o_ref.shape
    HP = H + 4
    WP = W + 10
    COL0 = 8  # interior column offset (sublane-aligned)

    # ---- halo: zero ONLY the 2-wide border strips each step. The scratch
    # persists across grid steps, but the interior is fully overwritten below,
    # so per-step border zeroing stays correct even when the "parallel" grid
    # axes are megacore-sharded (no reliable "first step" per core).
    zrow = jnp.zeros((2, WP, Cb), jnp.float32)
    xp_ref[0:2, :, :] = zrow
    xp_ref[HP - 2:HP, :, :] = zrow
    zcol = jnp.zeros((HP, 2, Cb), jnp.float32)
    xp_ref[:, COL0 - 2:COL0, :] = zcol
    xp_ref[:, COL0 + W:COL0 + W + 2, :] = zcol
    # Single upcast while writing the interior (no per-tap casts later).
    xp_ref[2:2 + H, COL0:COL0 + W, :] = x_ref[...].astype(jnp.float32)

    # ---- row-chunked accumulation: keep the f32 accumulator resident in vregs.
    vregs_per_row = ((W + 7) // 8) * ((Cb + 127) // 128)
    RC = max(1, min(H, _ACC_VREG_BUDGET // max(1, vregs_per_row)))
    n_chunks = -(-H // RC)

    def conv_chunk(r0):
        acc = jnp.zeros((RC, W, Cb), jnp.float32)
        for dx in range(5):
            # One sublane-realigned load per dx; the lane axis (channels) is
            # never shifted, and dy offsets below are free leading-dim slices.
            cols = xp_ref[pl.ds(r0, RC + 4), pl.ds(COL0 - 2 + dx, W), :]
            for dy in range(5):
                acc = acc + cols[dy:dy + RC] * w_ref[dy * 5 + dx]
        o_ref[pl.ds(r0, RC), :, :] = acc.astype(o_ref.dtype)

    if n_chunks == 1:
        conv_chunk(0)
    elif n_chunks <= 4:
        # Fully static unroll: all slice starts are compile-time constants.
        for i in range(n_chunks):
            conv_chunk(min(i * RC, H - RC))  # last chunk may overlap (cheap)
    else:
        def body(i, carry):
            conv_chunk(jnp.minimum(i * RC, H - RC))
            return carry
        lax.fori_loop(0, n_chunks, body, 0)


def _dw5x5_nhwc(x_nhwc, w_25c):
    """x_nhwc: (B, H, W, C); w_25c: (25, C) f32  ->  (B, H, W, C)."""
    B, H, W, C = x_nhwc.shape
    # Channel blocking: the lane-axis block must be a multiple of 128 or the
    # full channel extent.
    if C > 128 and C % 128 == 0:
        Cb = 128
    else:
        Cb = C
    grid = (B, C // Cb)

    return pl.pallas_call(
        _dw5x5_kernel,
        out_shape=jax.ShapeDtypeStruct((B, H, W, C), x_nhwc.dtype),
        grid_spec=pltpu.PrefetchScalarGridSpec(
            num_scalar_prefetch=0,
            grid=grid,
            in_specs=[
                # (25, Cb) tap table in VMEM (lane vectors; avoids the 2-D
                # SMEM padding blowup of the previous (C, 25) scalar table).
                pl.BlockSpec((25, Cb), lambda b, c: (0, c)),
                # Full (H, W, Cb) block per step; C on lanes, W on sublanes.
                pl.BlockSpec((None, H, W, Cb), lambda b, c: (b, 0, 0, c)),
            ],
            out_specs=pl.BlockSpec((None, H, W, Cb), lambda b, c: (b, 0, 0, c)),
            scratch_shapes=[pltpu.VMEM((H + 4, W + 10, Cb), jnp.float32)],
        ),
        compiler_params=pltpu.CompilerParams(
            dimension_semantics=("parallel", "parallel")),
    )(w_25c, x_nhwc)
    # TODO(synk): very large H*W planes need a row-tiled grid axis with a
    # manually DMA'd 2-row halo (memory_space=pl.ANY) + explicit
    # vmem_limit_bytes to stay within v7x's 64 MiB VMEM.


# ----------------------------- parameter setup ------------------------------
def make_params(dim, key):
    """Deterministic synthetic parameters matching OmniShift.__init__ shapes."""
    k1, k2, k3, k4 = jax.random.split(key, 4)
    w1x1 = jax.random.normal(k1, (dim, 1, 1, 1), jnp.float32) * 0.1
    w3x3 = jax.random.normal(k2, (dim, 1, 3, 3), jnp.float32) * 0.1
    w5x5 = jax.random.normal(k3, (dim, 1, 5, 5), jnp.float32) * 0.1
    alpha = jax.random.normal(k4, (4,), jnp.float32)
    return w1x1, w3x3, w5x5, alpha


def reparam_5x5(w1x1, w3x3, w5x5, alpha):
    """Exact JAX translation of OmniShift.reparam_5x5 (glue, not hot path)."""
    pad1 = jnp.pad(w1x1, ((0, 0), (0, 0), (2, 2), (2, 2)))
    pad3 = jnp.pad(w3x3, ((0, 0), (0, 0), (1, 1), (1, 1)))
    ident = jnp.pad(jnp.ones_like(w1x1), ((0, 0), (0, 0), (2, 2), (2, 2)))
    combined = (alpha[0] * ident + alpha[1] * pad1
                + alpha[2] * pad3 + alpha[3] * w5x5)          # (C, 1, 5, 5)
    return combined


def omni_shift_forward(x_nchw, combined_weight):
    """Matches F.conv2d(x, combined_weight, padding=2, groups=C); NCHW in/out."""
    B, C, H, W = x_nchw.shape
    # Tap table as (25, C) lane vectors, k = ky*5 + kx (row-major 5x5 flatten).
    w_25c = jnp.transpose(combined_weight.reshape(C, 25), (1, 0)).astype(jnp.float32)
    # Layout plumbing only: present a channels-last (lane-dense) slab.
    x_nhwc = jnp.transpose(x_nchw, (0, 2, 3, 1))
    out_nhwc = _dw5x5_nhwc(x_nhwc, w_25c)
    return jnp.transpose(out_nhwc, (0, 3, 1, 2))


# ----------------------------- reference (plain JAX) -------------------------
def _ref_forward(x_nchw, combined_weight):
    C = x_nchw.shape[1]
    return lax.conv_general_dilated(
        x_nchw, combined_weight,
        window_strides=(1, 1), padding=((2, 2), (2, 2)),
        feature_group_count=C,
        dimension_numbers=("NCHW", "OIHW", "NCHW"))


if __name__ == "__main__":
    key = jax.random.PRNGKey(0)
    kx, kp, kx2 = jax.random.split(key, 3)

    B, C, H, W = 2, 4, 16, 16
    x = jax.random.normal(kx, (B, C, H, W), jnp.float32)
    w1x1, w3x3, w5x5, alpha = make_params(C, kp)
    combined = reparam_5x5(w1x1, w3x3, w5x5, alpha)

    out = omni_shift_forward(x, combined)
    out = jax.block_until_ready(out)
    ref = _ref_forward(x, combined)
    assert out.shape == (B, C, H, W)
    assert jnp.allclose(out, ref, atol=1e-4, rtol=1e-4), "mismatch vs reference"

    # Second shape: exercises the multi-chunk row path with an overlapping tail.
    x2 = jax.random.normal(kx2, (1, C, 20, 16), jnp.float32)
    out2 = jax.block_until_ready(omni_shift_forward(x2, combined))
    ref2 = _ref_forward(x2, combined)
    assert jnp.allclose(out2, ref2, atol=1e-4, rtol=1e-4), "mismatch vs reference (tall)"

    print("KERNEL_OK")
</pallas_src>

<mosaic_0001>
module attributes {stable_mosaic.version = 11 : i64} {
  func.func @_dw5x5_kernel(%arg0: i32, %arg1: i32, %arg2: memref<25x4xf32, #tpu.memory_space<vmem>>, %arg3: memref<1x16x16x4xf32, #tpu.memory_space<vmem>>, %arg4: memref<1x16x16x4xf32, #tpu.memory_space<vmem>>, %arg5: memref<20x26x4xf32, #tpu.memory_space<vmem>>) attributes {dimension_semantics = [#tpu.dimension_semantics<parallel>, #tpu.dimension_semantics<parallel>], iteration_bounds = array<i64: 2, 1>, scalar_prefetch = 0 : i64, scratch_operands = 1 : i64, tpu.core_type = #tpu.core_type<tc>, window_params = [{transform_indices = @transform_0, window_bounds = array<i64: 25, 4>}, {transform_indices = @transform_1, window_bounds = array<i64: 1, 16, 16, 4>}, {transform_indices = @transform_2, window_bounds = array<i64: 1, 16, 16, 4>}]} {
    %cst = arith.constant 0.000000e+00 : f32
    %0 = vector.broadcast %cst : f32 to vector<2x26x4xf32>
    %c0 = arith.constant 0 : index
    %c0_0 = arith.constant 0 : index
    %c0_1 = arith.constant 0 : index
    %1 = vector.load %arg5[%c0, %c0_0, %c0_1] : memref<20x26x4xf32, #tpu.memory_space<vmem>>, vector<2x26x4xf32>
    tpu.vector_store %arg5[%c0, %c0_0, %c0_1], %0 {strides = array<i32>} : memref<20x26x4xf32, #tpu.memory_space<vmem>>, vector<2x26x4xf32>,
    %c18 = arith.constant 18 : index
    %c0_2 = arith.constant 0 : index
    %c0_3 = arith.constant 0 : index
    %2 = vector.load %arg5[%c18, %c0_2, %c0_3] : memref<20x26x4xf32, #tpu.memory_space<vmem>>, vector<2x26x4xf32>
    tpu.vector_store %arg5[%c18, %c0_2, %c0_3], %0 {strides = array<i32>} : memref<20x26x4xf32, #tpu.memory_space<vmem>>, vector<2x26x4xf32>,
    %cst_4 = arith.constant 0.000000e+00 : f32
    %3 = vector.broadcast %cst_4 : f32 to vector<20x2x4xf32>
    %c0_5 = arith.constant 0 : index
    %c6 = arith.constant 6 : index
    %c0_6 = arith.constant 0 : index
    %4 = vector.load %arg5[%c0_5, %c6, %c0_6] : memref<20x26x4xf32, #tpu.memory_space<vmem>>, vector<20x2x4xf32>
    tpu.vector_store %arg5[%c0_5, %c6, %c0_6], %3 {strides = array<i32>} : memref<20x26x4xf32, #tpu.memory_space<vmem>>, vector<20x2x4xf32>,
    %c0_7 = arith.constant 0 : index
    %c24 = arith.constant 24 : index
    %c0_8 = arith.constant 0 : index
    %5 = vector.load %arg5[%c0_7, %c24, %c0_8] : memref<20x26x4xf32, #tpu.memory_space<vmem>>, vector<20x2x4xf32>
    tpu.vector_store %arg5[%c0_7, %c24, %c0_8], %3 {strides = array<i32>} : memref<20x26x4xf32, #tpu.memory_space<vmem>>, vector<20x2x4xf32>,
    %c0_9 = arith.constant 0 : index
    %c0_10 = arith.constant 0 : index
    %c0_11 = arith.constant 0 : index
    %c0_12 = arith.constant 0 : index
    %6 = vector.load %arg3[%c0_9, %c0_10, %c0_11, %c0_12] : memref<1x16x16x4xf32, #tpu.memory_space<vmem>>, vector<1x16x16x4xf32>
    %7 = vector.shape_cast %6 : vector<1x16x16x4xf32> to vector<16x16x4xf32>
    %c2 = arith.constant 2 : index
    %c8 = arith.constant 8 : index
    %c0_13 = arith.constant 0 : index
    %8 = vector.load %arg5[%c2, %c8, %c0_13] : memref<20x26x4xf32, #tpu.memory_space<vmem>>, vector<16x16x4xf32>
    tpu.vector_store %arg5[%c2, %c8, %c0_13], %7 {strides = array<i32>} : memref<20x26x4xf32, #tpu.memory_space<vmem>>, vector<16x16x4xf32>,
    %cst_14 = arith.constant 0.000000e+00 : f32
    %9 = vector.broadcast %cst_14 : f32 to vector<8x16x4xf32>
    %c0_15 = arith.constant 0 : index
    %c6_16 = arith.constant 6 : index
    %c0_17 = arith.constant 0 : index
    %10 = vector.load %arg5[%c0_15, %c6_16, %c0_17] : memref<20x26x4xf32, #tpu.memory_space<vmem>>, vector<12x16x4xf32>
    %11 = vector.extract_strided_slice %10 {offsets = [0, 0, 0], sizes = [8, 16, 4], strides = [1, 1, 1]} : vector<12x16x4xf32> to vector<8x16x4xf32>
    %c0_18 = arith.constant 0 : index
    %c0_19 = arith.constant 0 : index
    %12 = vector.load %arg2[%c0_18, %c0_19] : memref<25x4xf32, #tpu.memory_space<vmem>>, vector<1x4xf32>
    %13 = vector.shape_cast %12 : vector<1x4xf32> to vector<4xf32>
    %14 = vector.shape_cast %13 : vector<4xf32> to vector<1x1x4xf32>
    %15 = vector.broadcast %14 : vector<1x1x4xf32> to vector<8x16x4xf32>
    %16 = arith.mulf %11, %15 : vector<8x16x4xf32>
    %17 = arith.addf %9, %16 : vector<8x16x4xf32>
    %18 = vector.extract_strided_slice %10 {offsets = [1, 0, 0], sizes = [8, 16, 4], strides = [1, 1, 1]} : vector<12x16x4xf32> to vector<8x16x4xf32>
    %c5 = arith.constant 5 : index
    %c0_20 = arith.constant 0 : index
    %19 = vector.load %arg2[%c5, %c0_20] : memref<25x4xf32, #tpu.memory_space<vmem>>, vector<1x4xf32>
    %20 = vector.shape_cast %19 : vector<1x4xf32> to vector<4xf32>
    %21 = vector.shape_cast %20 : vector<4xf32> to vector<1x1x4xf32>
    %22 = vector.broadcast %21 : vector<1x1x4xf32> to vector<8x16x4xf32>
    %23 = arith.mulf %18, %22 : vector<8x16x4xf32>
    %24 = arith.addf %17, %23 : vector<8x16x4xf32>
    %25 = vector.extract_strided_slice %10 {offsets = [2, 0, 0], sizes = [8, 16, 4], strides = [1, 1, 1]} : vector<12x16x4xf32> to vector<8x16x4xf32>
    %c10 = arith.constant 10 : index
    %c0_21 = arith.constant 0 : index
    %26 = vector.load %arg2[%c10, %c0_21] : memref<25x4xf32, #tpu.memory_space<vmem>>, vector<1x4xf32>
    %27 = vector.shape_cast %26 : vector<1x4xf32> to vector<4xf32>
    %28 = vector.shape_cast %27 : vector<4xf32> to vector<1x1x4xf32>
    %29 = vector.broadcast %28 : vector<1x1x4xf32> to vector<8x16x4xf32>
    %30 = arith.mulf %25, %29 : vector<8x16x4xf32>
    %31 = arith.addf %24, %30 : vector<8x16x4xf32>
    %32 = vector.extract_strided_slice %10 {offsets = [3, 0, 0], sizes = [8, 16, 4], strides = [1, 1, 1]} : vector<12x16x4xf32> to vector<8x16x4xf32>
    %c15 = arith.constant 15 : index
    %c0_22 = arith.constant 0 : index
    %33 = vector.load %arg2[%c15, %c0_22] : memref<25x4xf32, #tpu.memory_space<vmem>>, vector<1x4xf32>
    %34 = vector.shape_cast %33 : vector<1x4xf32> to vector<4xf32>
    %35 = vector.shape_cast %34 : vector<4xf32> to vector<1x1x4xf32>
    %36 = vector.broadcast %35 : vector<1x1x4xf32> to vector<8x16x4xf32>
    %37 = arith.mulf %32, %36 : vector<8x16x4xf32>
    %38 = arith.addf %31, %37 : vector<8x16x4xf32>
    %39 = vector.extract_strided_slice %10 {offsets = [4, 0, 0], sizes = [8, 16, 4], strides = [1, 1, 1]} : vector<12x16x4xf32> to vector<8x16x4xf32>
    %c20 = arith.constant 20 : index
    %c0_23 = arith.constant 0 : index
    %40 = vector.load %arg2[%c20, %c0_23] : memref<25x4xf32, #tpu.memory_space<vmem>>, vector<1x4xf32>
    %41 = vector.shape_cast %40 : vector<1x4xf32> to vector<4xf32>
    %42 = vector.shape_cast %41 : vector<4xf32> to vector<1x1x4xf32>
    %43 = vector.broadcast %42 : vector<1x1x4xf32> to vector<8x16x4xf32>
    %44 = arith.mulf %39, %43 : vector<8x16x4xf32>
    %45 = arith.addf %38, %44 : vector<8x16x4xf32>
    %c0_24 = arith.constant 0 : index
    %c7 = arith.constant 7 : index
    %c0_25 = arith.constant 0 : index
    %46 = vector.load %arg5[%c0_24, %c7, %c0_25] : memref<20x26x4xf32, #tpu.memory_space<vmem>>, vector<12x16x4xf32>
    %47 = vector.extract_strided_slice %46 {offsets = [0, 0, 0], sizes = [8, 16, 4], strides = [1, 1, 1]} : vector<12x16x4xf32> to vector<8x16x4xf32>
    %c1 = arith.constant 1 : index
    %c0_26 = arith.constant 0 : index
    %48 = vector.load %arg2[%c1, %c0_26] : memref<25x4xf32, #tpu.memory_space<vmem>>, vector<1x4xf32>
    %49 = vector.shape_cast %48 : vector<1x4xf32> to vector<4xf32>
    %50 = vector.shape_cast %49 : vector<4xf32> to vector<1x1x4xf32>
    %51 = vector.broadcast %50 : vector<1x1x4xf32> to vector<8x16x4xf32>
    %52 = arith.mulf %47, %51 : vector<8x16x4xf32>
    %53 = arith.addf %45, %52 : vector<8x16x4xf32>
    %54 = vector.extract_strided_slice %46 {offsets = [1, 0, 0], sizes = [8, 16, 4], strides = [1, 1, 1]} : vector<12x16x4xf32> to vector<8x16x4xf32>
    %c6_27 = arith.constant 6 : index
    %c0_28 = arith.constant 0 : index
    %55 = vector.load %arg2[%c6_27, %c0_28] : memref<25x4xf32, #tpu.memory_space<vmem>>, vector<1x4xf32>
    %56 = vector.shape_cast %55 : vector<1x4xf32> to vector<4xf32>
    %57 = vector.shape_cast %56 : vector<4xf32> to vector<1x1x4xf32>
    %58 = vector.broadcast %57 : vector<1x1x4xf32> to vector<8x16x4xf32>
    %59 = arith.mulf %54, %58 : vector<8x16x4xf32>
    %60 = arith.addf %53, %59 : vector<8x16x4xf32>
    %61 = vector.extract_strided_slice %46 {offsets = [2, 0, 0], sizes = [8, 16, 4], strides = [1, 1, 1]} : vector<12x16x4xf32> to vector<8x16x4xf32>
    %c11 = arith.constant 11 : index
    %c0_29 = arith.constant 0 : index
    %62 = vector.load %arg2[%c11, %c0_29] : memref<25x4xf32, #tpu.memory_space<vmem>>, vector<1x4xf32>
    %63 = vector.shape_cast %62 : vector<1x4xf32> to vector<4xf32>
    %64 = vector.shape_cast %63 : vector<4xf32> to vector<1x1x4xf32>
    %65 = vector.broadcast %64 : vector<1x1x4xf32> to vector<8x16x4xf32>
    %66 = arith.mulf %61, %65 : vector<8x16x4xf32>
    %67 = arith.addf %60, %66 : vector<8x16x4xf32>
    %68 = vector.extract_strided_slice %46 {offsets = [3, 0, 0], sizes = [8, 16, 4], strides = [1, 1, 1]} : vector<12x16x4xf32> to vector<8x16x4xf32>
    %c16 = arith.constant 16 : index
    %c0_30 = arith.constant 0 : index
    %69 = vector.load %arg2[%c16, %c0_30] : memref<25x4xf32, #tpu.memory_space<vmem>>, vector<1x4xf32>
    %70 = vector.shape_cast %69 : vector<1x4xf32> to vector<4xf32>
    %71 = vector.shape_cast %70 : vector<4xf32> to vector<1x1x4xf32>
    %72 = vector.broadcast %71 : vector<1x1x4xf32> to vector<8x16x4xf32>
    %73 = arith.mulf %68, %72 : vector<8x16x4xf32>
    %74 = arith.addf %67, %73 : vector<8x16x4xf32>
    %75 = vector.extract_strided_slice %46 {offsets = [4, 0, 0], sizes = [8, 16, 4], strides = [1, 1, 1]} : vector<12x16x4xf32> to vector<8x16x4xf32>
    %c21 = arith.constant 21 : index
    %c0_31 = arith.constant 0 : index
    %76 = vector.load %arg2[%c21, %c0_31] : memref<25x4xf32, #tpu.memory_space<vmem>>, vector<1x4xf32>
    %77 = vector.shape_cast %76 : vector<1x4xf32> to vector<4xf32>
    %78 = vector.shape_cast %77 : vector<4xf32> to vector<1x1x4xf32>
    %79 = vector.broadcast %78 : vector<1x1x4xf32> to vector<8x16x4xf32>
    %80 = arith.mulf %75, %79 : vector<8x16x4xf32>
    %81 = arith.addf %74, %80 : vector<8x16x4xf32>
    %c0_32 = arith.constant 0 : index
    %c8_33 = arith.constant 8 : index
    %c0_34 = arith.constant 0 : index
    %82 = vector.load %arg5[%c0_32, %c8_33, %c0_34] : memref<20x26x4xf32, #tpu.memory_space<vmem>>, vector<12x16x4xf32>
    %83 = vector.extract_strided_slice %82 {offsets = [0, 0, 0], sizes = [8, 16, 4], strides = [1, 1, 1]} : vector<12x16x4xf32> to vector<8x16x4xf32>
    %c2_35 = arith.constant 2 : index
    %c0_36 = arith.constant 0 : index
    %84 = vector.load %arg2[%c2_35, %c0_36] : memref<25x4xf32, #tpu.memory_space<vmem>>, vector<1x4xf32>
    %85 = vector.shape_cast %84 : vector<1x4xf32> to vector<4xf32>
    %86 = vector.shape_cast %85 : vector<4xf32> to vector<1x1x4xf32>
    %87 = vector.broadcast %86 : vector<1x1x4xf32> to vector<8x16x4xf32>
    %88 = arith.mulf %83, %87 : vector<8x16x4xf32>
    %89 = arith.addf %81, %88 : vector<8x16x4xf32>
    %90 = vector.extract_strided_slice %82 {offsets = [1, 0, 0], sizes = [8, 16, 4], strides = [1, 1, 1]} : vector<12x16x4xf32> to vector<8x16x4xf32>
    %c7_37 = arith.constant 7 : index
    %c0_38 = arith.constant 0 : index
    %91 = vector.load %arg2[%c7_37, %c0_38] : memref<25x4xf32, #tpu.memory_space<vmem>>, vector<1x4xf32>
    %92 = vector.shape_cast %91 : vector<1x4xf32> to vector<4xf32>
    %93 = vector.shape_cast %92 : vector<4xf32> to vector<1x1x4xf32>
    %94 = vector.broadcast %93 : vector<1x1x4xf32> to vector<8x16x4xf32>
    %95 = arith.mulf %90, %94 : vector<8x16x4xf32>
    %96 = arith.addf %89, %95 : vector<8x16x4xf32>
    %97 = vector.extract_strided_slice %82 {offsets = [2, 0, 0], sizes = [8, 16, 4], strides = [1, 1, 1]} : vector<12x16x4xf32> to vector<8x16x4xf32>
    %c12 = arith.constant 12 : index
    %c0_39 = arith.constant 0 : index
    %98 = vector.load %arg2[%c12, %c0_39] : memref<25x4xf32, #tpu.memory_space<vmem>>, vector<1x4xf32>
    %99 = vector.shape_cast %98 : vector<1x4xf32> to vector<4xf32>
    %100 = vector.shape_cast %99 : vector<4xf32> to vector<1x1x4xf32>
    %101 = vector.broadcast %100 : vector<1x1x4xf32> to vector<8x16x4xf32>
    %102 = arith.mulf %97, %101 : vector<8x16x4xf32>
    %103 = arith.addf %96, %102 : vector<8x16x4xf32>
    %104 = vector.extract_strided_slice %82 {offsets = [3, 0, 0], sizes = [8, 16, 4], strides = [1, 1, 1]} : vector<12x16x4xf32> to vector<8x16x4xf32>
    %c17 = arith.constant 17 : index
    %c0_40 = arith.constant 0 : index
    %105 = vector.load %arg2[%c17, %c0_40] : memref<25x4xf32, #tpu.memory_space<vmem>>, vector<1x4xf32>
    %106 = vector.shape_cast %105 : vector<1x4xf32> to vector<4xf32>
    %107 = vector.shape_cast %106 : vector<4xf32> to vector<1x1x4xf32>
    %108 = vector.broadcast %107 : vector<1x1x4xf32> to vector<8x16x4xf32>
    %109 = arith.mulf %104, %108 : vector<8x16x4xf32>
    %110 = arith.addf %103, %109 : vector<8x16x4xf32>
    %111 = vector.extract_strided_slice %82 {offsets = [4, 0, 0], sizes = [8, 16, 4], strides = [1, 1, 1]} : vector<12x16x4xf32> to vector<8x16x4xf32>
    %c22 = arith.constant 22 : index
    %c0_41 = arith.constant 0 : index
    %112 = vector.load %arg2[%c22, %c0_41] : memref<25x4xf32, #tpu.memory_space<vmem>>, vector<1x4xf32>
    %113 = vector.shape_cast %112 : vector<1x4xf32> to vector<4xf32>
    %114 = vector.shape_cast %113 : vector<4xf32> to vector<1x1x4xf32>
    %115 = vector.broadcast %114 : vector<1x1x4xf32> to vector<8x16x4xf32>
    %116 = arith.mulf %111, %115 : vector<8x16x4xf32>
    %117 = arith.addf %110, %116 : vector<8x16x4xf32>
    %c0_42 = arith.constant 0 : index
    %c9 = arith.constant 9 : index
    %c0_43 = arith.constant 0 : index
    %118 = vector.load %arg5[%c0_42, %c9, %c0_43] : memref<20x26x4xf32, #tpu.memory_space<vmem>>, vector<12x16x4xf32>
    %119 = vector.extract_strided_slice %118 {offsets = [0, 0, 0], sizes = [8, 16, 4], strides = [1, 1, 1]} : vector<12x16x4xf32> to vector<8x16x4xf32>
    %c3 = arith.constant 3 : index
    %c0_44 = arith.constant 0 : index
    %120 = vector.load %arg2[%c3, %c0_44] : memref<25x4xf32, #tpu.memory_space<vmem>>, vector<1x4xf32>
    %121 = vector.shape_cast %120 : vector<1x4xf32> to vector<4xf32>
    %122 = vector.shape_cast %121 : vector<4xf32> to vector<1x1x4xf32>
    %123 = vector.broadcast %122 : vector<1x1x4xf32> to vector<8x16x4xf32>
    %124 = arith.mulf %119, %123 : vector<8x16x4xf32>
    %125 = arith.addf %117, %124 : vector<8x16x4xf32>
    %126 = vector.extract_strided_slice %118 {offsets = [1, 0, 0], sizes = [8, 16, 4], strides = [1, 1, 1]} : vector<12x16x4xf32> to vector<8x16x4xf32>
    %c8_45 = arith.constant 8 : index
    %c0_46 = arith.constant 0 : index
    %127 = vector.load %arg2[%c8_45, %c0_46] : memref<25x4xf32, #tpu.memory_space<vmem>>, vector<1x4xf32>
    %128 = vector.shape_cast %127 : vector<1x4xf32> to vector<4xf32>
    %129 = vector.shape_cast %128 : vector<4xf32> to vector<1x1x4xf32>
    %130 = vector.broadcast %129 : vector<1x1x4xf32> to vector<8x16x4xf32>
    %131 = arith.mulf %126, %130 : vector<8x16x4xf32>
    %132 = arith.addf %125, %131 : vector<8x16x4xf32>
    %133 = vector.extract_strided_slice %118 {offsets = [2, 0, 0], sizes = [8, 16, 4], strides = [1, 1, 1]} : vector<12x16x4xf32> to vector<8x16x4xf32>
    %c13 = arith.constant 13 : index
    %c0_47 = arith.constant 0 : index
    %134 = vector.load %arg2[%c13, %c0_47] : memref<25x4xf32, #tpu.memory_space<vmem>>, vector<1x4xf32>
    %135 = vector.shape_cast %134 : vector<1x4xf32> to vector<4xf32>
    %136 = vector.shape_cast %135 : vector<4xf32> to vector<1x1x4xf32>
    %137 = vector.broadcast %136 : vector<1x1x4xf32> to vector<8x16x4xf32>
    %138 = arith.mulf %133, %137 : vector<8x16x4xf32>
    %139 = arith.addf %132, %138 : vector<8x16x4xf32>
    %140 = vector.extract_strided_slice %118 {offsets = [3, 0, 0], sizes = [8, 16, 4], strides = [1, 1, 1]} : vector<12x16x4xf32> to vector<8x16x4xf32>
    %c18_48 = arith.constant 18 : index
    %c0_49 = arith.constant 0 : index
    %141 = vector.load %arg2[%c18_48, %c0_49] : memref<25x4xf32, #tpu.memory_space<vmem>>, vector<1x4xf32>
    %142 = vector.shape_cast %141 : vector<1x4xf32> to vector<4xf32>
    %143 = vector.shape_cast %142 : vector<4xf32> to vector<1x1x4xf32>
    %144 = vector.broadcast %143 : vector<1x1x4xf32> to vector<8x16x4xf32>
    %145 = arith.mulf %140, %144 : vector<8x16x4xf32>
    %146 = arith.addf %139, %145 : vector<8x16x4xf32>
    %147 = vector.extract_strided_slice %118 {offsets = [4, 0, 0], sizes = [8, 16, 4], strides = [1, 1, 1]} : vector<12x16x4xf32> to vector<8x16x4xf32>
    %c23 = arith.constant 23 : index
    %c0_50 = arith.constant 0 : index
    %148 = vector.load %arg2[%c23, %c0_50] : memref<25x4xf32, #tpu.memory_space<vmem>>, vector<1x4xf32>
    %149 = vector.shape_cast %148 : vector<1x4xf32> to vector<4xf32>
    %150 = vector.shape_cast %149 : vector<4xf32> to vector<1x1x4xf32>
    %151 = vector.broadcast %150 : vector<1x1x4xf32> to vector<8x16x4xf32>
    %152 = arith.mulf %147, %151 : vector<8x16x4xf32>
    %153 = arith.addf %146, %152 : vector<8x16x4xf32>
    %c0_51 = arith.constant 0 : index
    %c10_52 = arith.constant 10 : index
    %c0_53 = arith.constant 0 : index
    %154 = vector.load %arg5[%c0_51, %c10_52, %c0_53] : memref<20x26x4xf32, #tpu.memory_space<vmem>>, vector<12x16x4xf32>
    %155 = vector.extract_strided_slice %154 {offsets = [0, 0, 0], sizes = [8, 16, 4], strides = [1, 1, 1]} : vector<12x16x4xf32> to vector<8x16x4xf32>
    %c4 = arith.constant 4 : index
    %c0_54 = arith.constant 0 : index
    %156 = vector.load %arg2[%c4, %c0_54] : memref<25x4xf32, #tpu.memory_space<vmem>>, vector<1x4xf32>
    %157 = vector.shape_cast %156 : vector<1x4xf32> to vector<4xf32>
    %158 = vector.shape_cast %157 : vector<4xf32> to vector<1x1x4xf32>
    %159 = vector.broadcast %158 : vector<1x1x4xf32> to vector<8x16x4xf32>
    %160 = arith.mulf %155, %159 : vector<8x16x4xf32>
    %161 = arith.addf %153, %160 : vector<8x16x4xf32>
    %162 = vector.extract_strided_slice %154 {offsets = [1, 0, 0], sizes = [8, 16, 4], strides = [1, 1, 1]} : vector<12x16x4xf32> to vector<8x16x4xf32>
    %c9_55 = arith.constant 9 : index
    %c0_56 = arith.constant 0 : index
    %163 = vector.load %arg2[%c9_55, %c0_56] : memref<25x4xf32, #tpu.memory_space<vmem>>, vector<1x4xf32>
    %164 = vector.shape_cast %163 : vector<1x4xf32> to vector<4xf32>
    %165 = vector.shape_cast %164 : vector<4xf32> to vector<1x1x4xf32>
    %166 = vector.broadcast %165 : vector<1x1x4xf32> to vector<8x16x4xf32>
    %167 = arith.mulf %162, %166 : vector<8x16x4xf32>
    %168 = arith.addf %161, %167 : vector<8x16x4xf32>
    %169 = vector.extract_strided_slice %154 {offsets = [2, 0, 0], sizes = [8, 16, 4], strides = [1, 1, 1]} : vector<12x16x4xf32> to vector<8x16x4xf32>
    %c14 = arith.constant 14 : index
    %c0_57 = arith.constant 0 : index
    %170 = vector.load %arg2[%c14, %c0_57] : memref<25x4xf32, #tpu.memory_space<vmem>>, vector<1x4xf32>
    %171 = vector.shape_cast %170 : vector<1x4xf32> to vector<4xf32>
    %172 = vector.shape_cast %171 : vector<4xf32> to vector<1x1x4xf32>
    %173 = vector.broadcast %172 : vector<1x1x4xf32> to vector<8x16x4xf32>
    %174 = arith.mulf %169, %173 : vector<8x16x4xf32>
    %175 = arith.addf %168, %174 : vector<8x16x4xf32>
    %176 = vector.extract_strided_slice %154 {offsets = [3, 0, 0], sizes = [8, 16, 4], strides = [1, 1, 1]} : vector<12x16x4xf32> to vector<8x16x4xf32>
    %c19 = arith.constant 19 : index
    %c0_58 = arith.constant 0 : index
    %177 = vector.load %arg2[%c19, %c0_58] : memref<25x4xf32, #tpu.memory_space<vmem>>, vector<1x4xf32>
    %178 = vector.shape_cast %177 : vector<1x4xf32> to vector<4xf32>
    %179 = vector.shape_cast %178 : vector<4xf32> to vector<1x1x4xf32>
    %180 = vector.broadcast %179 : vector<1x1x4xf32> to vector<8x16x4xf32>
    %181 = arith.mulf %176, %180 : vector<8x16x4xf32>
    %182 = arith.addf %175, %181 : vector<8x16x4xf32>
    %183 = vector.extract_strided_slice %154 {offsets = [4, 0, 0], sizes = [8, 16, 4], strides = [1, 1, 1]} : vector<12x16x4xf32> to vector<8x16x4xf32>
    %c24_59 = arith.constant 24 : index
    %c0_60 = arith.constant 0 : index
    %184 = vector.load %arg2[%c24_59, %c0_60] : memref<25x4xf32, #tpu.memory_space<vmem>>, vector<1x4xf32>
    %185 = vector.shape_cast %184 : vector<1x4xf32> to vector<4xf32>
    %186 = vector.shape_cast %185 : vector<4xf32> to vector<1x1x4xf32>
    %187 = vector.broadcast %186 : vector<1x1x4xf32> to vector<8x16x4xf32>
    %188 = arith.mulf %183, %187 : vector<8x16x4xf32>
    %189 = arith.addf %182, %188 : vector<8x16x4xf32>
    %c0_61 = arith.constant 0 : index
    %c0_62 = arith.constant 0 : index
    %c0_63 = arith.constant 0 : index
    %c0_64 = arith.constant 0 : index
    %190 = vector.load %arg4[%c0_61, %c0_62, %c0_63, %c0_64] : memref<1x16x16x4xf32, #tpu.memory_space<vmem>>, vector<1x8x16x4xf32>
    %191 = vector.shape_cast %190 : vector<1x8x16x4xf32> to vector<8x16x4xf32>
    %192 = vector.shape_cast %189 : vector<8x16x4xf32> to vector<1x8x16x4xf32>
    tpu.vector_store %arg4[%c0_61, %c0_62, %c0_63, %c0_64], %192 {strides = array<i32>} : memref<1x16x16x4xf32, #tpu.memory_space<vmem>>, vector<1x8x16x4xf32>,
    %cst_65 = arith.constant 0.000000e+00 : f32
    %193 = vector.broadcast %cst_65 : f32 to vector<8x16x4xf32>
    %c8_66 = arith.constant 8 : index
    %c6_67 = arith.constant 6 : index
    %c0_68 = arith.constant 0 : index
    %194 = vector.load %arg5[%c8_66, %c6_67, %c0_68] : memref<20x26x4xf32, #tpu.memory_space<vmem>>, vector<12x16x4xf32>
    %195 = vector.extract_strided_slice %194 {offsets = [0, 0, 0], sizes = [8, 16, 4], strides = [1, 1, 1]} : vector<12x16x4xf32> to vector<8x16x4xf32>
    %c0_69 = arith.constant 0 : index
    %c0_70 = arith.constant 0 : index
    %196 = vector.load %arg2[%c0_69, %c0_70] : memref<25x4xf32, #tpu.memory_space<vmem>>, vector<1x4xf32>
    %197 = vector.shape_cast %196 : vector<1x4xf32> to vector<4xf32>
    %198 = vector.shape_cast %197 : vector<4xf32> to vector<1x1x4xf32>
    %199 = vector.broadcast %198 : vector<1x1x4xf32> to vector<8x16x4xf32>
    %200 = arith.mulf %195, %199 : vector<8x16x4xf32>
    %201 = arith.addf %193, %200 : vector<8x16x4xf32>
    %202 = vector.extract_strided_slice %194 {offsets = [1, 0, 0], sizes = [8, 16, 4], strides = [1, 1, 1]} : vector<12x16x4xf32> to vector<8x16x4xf32>
    %c5_71 = arith.constant 5 : index
    %c0_72 = arith.constant 0 : index
    %203 = vector.load %arg2[%c5_71, %c0_72] : memref<25x4xf32, #tpu.memory_space<vmem>>, vector<1x4xf32>
    %204 = vector.shape_cast %203 : vector<1x4xf32> to vector<4xf32>
    %205 = vector.shape_cast %204 : vector<4xf32> to vector<1x1x4xf32>
    %206 = vector.broadcast %205 : vector<1x1x4xf32> to vector<8x16x4xf32>
    %207 = arith.mulf %202, %206 : vector<8x16x4xf32>
    %208 = arith.addf %201, %207 : vector<8x16x4xf32>
    %209 = vector.extract_strided_slice %194 {offsets = [2, 0, 0], sizes = [8, 16, 4], strides = [1, 1, 1]} : vector<12x16x4xf32> to vector<8x16x4xf32>
    %c10_73 = arith.constant 10 : index
    %c0_74 = arith.constant 0 : index
    %210 = vector.load %arg2[%c10_73, %c0_74] : memref<25x4xf32, #tpu.memory_space<vmem>>, vector<1x4xf32>
    %211 = vector.shape_cast %210 : vector<1x4xf32> to vector<4xf32>
    %212 = vector.shape_cast %211 : vector<4xf32> to vector<1x1x4xf32>
    %213 = vector.broadcast %212 : vector<1x1x4xf32> to vector<8x16x4xf32>
    %214 = arith.mulf %209, %213 : vector<8x16x4xf32>
    %215 = arith.addf %208, %214 : vector<8x16x4xf32>
    %216 = vector.extract_strided_slice %194 {offsets = [3, 0, 0], sizes = [8, 16, 4], strides = [1, 1, 1]} : vector<12x16x4xf32> to vector<8x16x4xf32>
    %c15_75 = arith.constant 15 : index
    %c0_76 = arith.constant 0 : index
    %217 = vector.load %arg2[%c15_75, %c0_76] : memref<25x4xf32, #tpu.memory_space<vmem>>, vector<1x4xf32>
    %218 = vector.shape_cast %217 : vector<1x4xf32> to vector<4xf32>
    %219 = vector.shape_cast %218 : vector<4xf32> to vector<1x1x4xf32>
    %220 = vector.broadcast %219 : vector<1x1x4xf32> to vector<8x16x4xf32>
    %221 = arith.mulf %216, %220 : vector<8x16x4xf32>
    %222 = arith.addf %215, %221 : vector<8x16x4xf32>
    %223 = vector.extract_strided_slice %194 {offsets = [4, 0, 0], sizes = [8, 16, 4], strides = [1, 1, 1]} : vector<12x16x4xf32> to vector<8x16x4xf32>
    %c20_77 = arith.constant 20 : index
    %c0_78 = arith.constant 0 : index
    %224 = vector.load %arg2[%c20_77, %c0_78] : memref<25x4xf32, #tpu.memory_space<vmem>>, vector<1x4xf32>
    %225 = vector.shape_cast %224 : vector<1x4xf32> to vector<4xf32>
    %226 = vector.shape_cast %225 : vector<4xf32> to vector<1x1x4xf32>
    %227 = vector.broadcast %226 : vector<1x1x4xf32> to vector<8x16x4xf32>
    %228 = arith.mulf %223, %227 : vector<8x16x4xf32>
    %229 = arith.addf %222, %228 : vector<8x16x4xf32>
    %c8_79 = arith.constant 8 : index
    %c7_80 = arith.constant 7 : index
    %c0_81 = arith.constant 0 : index
    %230 = vector.load %arg5[%c8_79, %c7_80, %c0_81] : memref<20x26x4xf32, #tpu.memory_space<vmem>>, vector<12x16x4xf32>
    %231 = vector.extract_strided_slice %230 {offsets = [0, 0, 0], sizes = [8, 16, 4], strides = [1, 1, 1]} : vector<12x16x4xf32> to vector<8x16x4xf32>
    %c1_82 = arith.constant 1 : index
    %c0_83 = arith.constant 0 : index
    %232 = vector.load %arg2[%c1_82, %c0_83] : memref<25x4xf32, #tpu.memory_space<vmem>>, vector<1x4xf32>
    %233 = vector.shape_cast %232 : vector<1x4xf32> to vector<4xf32>
    %234 = vector.shape_cast %233 : vector<4xf32> to vector<1x1x4xf32>
    %235 = vector.broadcast %234 : vector<1x1x4xf32> to vector<8x16x4xf32>
    %236 = arith.mulf %231, %235 : vector<8x16x4xf32>
    %237 = arith.addf %229, %236 : vector<8x16x4xf32>
    %238 = vector.extract_strided_slice %230 {offsets = [1, 0, 0], sizes = [8, 16, 4], strides = [1, 1, 1]} : vector<12x16x4xf32> to vector<8x16x4xf32>
    %c6_84 = arith.constant 6 : index
    %c0_85 = arith.constant 0 : index
    %239 = vector.load %arg2[%c6_84, %c0_85] : memref<25x4xf32, #tpu.memory_space<vmem>>, vector<1x4xf32>
    %240 = vector.shape_cast %239 : vector<1x4xf32> to vector<4xf32>
    %241 = vector.shape_cast %240 : vector<4xf32> to vector<1x1x4xf32>
    %242 = vector.broadcast %241 : vector<1x1x4xf32> to vector<8x16x4xf32>
    %243 = arith.mulf %238, %242 : vector<8x16x4xf32>
    %244 = arith.addf %237, %243 : vector<8x16x4xf32>
    %245 = vector.extract_strided_slice %230 {offsets = [2, 0, 0], sizes = [8, 16, 4], strides = [1, 1, 1]} : vector<12x16x4xf32> to vector<8x16x4xf32>
    %c11_86 = arith.constant 11 : index
    %c0_87 = arith.constant 0 : index
    %246 = vector.load %arg2[%c11_86, %c0_87] : memref<25x4xf32, #tpu.memory_space<vmem>>, vector<1x4xf32>
    %247 = vector.shape_cast %246 : vector<1x4xf32> to vector<4xf32>
    %248 = vector.shape_cast %247 : vector<4xf32> to vector<1x1x4xf32>
    %249 = vector.broadcast %248 : vector<1x1x4xf32> to vector<8x16x4xf32>
    %250 = arith.mulf %245, %249 : vector<8x16x4xf32>
    %251 = arith.addf %244, %250 : vector<8x16x4xf32>
    %252 = vector.extract_strided_slice %230 {offsets = [3, 0, 0], sizes = [8, 16, 4], strides = [1, 1, 1]} : vector<12x16x4xf32> to vector<8x16x4xf32>
    %c16_88 = arith.constant 16 : index
    %c0_89 = arith.constant 0 : index
    %253 = vector.load %arg2[%c16_88, %c0_89] : memref<25x4xf32, #tpu.memory_space<vmem>>, vector<1x4xf32>
    %254 = vector.shape_cast %253 : vector<1x4xf32> to vector<4xf32>
    %255 = vector.shape_cast %254 : vector<4xf32> to vector<1x1x4xf32>
    %256 = vector.broadcast %255 : vector<1x1x4xf32> to vector<8x16x4xf32>
    %257 = arith.mulf %252, %256 : vector<8x16x4xf32>
    %258 = arith.addf %251, %257 : vector<8x16x4xf32>
    %259 = vector.extract_strided_slice %230 {offsets = [4, 0, 0], sizes = [8, 16, 4], strides = [1, 1, 1]} : vector<12x16x4xf32> to vector<8x16x4xf32>
    %c21_90 = arith.constant 21 : index
    %c0_91 = arith.constant 0 : index
    %260 = vector.load %arg2[%c21_90, %c0_91] : memref<25x4xf32, #tpu.memory_space<vmem>>, vector<1x4xf32>
    %261 = vector.shape_cast %260 : vector<1x4xf32> to vector<4xf32>
    %262 = vector.shape_cast %261 : vector<4xf32> to vector<1x1x4xf32>
    %263 = vector.broadcast %262 : vector<1x1x4xf32> to vector<8x16x4xf32>
    %264 = arith.mulf %259, %263 : vector<8x16x4xf32>
    %265 = arith.addf %258, %264 : vector<8x16x4xf32>
    %c8_92 = arith.constant 8 : index
    %c8_93 = arith.constant 8 : index
    %c0_94 = arith.constant 0 : index
    %266 = vector.load %arg5[%c8_92, %c8_93, %c0_94] : memref<20x26x4xf32, #tpu.memory_space<vmem>>, vector<12x16x4xf32>
    %267 = vector.extract_strided_slice %266 {offsets = [0, 0, 0], sizes = [8, 16, 4], strides = [1, 1, 1]} : vector<12x16x4xf32> to vector<8x16x4xf32>
    %c2_95 = arith.constant 2 : index
    %c0_96 = arith.constant 0 : index
    %268 = vector.load %arg2[%c2_95, %c0_96] : memref<25x4xf32, #tpu.memory_space<vmem>>, vector<1x4xf32>
    %269 = vector.shape_cast %268 : vector<1x4xf32> to vector<4xf32>
    %270 = vector.shape_cast %269 : vector<4xf32> to vector<1x1x4xf32>
    %271 = vector.broadcast %270 : vector<1x1x4xf32> to vector<8x16x4xf32>
    %272 = arith.mulf %267, %271 : vector<8x16x4xf32>
    %273 = arith.addf %265, %272 : vector<8x16x4xf32>
    %274 = vector.extract_strided_slice %266 {offsets = [1, 0, 0], sizes = [8, 16, 4], strides = [1, 1, 1]} : vector<12x16x4xf32> to vector<8x16x4xf32>
    %c7_97 = arith.constant 7 : index
    %c0_98 = arith.constant 0 : index
    %275 = vector.load %arg2[%c7_97, %c0_98] : memref<25x4xf32, #tpu.memory_space<vmem>>, vector<1x4xf32>
    %276 = vector.shape_cast %275 : vector<1x4xf32> to vector<4xf32>
    %277 = vector.shape_cast %276 : vector<4xf32> to vector<1x1x4xf32>
    %278 = vector.broadcast %277 : vector<1x1x4xf32> to vector<8x16x4xf32>
    %279 = arith.mulf %274, %278 : vector<8x16x4xf32>
    %280 = arith.addf %273, %279 : vector<8x16x4xf32>
    %281 = vector.extract_strided_slice %266 {offsets = [2, 0, 0], sizes = [8, 16, 4], strides = [1, 1, 1]} : vector<12x16x4xf32> to vector<8x16x4xf32>
    %c12_99 = arith.constant 12 : index
    %c0_100 = arith.constant 0 : index
    %282 = vector.load %arg2[%c12_99, %c0_100] : memref<25x4xf32, #tpu.memory_space<vmem>>, vector<1x4xf32>
    %283 = vector.shape_cast %282 : vector<1x4xf32> to vector<4xf32>
    %284 = vector.shape_cast %283 : vector<4xf32> to vector<1x1x4xf32>
    %285 = vector.broadcast %284 : vector<1x1x4xf32> to vector<8x16x4xf32>
    %286 = arith.mulf %281, %285 : vector<8x16x4xf32>
    %287 = arith.addf %280, %286 : vector<8x16x4xf32>
    %288 = vector.extract_strided_slice %266 {offsets = [3, 0, 0], sizes = [8, 16, 4], strides = [1, 1, 1]} : vector<12x16x4xf32> to vector<8x16x4xf32>
    %c17_101 = arith.constant 17 : index
    %c0_102 = arith.constant 0 : index
    %289 = vector.load %arg2[%c17_101, %c0_102] : memref<25x4xf32, #tpu.memory_space<vmem>>, vector<1x4xf32>
    %290 = vector.shape_cast %289 : vector<1x4xf32> to vector<4xf32>
    %291 = vector.shape_cast %290 : vector<4xf32> to vector<1x1x4xf32>
    %292 = vector.broadcast %291 : vector<1x1x4xf32> to vector<8x16x4xf32>
    %293 = arith.mulf %288, %292 : vector<8x16x4xf32>
    %294 = arith.addf %287, %293 : vector<8x16x4xf32>
    %295 = vector.extract_strided_slice %266 {offsets = [4, 0, 0], sizes = [8, 16, 4], strides = [1, 1, 1]} : vector<12x16x4xf32> to vector<8x16x4xf32>
    %c22_103 = arith.constant 22 : index
    %c0_104 = arith.constant 0 : index
    %296 = vector.load %arg2[%c22_103, %c0_104] : memref<25x4xf32, #tpu.memory_space<vmem>>, vector<1x4xf32>
    %297 = vector.shape_cast %296 : vector<1x4xf32> to vector<4xf32>
    %298 = vector.shape_cast %297 : vector<4xf32> to vector<1x1x4xf32>
    %299 = vector.broadcast %298 : vector<1x1x4xf32> to vector<8x16x4xf32>
    %300 = arith.mulf %295, %299 : vector<8x16x4xf32>
    %301 = arith.addf %294, %300 : vector<8x16x4xf32>
    %c8_105 = arith.constant 8 : index
    %c9_106 = arith.constant 9 : index
    %c0_107 = arith.constant 0 : index
    %302 = vector.load %arg5[%c8_105, %c9_106, %c0_107] : memref<20x26x4xf32, #tpu.memory_space<vmem>>, vector<12x16x4xf32>
    %303 = vector.extract_strided_slice %302 {offsets = [0, 0, 0], sizes = [8, 16, 4], strides = [1, 1, 1]} : vector<12x16x4xf32> to vector<8x16x4xf32>
    %c3_108 = arith.constant 3 : index
    %c0_109 = arith.constant 0 : index
    %304 = vector.load %arg2[%c3_108, %c0_109] : memref<25x4xf32, #tpu.memory_space<vmem>>, vector<1x4xf32>
    %305 = vector.shape_cast %304 : vector<1x4xf32> to vector<4xf32>
    %306 = vector.shape_cast %305 : vector<4xf32> to vector<1x1x4xf32>
    %307 = vector.broadcast %306 : vector<1x1x4xf32> to vector<8x16x4xf32>
    %308 = arith.mulf %303, %307 : vector<8x16x4xf32>
    %309 = arith.addf %301, %308 : vector<8x16x4xf32>
    %310 = vector.extract_strided_slice %302 {offsets = [1, 0, 0], sizes = [8, 16, 4], strides = [1, 1, 1]} : vector<12x16x4xf32> to vector<8x16x4xf32>
    %c8_110 = arith.constant 8 : index
    %c0_111 = arith.constant 0 : index
    %311 = vector.load %arg2[%c8_110, %c0_111] : memref<25x4xf32, #tpu.memory_space<vmem>>, vector<1x4xf32>
    %312 = vector.shape_cast %311 : vector<1x4xf32> to vector<4xf32>
    %313 = vector.shape_cast %312 : vector<4xf32> to vector<1x1x4xf32>
    %314 = vector.broadcast %313 : vector<1x1x4xf32> to vector<8x16x4xf32>
    %315 = arith.mulf %310, %314 : vector<8x16x4xf32>
    %316 = arith.addf %309, %315 : vector<8x16x4xf32>
    %317 = vector.extract_strided_slice %302 {offsets = [2, 0, 0], sizes = [8, 16, 4], strides = [1, 1, 1]} : vector<12x16x4xf32> to vector<8x16x4xf32>
    %c13_112 = arith.constant 13 : index
    %c0_113 = arith.constant 0 : index
    %318 = vector.load %arg2[%c13_112, %c0_113] : memref<25x4xf32, #tpu.memory_space<vmem>>, vector<1x4xf32>
    %319 = vector.shape_cast %318 : vector<1x4xf32> to vector<4xf32>
    %320 = vector.shape_cast %319 : vector<4xf32> to vector<1x1x4xf32>
    %321 = vector.broadcast %320 : vector<1x1x4xf32> to vector<8x16x4xf32>
    %322 = arith.mulf %317, %321 : vector<8x16x4xf32>
    %323 = arith.addf %316, %322 : vector<8x16x4xf32>
    %324 = vector.extract_strided_slice %302 {offsets = [3, 0, 0], sizes = [8, 16, 4], strides = [1, 1, 1]} : vector<12x16x4xf32> to vector<8x16x4xf32>
    %c18_114 = arith.constant 18 : index
    %c0_115 = arith.constant 0 : index
    %325 = vector.load %arg2[%c18_114, %c0_115] : memref<25x4xf32, #tpu.memory_space<vmem>>, vector<1x4xf32>
    %326 = vector.shape_cast %325 : vector<1x4xf32> to vector<4xf32>
    %327 = vector.shape_cast %326 : vector<4xf32> to vector<1x1x4xf32>
    %328 = vector.broadcast %327 : vector<1x1x4xf32> to vector<8x16x4xf32>
    %329 = arith.mulf %324, %328 : vector<8x16x4xf32>
    %330 = arith.addf %323, %329 : vector<8x16x4xf32>
    %331 = vector.extract_strided_slice %302 {offsets = [4, 0, 0], sizes = [8, 16, 4], strides = [1, 1, 1]} : vector<12x16x4xf32> to vector<8x16x4xf32>
    %c23_116 = arith.constant 23 : index
    %c0_117 = arith.constant 0 : index
    %332 = vector.load %arg2[%c23_116, %c0_117] : memref<25x4xf32, #tpu.memory_space<vmem>>, vector<1x4xf32>
    %333 = vector.shape_cast %332 : vector<1x4xf32> to vector<4xf32>
    %334 = vector.shape_cast %333 : vector<4xf32> to vector<1x1x4xf32>
    %335 = vector.broadcast %334 : vector<1x1x4xf32> to vector<8x16x4xf32>
    %336 = arith.mulf %331, %335 : vector<8x16x4xf32>
    %337 = arith.addf %330, %336 : vector<8x16x4xf32>
    %c8_118 = arith.constant 8 : index
    %c10_119 = arith.constant 10 : index
    %c0_120 = arith.constant 0 : index
    %338 = vector.load %arg5[%c8_118, %c10_119, %c0_120] : memref<20x26x4xf32, #tpu.memory_space<vmem>>, vector<12x16x4xf32>
    %339 = vector.extract_strided_slice %338 {offsets = [0, 0, 0], sizes = [8, 16, 4], strides = [1, 1, 1]} : vector<12x16x4xf32> to vector<8x16x4xf32>
    %c4_121 = arith.constant 4 : index
    %c0_122 = arith.constant 0 : index
    %340 = vector.load %arg2[%c4_121, %c0_122] : memref<25x4xf32, #tpu.memory_space<vmem>>, vector<1x4xf32>
    %341 = vector.shape_cast %340 : vector<1x4xf32> to vector<4xf32>
    %342 = vector.shape_cast %341 : vector<4xf32> to vector<1x1x4xf32>
    %343 = vector.broadcast %342 : vector<1x1x4xf32> to vector<8x16x4xf32>
    %344 = arith.mulf %339, %343 : vector<8x16x4xf32>
    %345 = arith.addf %337, %344 : vector<8x16x4xf32>
    %346 = vector.extract_strided_slice %338 {offsets = [1, 0, 0], sizes = [8, 16, 4], strides = [1, 1, 1]} : vector<12x16x4xf32> to vector<8x16x4xf32>
    %c9_123 = arith.constant 9 : index
    %c0_124 = arith.constant 0 : index
    %347 = vector.load %arg2[%c9_123, %c0_124] : memref<25x4xf32, #tpu.memory_space<vmem>>, vector<1x4xf32>
    %348 = vector.shape_cast %347 : vector<1x4xf32> to vector<4xf32>
    %349 = vector.shape_cast %348 : vector<4xf32> to vector<1x1x4xf32>
    %350 = vector.broadcast %349 : vector<1x1x4xf32> to vector<8x16x4xf32>
    %351 = arith.mulf %346, %350 : vector<8x16x4xf32>
    %352 = arith.addf %345, %351 : vector<8x16x4xf32>
    %353 = vector.extract_strided_slice %338 {offsets = [2, 0, 0], sizes = [8, 16, 4], strides = [1, 1, 1]} : vector<12x16x4xf32> to vector<8x16x4xf32>
    %c14_125 = arith.constant 14 : index
    %c0_126 = arith.constant 0 : index
    %354 = vector.load %arg2[%c14_125, %c0_126] : memref<25x4xf32, #tpu.memory_space<vmem>>, vector<1x4xf32>
    %355 = vector.shape_cast %354 : vector<1x4xf32> to vector<4xf32>
    %356 = vector.shape_cast %355 : vector<4xf32> to vector<1x1x4xf32>
    %357 = vector.broadcast %356 : vector<1x1x4xf32> to vector<8x16x4xf32>
    %358 = arith.mulf %353, %357 : vector<8x16x4xf32>
    %359 = arith.addf %352, %358 : vector<8x16x4xf32>
    %360 = vector.extract_strided_slice %338 {offsets = [3, 0, 0], sizes = [8, 16, 4], strides = [1, 1, 1]} : vector<12x16x4xf32> to vector<8x16x4xf32>
    %c19_127 = arith.constant 19 : index
    %c0_128 = arith.constant 0 : index
    %361 = vector.load %arg2[%c19_127, %c0_128] : memref<25x4xf32, #tpu.memory_space<vmem>>, vector<1x4xf32>
    %362 = vector.shape_cast %361 : vector<1x4xf32> to vector<4xf32>
    %363 = vector.shape_cast %362 : vector<4xf32> to vector<1x1x4xf32>
    %364 = vector.broadcast %363 : vector<1x1x4xf32> to vector<8x16x4xf32>
    %365 = arith.mulf %360, %364 : vector<8x16x4xf32>
    %366 = arith.addf %359, %365 : vector<8x16x4xf32>
    %367 = vector.extract_strided_slice %338 {offsets = [4, 0, 0], sizes = [8, 16, 4], strides = [1, 1, 1]} : vector<12x16x4xf32> to vector<8x16x4xf32>
    %c24_129 = arith.constant 24 : index
    %c0_130 = arith.constant 0 : index
    %368 = vector.load %arg2[%c24_129, %c0_130] : memref<25x4xf32, #tpu.memory_space<vmem>>, vector<1x4xf32>
    %369 = vector.shape_cast %368 : vector<1x4xf32> to vector<4xf32>
    %370 = vector.shape_cast %369 : vector<4xf32> to vector<1x1x4xf32>
    %371 = vector.broadcast %370 : vector<1x1x4xf32> to vector<8x16x4xf32>
    %372 = arith.mulf %367, %371 : vector<8x16x4xf32>
    %373 = arith.addf %366, %372 : vector<8x16x4xf32>
    %c0_131 = arith.constant 0 : index
    %c8_132 = arith.constant 8 : index
    %c0_133 = arith.constant 0 : index
    %c0_134 = arith.constant 0 : index
    %374 = vector.load %arg4[%c0_131, %c8_132, %c0_133, %c0_134] : memref<1x16x16x4xf32, #tpu.memory_space<vmem>>, vector<1x8x16x4xf32>
    %375 = vector.shape_cast %374 : vector<1x8x16x4xf32> to vector<8x16x4xf32>
    %376 = vector.shape_cast %373 : vector<8x16x4xf32> to vector<1x8x16x4xf32>
    tpu.vector_store %arg4[%c0_131, %c8_132, %c0_133, %c0_134], %376 {strides = array<i32>} : memref<1x16x16x4xf32, #tpu.memory_space<vmem>>, vector<1x8x16x4xf32>,
    return
  }
  func.func @transform_0(%arg0: i32, %arg1: i32) -> (i32, i32) {
    %c0_i32 = arith.constant 0 : i32
    %c0_i32_0 = arith.constant 0 : i32
    return %c0_i32, %arg1 : i32, i32
  }
  func.func @transform_1(%arg0: i32, %arg1: i32) -> (i32, i32, i32, i32) {
    %c0_i32 = arith.constant 0 : i32
    %c0_i32_0 = arith.constant 0 : i32
    %c0_i32_1 = arith.constant 0 : i32
    return %arg0, %c0_i32, %c0_i32_0, %arg1 : i32, i32, i32, i32
  }
  func.func @transform_2(%arg0: i32, %arg1: i32) -> (i32, i32, i32, i32) {
    %c0_i32 = arith.constant 0 : i32
    %c0_i32_0 = arith.constant 0 : i32
    %c0_i32_1 = arith.constant 0 : i32
    return %arg0, %c0_i32, %c0_i32_0, %arg1 : i32, i32, i32, i32
  }
}

</mosaic_0001>

<llo_original>
// kernel: tpu_custom_call.1
$region0: #{tpu_custom_call.1}
  #allocation0 [shape = 'u32[]', space=smem, size = 0x4, offset = 0x4, fixed_abs, tag = 'smem constant byte address 0x4 - core index']
  #allocation1 [shape = 'u32[144,128]{1,0:T(1,128)}', space=vmem, size = 0x12000, scoped, tag = 'internal scratch']
  #allocation2 [shape = 'f32[20,26,4]{2,1,0:T(8,128)}', space=vmem, size = 0x50000, scoped, tag = 'scratch operand']
  %s0 = inlined_call_operand.vmem [shape: f32[25,4], index: 0, kind: input, shape index: {}]
  %s1 = inlined_call_operand.vmem [shape: f32[2,16,16,4], index: 1, kind: input, shape index: {}]
  %s2 = inlined_call_operand.vmem [shape: f32[2,16,16,4], index: 2, kind: output, shape index: {}]
  %s3 = sld [smem:[#allocation0]]
  $region41: #{tpu_custom_call.1} parent=0
    _
  %s5 = ssub.s32 1, %s3
  %s6 = scalar_select 0, %s5, %s3
  loop: start=0, step=1, limit=4
  $region2: #{tpu_custom_call.1} parent=0 // loop_pre_header
    _
  $region3: #{tpu_custom_call.1} parent=0 // loop_header
    %s8 = sphi 0, %s12
    %p9 = scmp.ge.s32.totalorder %s8, 4
    %s15 = sphi 0, %s27
    %s16 = sphi 0, %s23
    %s17 = sphi 0, %s15
    %s18 = sphi 0, %s16
    %s19 = sphi 0, %s17
    %s20 = sphi 0, %s18
    %s30 = sphi 0, %s32
    %s33 = sphi 0, %s30
    %s34 = sphi 0, %s33
    %s50 = sphi 0, %s34
    %s58 = sphi 0, %s60
    %s61 = sphi 0, %s58
    %s62 = sphi 0, %s61
    %s78 = sphi 0, %s62
    %s86 = sphi 0, %s88
    %s89 = sphi 0, %s86
    %s90 = sphi 0, %s89
    %s106 = sphi 0, %s90
  $region4: #{tpu_custom_call.1} parent=0 // loop_header_branch
    %11 = sbr.rel (%p9) target = $region8
  $region5: #{tpu_custom_call.1} parent=0 // loop_body
    %s13 = ssub.s32 %s8, 1
    %s14 = ssub.s32 %s8, 2
    %s21 = sadd.s32 1, %s16
    %p22 = scmp.ge.s32.totalorder %s21, 1
    %s23 = scalar_select %p22, 0, %s21
    %s24 = sadd.s32 1, %s15
    %s25 = scalar_select %p22, %s24, %s15
    %p26 = scmp.ge.s32.totalorder %s25, 2
    %s27 = scalar_select %p26, 0, %s25
    %s28 = ssub.s32 %s16, %s23
    %p29 = scmp.eq.s32.totalorder %s28, 0
    %s31 = sadd.s32 %s30, 1
    %s32 = scalar_select %p29, %s30, %s31
    %p35 = pneg %p29
    %p36 = scmp.eq.s32.totalorder %s8, 1
    %p37 = por %p35, %p36
    %p38 = scmp.ne.s32.totalorder %s30, %s33
    %p39 = scmp.eq.s32.totalorder %s8, 0
    %p40 = por %p38, %p39
    %p41 = scmp.ne.s32.totalorder %s30, %s33
    %p42 = scmp.eq.s32.totalorder %s13, 1
    %p43 = por %p41, %p42
    %p44 = scmp.ne.s32.totalorder %s33, %s34
    %p45 = scmp.eq.s32.totalorder %s13, 0
    %p46 = por %p44, %p45
    %p47 = scmp.ne.s32.totalorder %s33, %s34
    %p48 = scmp.eq.s32.totalorder %s14, 1
    %p49 = por %p47, %p48
    %p51 = scmp.ne.s32.totalorder %s34, %s50
    %p52 = scmp.eq.s32.totalorder %s14, 0
    %p53 = por %p51, %p52
    %s54 = ssub.s32 %s15, %s27
    %s55 = ssub.s32 %s16, %s23
    %s56 = sor.u32 %s54, %s55
    %p57 = scmp.eq.s32.totalorder %s56, 0
    %s59 = sadd.s32 %s58, 1
    %s60 = scalar_select %p57, %s58, %s59
    %p63 = pneg %p57
    %p64 = scmp.eq.s32.totalorder %s8, 1
    %p65 = por %p63, %p64
    %p66 = scmp.ne.s32.totalorder %s58, %s61
    %p67 = scmp.eq.s32.totalorder %s8, 0
    %p68 = por %p66, %p67
    %p69 = scmp.ne.s32.totalorder %s58, %s61
    %p70 = scmp.eq.s32.totalorder %s13, 1
    %p71 = por %p69, %p70
    %p72 = scmp.ne.s32.totalorder %s61, %s62
    %p73 = scmp.eq.s32.totalorder %s13, 0
    %p74 = por %p72, %p73
    %p75 = scmp.ne.s32.totalorder %s61, %s62
    %p76 = scmp.eq.s32.totalorder %s14, 1
    %p77 = por %p75, %p76
    %p79 = scmp.ne.s32.totalorder %s62, %s78
    %p80 = scmp.eq.s32.totalorder %s14, 0
    %p81 = por %p79, %p80
    %s82 = ssub.s32 %s15, %s27
    %s83 = ssub.s32 %s16, %s23
    %s84 = sor.u32 %s82, %s83
    %p85 = scmp.eq.s32.totalorder %s84, 0
    %s87 = sadd.s32 %s86, 1
    %s88 = scalar_select %p85, %s86, %s87
    %p91 = pneg %p85
    %p92 = scmp.eq.s32.totalorder %s8, 1
    %p93 = por %p91, %p92
    %p94 = scmp.ne.s32.totalorder %s86, %s89
    %p95 = scmp.eq.s32.totalorder %s8, 0
    %p96 = por %p94, %p95
    %p97 = scmp.ne.s32.totalorder %s86, %s89
    %p98 = scmp.eq.s32.totalorder %s13, 1
    %p99 = por %p97, %p98
    %p100 = scmp.ne.s32.totalorder %s89, %s90
    %p101 = scmp.eq.s32.totalorder %s13, 0
    %p102 = por %p100, %p101
    %p103 = scmp.ne.s32.totalorder %s89, %s90
    %p104 = scmp.eq.s32.totalorder %s14, 1
    %p105 = por %p103, %p104
    %p107 = scmp.ne.s32.totalorder %s90, %s106
    %p108 = scmp.eq.s32.totalorder %s14, 0
    %p109 = por %p107, %p108
    %p110 = scmp.le.s32.totalorder 1, %s8
    %p111 = scmp.lt.s32.totalorder %s8, 3
    %p112 = pnand %p110, %p111
    %p113 = pneg %p112
    // Predicated region
    $region9: #{tpu_custom_call.1} parent=5 // pred_check
      _
    $region10: #{tpu_custom_call.1} parent=5 // pred_check_branch
      %115 = sbr.rel (%p112) target = $region12
    $region11: #{tpu_custom_call.1} parent=5 // pred_region
      %s116 = ssub.s32 %s8, 1
      // Predicated region
      $region13: #{tpu_custom_call.1} parent=11 // pred_check
        %p117 = pneg %p46
      $region14: #{tpu_custom_call.1} parent=11 // pred_check_branch
        %119 = sbr.rel (%p117) target = $region16
      $region15: #{tpu_custom_call.1} parent=11 // pred_region
        %p120 = scmp.lt.s32.totalorder %s18, 0
        %s121 = scalar_select %p120, %s18, 0
        %s122 = smul.addr %s121, 8
        %s123 = scalar_lea.vmem %s0, %s122
      $region16: #{tpu_custom_call.1} parent=11 // pred_fallthru
        _
    $region12: #{tpu_custom_call.1} parent=5 // pred_fallthru
      _
    %p124 = scmp.lt.s32.totalorder %s8, 2
    // Predicated region
    $region17: #{tpu_custom_call.1} parent=5 // pred_check
      %p125 = pneg %p124
    $region18: #{tpu_custom_call.1} parent=5 // pred_check_branch
      %127 = sbr.rel (%p125) target = $region20
    $region19: #{tpu_custom_call.1} parent=5 // pred_region
      // Predicated region
      $region21: #{tpu_custom_call.1} parent=19 // pred_check
        %p128 = pneg %p68
      $region22: #{tpu_custom_call.1} parent=19 // pred_check_branch
        %130 = sbr.rel (%p128) target = $region24
      $region23: #{tpu_custom_call.1} parent=19 // pred_region
        %p131 = scmp.lt.s32.totalorder %s15, 1
        %s132 = scalar_select %p131, %s15, 1
        %p133 = scmp.lt.s32.totalorder %s16, 0
        %s134 = scalar_select %p133, %s16, 0
        %s135 = smul.addr %s132, 32
        %s136 = sadd.s32 %s134, %s135
        %s137 = smul.addr %s136, 8
        %s138 = scalar_lea.vmem %s1, %s137
      $region24: #{tpu_custom_call.1} parent=19 // pred_fallthru
        _
    $region20: #{tpu_custom_call.1} parent=5 // pred_fallthru
      _
    %p139 = scmp.le.s32.totalorder 1, %s8
    %p140 = scmp.lt.s32.totalorder %s8, 3
    %p141 = pnand %p139, %p140
    %p142 = pneg %p141
    // Predicated region
    $region25: #{tpu_custom_call.1} parent=5 // pred_check
      _
    $region26: #{tpu_custom_call.1} parent=5 // pred_check_branch
      %144 = sbr.rel (%p141) target = $region28
    $region27: #{tpu_custom_call.1} parent=5 // pred_region
      %s145 = ssub.s32 %s8, 1
      %p146 = scmp.lt.s32.totalorder %s18, 0
      %s147 = scalar_select %p146, %s18, 0
      %s148 = smul.addr %s147, 8
      %s149 = scalar_lea.vmem %s0, %s148
      %p150 = pneg %p46
      %p151 = pneg %p43
      %p152 = scmp.lt.s32.totalorder %s17, 1
      %s153 = scalar_select %p152, %s17, 1
      %p154 = scmp.lt.s32.totalorder %s18, 0
      %s155 = scalar_select %p154, %s18, 0
      %s156 = smul.addr %s153, 32
      %s157 = sadd.s32 %s155, %s156
      %s158 = smul.addr %s157, 8
      %s159 = scalar_lea.vmem %s1, %s158
      %p160 = pneg %p74
      %p161 = pneg %p71
      %p162 = pneg %p102
      %p163 = pneg %p99
      %p164 = scmp.lt.s32.totalorder %s17, 1
      %s165 = scalar_select %p164, %s17, 1
      %p166 = scmp.lt.s32.totalorder %s18, 0
      %s167 = scalar_select %p166, %s18, 0
      %s168 = smul.addr %s165, 32
      %s169 = sadd.s32 %s167, %s168
      %s170 = smul.addr %s169, 8
      %s171 = scalar_lea.vmem %s2, %s170
      %p172 = scmp.lt.s32.totalorder %s18, 0
      %s173 = scalar_select %p172, %s18, 0
      %s174 = smul.addr %s173, 8
      %s175 = scalar_lea.vmem %s0, %s174
      %p176 = scmp.lt.s32.totalorder %s17, 1
      %s177 = scalar_select %p176, %s17, 1
      %p178 = scmp.lt.s32.totalorder %s18, 0
      %s179 = scalar_select %p178, %s18, 0
      %s180 = smul.addr %s177, 32
      %s181 = sadd.s32 %s179, %s180
      %s182 = smul.addr %s181, 8
      %s183 = scalar_lea.vmem %s1, %s182
      %p184 = scmp.lt.s32.totalorder %s17, 1
      %s185 = scalar_select %p184, %s17, 1
      %p186 = scmp.lt.s32.totalorder %s18, 0
      %s187 = scalar_select %p186, %s18, 0
      %s188 = smul.addr %s185, 32
      %s189 = sadd.s32 %s187, %s188
      %s190 = smul.addr %s189, 8
      %s191 = scalar_lea.vmem %s2, %s190
      %vm192 = vcmask 31744
      %193 = vst.msk [vmem:[#allocation2] sm:$0xff] %vm192, 0.0
      %194 = vst.msk [vmem:[#allocation2 + $0x8] sm:$0xff] %vm192, 0.0
      %195 = vst.msk [vmem:[#allocation2 + $0x10] sm:$0xff] %vm192, 0.0
      %vm196 = vcmask 25600
      %197 = vst.msk [vmem:[#allocation2 + $0x18] sm:$0x3] %vm196, 0.0
      %198 = vst.msk [vmem:[#allocation2 + $0x20] sm:$0xff] %vm192, 0.0
      %199 = vst.msk [vmem:[#allocation2 + $0x28] sm:$0xff] %vm192, 0.0
      %200 = vst.msk [vmem:[#allocation2 + $0x30] sm:$0xff] %vm192, 0.0
      %201 = vst.msk [vmem:[#allocation2 + $0x38] sm:$0x3] %vm196, 0.0
      %s202 = scalar_lea.vmem [#allocation2], 576
      %203 = vst.msk [vmem:[%s202] sm:$0xff] %vm192, 0.0
      %204 = vst.msk [vmem:[%s202 + $0x8] sm:$0xff] %vm192, 0.0
      %205 = vst.msk [vmem:[%s202 + $0x10] sm:$0xff] %vm192, 0.0
      %206 = vst.msk [vmem:[%s202 + $0x18] sm:$0x3] %vm196, 0.0
      %207 = vst.msk [vmem:[%s202 + $0x20] sm:$0xff] %vm192, 0.0
      %208 = vst.msk [vmem:[%s202 + $0x28] sm:$0xff] %vm192, 0.0
      %209 = vst.msk [vmem:[%s202 + $0x30] sm:$0xff] %vm192, 0.0
      %210 = vst.msk [vmem:[%s202 + $0x38] sm:$0x3] %vm196, 0.0
      %211 = vst.msk [vmem:[#allocation2 + $0x6] sm:$0x3] %vm196, 0.0
      %212 = vst.msk [vmem:[#allocation2 + $0x26] sm:$0x3] %vm196, 0.0
      %213 = vst.msk [vmem:[#allocation2 + $0x46] sm:$0x3] %vm196, 0.0
      %214 = vst.msk [vmem:[#allocation2 + $0x66] sm:$0x3] %vm196, 0.0
      %215 = vst.msk [vmem:[#allocation2 + $0x86] sm:$0x3] %vm196, 0.0
      %216 = vst.msk [vmem:[#allocation2 + $0xa6] sm:$0x3] %vm196, 0.0
      %217 = vst.msk [vmem:[#allocation2 + $0xc6] sm:$0x3] %vm196, 0.0
      %218 = vst.msk [vmem:[#allocation2 + $0xe6] sm:$0x3] %vm196, 0.0
      %219 = vst.msk [vmem:[#allocation2 + $0x106] sm:$0x3] %vm196, 0.0
      %220 = vst.msk [vmem:[#allocation2 + $0x126] sm:$0x3] %vm196, 0.0
      %221 = vst.msk [vmem:[#allocation2 + $0x146] sm:$0x3] %vm196, 0.0
      %222 = vst.msk [vmem:[#allocation2 + $0x166] sm:$0x3] %vm196, 0.0
      %223 = vst.msk [vmem:[#allocation2 + $0x186] sm:$0x3] %vm196, 0.0
      %224 = vst.msk [vmem:[#allocation2 + $0x1a6] sm:$0x3] %vm196, 0.0
      %225 = vst.msk [vmem:[#allocation2 + $0x1c6] sm:$0x3] %vm196, 0.0
      %226 = vst.msk [vmem:[#allocation2 + $0x1e6] sm:$0x3] %vm196, 0.0
      %227 = vst.msk [vmem:[#allocation2 + $0x206] sm:$0x3] %vm196, 0.0
      %228 = vst.msk [vmem:[#allocation2 + $0x226] sm:$0x3] %vm196, 0.0
      %229 = vst.msk [vmem:[#allocation2 + $0x246] sm:$0x3] %vm196, 0.0
      %230 = vst.msk [vmem:[#allocation2 + $0x266] sm:$0x3] %vm196, 0.0
      %231 = vst.msk [vmem:[#allocation2 + $0x18] sm:$0x3] %vm196, 0.0
      %232 = vst.msk [vmem:[#allocation2 + $0x38] sm:$0x3] %vm196, 0.0
      %233 = vst.msk [vmem:[#allocation2 + $0x58] sm:$0x3] %vm196, 0.0
      %234 = vst.msk [vmem:[#allocation2 + $0x78] sm:$0x3] %vm196, 0.0
      %235 = vst.msk [vmem:[#allocation2 + $0x98] sm:$0x3] %vm196, 0.0
      %236 = vst.msk [vmem:[#allocation2 + $0xb8] sm:$0x3] %vm196, 0.0
      %237 = vst.msk [vmem:[#allocation2 + $0xd8] sm:$0x3] %vm196, 0.0
      %238 = vst.msk [vmem:[#allocation2 + $0xf8] sm:$0x3] %vm196, 0.0
      %239 = vst.msk [vmem:[#allocation2 + $0x118] sm:$0x3] %vm196, 0.0
      %240 = vst.msk [vmem:[#allocation2 + $0x138] sm:$0x3] %vm196, 0.0
      %241 = vst.msk [vmem:[#allocation2 + $0x158] sm:$0x3] %vm196, 0.0
      %242 = vst.msk [vmem:[#allocation2 + $0x178] sm:$0x3] %vm196, 0.0
      %243 = vst.msk [vmem:[#allocation2 + $0x198] sm:$0x3] %vm196, 0.0
      %244 = vst.msk [vmem:[#allocation2 + $0x1b8] sm:$0x3] %vm196, 0.0
      %245 = vst.msk [vmem:[#allocation2 + $0x1d8] sm:$0x3] %vm196, 0.0
      %246 = vst.msk [vmem:[#allocation2 + $0x1f8] sm:$0x3] %vm196, 0.0
      %247 = vst.msk [vmem:[#allocation2 + $0x218] sm:$0x3] %vm196, 0.0
      %248 = vst.msk [vmem:[#allocation2 + $0x238] sm:$0x3] %vm196, 0.0
      %249 = vst.msk [vmem:[#allocation2 + $0x258] sm:$0x3] %vm196, 0.0
      %250 = vst.msk [vmem:[#allocation2 + $0x278] sm:$0x3] %vm196, 0.0
      %v251 = vld [vmem:[%s183] sm:$0xff]
      %v252 = vld [vmem:[%s183 + $0x8] sm:$0xff]
      %v253 = vld [vmem:[%s183 + $0x10] sm:$0xff]
      %v254 = vld [vmem:[%s183 + $0x18] sm:$0xff]
      %v255 = vld [vmem:[%s183 + $0x20] sm:$0xff]
      %v256 = vld [vmem:[%s183 + $0x28] sm:$0xff]
      %v257 = vld [vmem:[%s183 + $0x30] sm:$0xff]
      %v258 = vld [vmem:[%s183 + $0x38] sm:$0xff]
      %v259 = vld [vmem:[%s183 + $0x40] sm:$0xff]
      %v260 = vld [vmem:[%s183 + $0x48] sm:$0xff]
      %v261 = vld [vmem:[%s183 + $0x50] sm:$0xff]
      %v262 = vld [vmem:[%s183 + $0x58] sm:$0xff]
      %v263 = vld [vmem:[%s183 + $0x60] sm:$0xff]
      %v264 = vld [vmem:[%s183 + $0x68] sm:$0xff]
      %v265 = vld [vmem:[%s183 + $0x70] sm:$0xff]
      %v266 = vld [vmem:[%s183 + $0x78] sm:$0xff]
      %v267 = vld [vmem:[%s183 + $0x80] sm:$0xff]
      %v268 = vld [vmem:[%s183 + $0x88] sm:$0xff]
      %v269 = vld [vmem:[%s183 + $0x90] sm:$0xff]
      %v270 = vld [vmem:[%s183 + $0x98] sm:$0xff]
      %v271 = vld [vmem:[%s183 + $0xa0] sm:$0xff]
      %v272 = vld [vmem:[%s183 + $0xa8] sm:$0xff]
      %v273 = vld [vmem:[%s183 + $0xb0] sm:$0xff]
      %v274 = vld [vmem:[%s183 + $0xb8] sm:$0xff]
      %v275 = vld [vmem:[%s183 + $0xc0] sm:$0xff]
      %v276 = vld [vmem:[%s183 + $0xc8] sm:$0xff]
      %v277 = vld [vmem:[%s183 + $0xd0] sm:$0xff]
      %v278 = vld [vmem:[%s183 + $0xd8] sm:$0xff]
      %v279 = vld [vmem:[%s183 + $0xe0] sm:$0xff]
      %v280 = vld [vmem:[%s183 + $0xe8] sm:$0xff]
      %v281 = vld [vmem:[%s183 + $0xf0] sm:$0xff]
      %v282 = vld [vmem:[%s183 + $0xf8] sm:$0xff]
      %s283 = scalar_lea.vmem [#allocation2], 64
      %284 = vst.msk [vmem:[%s283 + $0x8] sm:$0xff] %vm192, %v251
      %285 = vst.msk [vmem:[%s283 + $0x10] sm:$0xff] %vm192, %v252
      %286 = vst.msk [vmem:[%s283 + $0x28] sm:$0xff] %vm192, %v253
      %287 = vst.msk [vmem:[%s283 + $0x30] sm:$0xff] %vm192, %v254
      %288 = vst.msk [vmem:[%s283 + $0x48] sm:$0xff] %vm192, %v255
      %289 = vst.msk [vmem:[%s283 + $0x50] sm:$0xff] %vm192, %v256
      %290 = vst.msk [vmem:[%s283 + $0x68] sm:$0xff] %vm192, %v257
      %291 = vst.msk [vmem:[%s283 + $0x70] sm:$0xff] %vm192, %v258
      %292 = vst.msk [vmem:[%s283 + $0x88] sm:$0xff] %vm192, %v259
      %293 = vst.msk [vmem:[%s283 + $0x90] sm:$0xff] %vm192, %v260
      %294 = vst.msk [vmem:[%s283 + $0xa8] sm:$0xff] %vm192, %v261
      %295 = vst.msk [vmem:[%s283 + $0xb0] sm:$0xff] %vm192, %v262
      %296 = vst.msk [vmem:[%s283 + $0xc8] sm:$0xff] %vm192, %v263
      %297 = vst.msk [vmem:[%s283 + $0xd0] sm:$0xff] %vm192, %v264
      %298 = vst.msk [vmem:[%s283 + $0xe8] sm:$0xff] %vm192, %v265
      %299 = vst.msk [vmem:[%s283 + $0xf0] sm:$0xff] %vm192, %v266
      %300 = vst.msk [vmem:[%s283 + $0x108] sm:$0xff] %vm192, %v267
      %301 = vst.msk [vmem:[%s283 + $0x110] sm:$0xff] %vm192, %v268
      %302 = vst.msk [vmem:[%s283 + $0x128] sm:$0xff] %vm192, %v269
      %303 = vst.msk [vmem:[%s283 + $0x130] sm:$0xff] %vm192, %v270
      %304 = vst.msk [vmem:[%s283 + $0x148] sm:$0xff] %vm192, %v271
      %305 = vst.msk [vmem:[%s283 + $0x150] sm:$0xff] %vm192, %v272
      %306 = vst.msk [vmem:[%s283 + $0x168] sm:$0xff] %vm192, %v273
      %307 = vst.msk [vmem:[%s283 + $0x170] sm:$0xff] %vm192, %v274
      %308 = vst.msk [vmem:[%s283 + $0x188] sm:$0xff] %vm192, %v275
      %309 = vst.msk [vmem:[%s283 + $0x190] sm:$0xff] %vm192, %v276
      %310 = vst.msk [vmem:[%s283 + $0x1a8] sm:$0xff] %vm192, %v277
      %311 = vst.msk [vmem:[%s283 + $0x1b0] sm:$0xff] %vm192, %v278
      %312 = vst.msk [vmem:[%s283 + $0x1c8] sm:$0xff] %vm192, %v279
      %313 = vst.msk [vmem:[%s283 + $0x1d0] sm:$0xff] %vm192, %v280
      %314 = vst.msk [vmem:[%s283 + $0x1e8] sm:$0xff] %vm192, %v281
      %315 = vst.msk [vmem:[%s283 + $0x1f0] sm:$0xff] %vm192, %v282
      %v316 = vld [vmem:[#allocation2 + $0x6] sm:$0xff]
      %v317 = vld [vmem:[#allocation2 + $0xe] sm:$0xff]
      %v318 = vld [vmem:[#allocation2 + $0x26] sm:$0xff]
      %v319 = vld [vmem:[#allocation2 + $0x2e] sm:$0xff]
      %v320 = vld [vmem:[#allocation2 + $0x46] sm:$0xff]
      %v321 = vld [vmem:[#allocation2 + $0x4e] sm:$0xff]
      %v322 = vld [vmem:[#allocation2 + $0x66] sm:$0xff]
      %v323 = vld [vmem:[#allocation2 + $0x6e] sm:$0xff]
      %v324 = vld [vmem:[#allocation2 + $0x86] sm:$0xff]
      %v325 = vld [vmem:[#allocation2 + $0x8e] sm:$0xff]
      %v326 = vld [vmem:[#allocation2 + $0xa6] sm:$0xff]
      %v327 = vld [vmem:[#allocation2 + $0xae] sm:$0xff]
      %v328 = vld [vmem:[#allocation2 + $0xc6] sm:$0xff]
      %v329 = vld [vmem:[#allocation2 + $0xce] sm:$0xff]
      %v330 = vld [vmem:[#allocation2 + $0xe6] sm:$0xff]
      %v331 = vld [vmem:[#allocation2 + $0xee] sm:$0xff]
      %v332 = vld [vmem:[#allocation2 + $0x106] sm:$0xff]
      %v333 = vld [vmem:[#allocation2 + $0x10e] sm:$0xff]
      %v334 = vld [vmem:[#allocation2 + $0x126] sm:$0xff]
      %v335 = vld [vmem:[#allocation2 + $0x12e] sm:$0xff]
      %v336 = vld [vmem:[#allocation2 + $0x146] sm:$0xff]
      %v337 = vld [vmem:[#allocation2 + $0x14e] sm:$0xff]
      %v338 = vld [vmem:[#allocation2 + $0x166] sm:$0xff]
      %v339 = vld [vmem:[#allocation2 + $0x16e] sm:$0xff]
      %v340 = vld [vmem:[%s175] sm:$0x1]
      %v341 = vlaneseq
      %v342 = vshrl.u32 %v341, 7
      %v343 = vsub.s32 0, %v342
      %v344 = vrot.slane %v340, %v343
      %v345 = vmul.f32 %v316, %v344
      %v346 = vmul.f32 %v317, %v344
      %v347 = vmul.f32 %v318, %v344
      %v348 = vmul.f32 %v319, %v344
      %v349 = vmul.f32 %v320, %v344
      %v350 = vmul.f32 %v321, %v344
      %v351 = vmul.f32 %v322, %v344
      %v352 = vmul.f32 %v323, %v344
      %v353 = vmul.f32 %v324, %v344
      %v354 = vmul.f32 %v325, %v344
      %v355 = vmul.f32 %v326, %v344
      %v356 = vmul.f32 %v327, %v344
      %v357 = vmul.f32 %v328, %v344
      %v358 = vmul.f32 %v329, %v344
      %v359 = vmul.f32 %v330, %v344
      %v360 = vmul.f32 %v331, %v344
      %v361 = vadd.f32 %v345, 0.0
      %v362 = vadd.f32 %v346, 0.0
      %v363 = vadd.f32 %v347, 0.0
      %v364 = vadd.f32 %v348, 0.0
      %v365 = vadd.f32 %v349, 0.0
      %v366 = vadd.f32 %v350, 0.0
      %v367 = vadd.f32 %v351, 0.0
      %v368 = vadd.f32 %v352, 0.0
      %v369 = vadd.f32 %v353, 0.0
      %v370 = vadd.f32 %v354, 0.0
      %v371 = vadd.f32 %v355, 0.0
      %v372 = vadd.f32 %v356, 0.0
      %v373 = vadd.f32 %v357, 0.0
      %v374 = vadd.f32 %v358, 0.0
      %v375 = vadd.f32 %v359, 0.0
      %v376 = vadd.f32 %v360, 0.0
      %v377 = vld [vmem:[%s175 + $0x5] sm:$0x1]
      %v378 = vlaneseq
      %v379 = vshrl.u32 %v378, 7
      %v380 = vsub.s32 0, %v379
      %v381 = vrot.slane %v377, %v380
      %v382 = vmul.f32 %v318, %v381
      %v383 = vmul.f32 %v319, %v381
      %v384 = vmul.f32 %v320, %v381
      %v385 = vmul.f32 %v321, %v381
      %v386 = vmul.f32 %v322, %v381
      %v387 = vmul.f32 %v323, %v381
      %v388 = vmul.f32 %v324, %v381
      %v389 = vmul.f32 %v325, %v381
      %v390 = vmul.f32 %v326, %v381
      %v391 = vmul.f32 %v327, %v381
      %v392 = vmul.f32 %v328, %v381
      %v393 = vmul.f32 %v329, %v381
      %v394 = vmul.f32 %v330, %v381
      %v395 = vmul.f32 %v331, %v381
      %v396 = vmul.f32 %v332, %v381
      %v397 = vmul.f32 %v333, %v381
      %v398 = vadd.f32 %v361, %v382
      %v399 = vadd.f32 %v362, %v383
      %v400 = vadd.f32 %v363, %v384
      %v401 = vadd.f32 %v364, %v385
      %v402 = vadd.f32 %v365, %v386
      %v403 = vadd.f32 %v366, %v387
      %v404 = vadd.f32 %v367, %v388
      %v405 = vadd.f32 %v368, %v389
      %v406 = vadd.f32 %v369, %v390
      %v407 = vadd.f32 %v370, %v391
      %v408 = vadd.f32 %v371, %v392
      %v409 = vadd.f32 %v372, %v393
      %v410 = vadd.f32 %v373, %v394
      %v411 = vadd.f32 %v374, %v395
      %v412 = vadd.f32 %v375, %v396
      %v413 = vadd.f32 %v376, %v397
      %v414 = vld [vmem:[%s175 + $0xa] sm:$0x1]
      %v415 = vlaneseq
      %v416 = vshrl.u32 %v415, 7
      %v417 = vsub.s32 0, %v416
      %v418 = vrot.slane %v414, %v417
      %v419 = vmul.f32 %v320, %v418
      %v420 = vmul.f32 %v321, %v418
      %v421 = vmul.f32 %v322, %v418
      %v422 = vmul.f32 %v323, %v418
      %v423 = vmul.f32 %v324, %v418
      %v424 = vmul.f32 %v325, %v418
      %v425 = vmul.f32 %v326, %v418
      %v426 = vmul.f32 %v327, %v418
      %v427 = vmul.f32 %v328, %v418
      %v428 = vmul.f32 %v329, %v418
      %v429 = vmul.f32 %v330, %v418
      %v430 = vmul.f32 %v331, %v418
      %v431 = vmul.f32 %v332, %v418
      %v432 = vmul.f32 %v333, %v418
      %v433 = vmul.f32 %v334, %v418
      %v434 = vmul.f32 %v335, %v418
      %v435 = vadd.f32 %v398, %v419
      %v436 = vadd.f32 %v399, %v420
      %v437 = vadd.f32 %v400, %v421
      %v438 = vadd.f32 %v401, %v422
      %v439 = vadd.f32 %v402, %v423
      %v440 = vadd.f32 %v403, %v424
      %v441 = vadd.f32 %v404, %v425
      %v442 = vadd.f32 %v405, %v426
      %v443 = vadd.f32 %v406, %v427
      %v444 = vadd.f32 %v407, %v428
      %v445 = vadd.f32 %v408, %v429
      %v446 = vadd.f32 %v409, %v430
      %v447 = vadd.f32 %v410, %v431
      %v448 = vadd.f32 %v411, %v432
      %v449 = vadd.f32 %v412, %v433
      %v450 = vadd.f32 %v413, %v434
      %v451 = vld [vmem:[%s175 + $0xf] sm:$0x1]
      %v452 = vlaneseq
      %v453 = vshrl.u32 %v452, 7
      %v454 = vsub.s32 0, %v453
      %v455 = vrot.slane %v451, %v454
      %v456 = vmul.f32 %v322, %v455
      %v457 = vmul.f32 %v323, %v455
      %v458 = vmul.f32 %v324, %v455
      %v459 = vmul.f32 %v325, %v455
      %v460 = vmul.f32 %v326, %v455
      %v461 = vmul.f32 %v327, %v455
      %v462 = vmul.f32 %v328, %v455
      %v463 = vmul.f32 %v329, %v455
      %v464 = vmul.f32 %v330, %v455
      %v465 = vmul.f32 %v331, %v455
      %v466 = vmul.f32 %v332, %v455
      %v467 = vmul.f32 %v333, %v455
      %v468 = vmul.f32 %v334, %v455
      %v469 = vmul.f32 %v335, %v455
      %v470 = vmul.f32 %v336, %v455
      %v471 = vmul.f32 %v337, %v455
      %v472 = vadd.f32 %v435, %v456
      %v473 = vadd.f32 %v436, %v457
      %v474 = vadd.f32 %v437, %v458
      %v475 = vadd.f32 %v438, %v459
      %v476 = vadd.f32 %v439, %v460
      %v477 = vadd.f32 %v440, %v461
      %v478 = vadd.f32 %v441, %v462
      %v479 = vadd.f32 %v442, %v463
      %v480 = vadd.f32 %v443, %v464
      %v481 = vadd.f32 %v444, %v465
      %v482 = vadd.f32 %v445, %v466
      %v483 = vadd.f32 %v446, %v467
      %v484 = vadd.f32 %v447, %v468
      %v485 = vadd.f32 %v448, %v469
      %v486 = vadd.f32 %v449, %v470
      %v487 = vadd.f32 %v450, %v471
      %v488 = vld [vmem:[%s175 + $0x14] sm:$0x1]
      %v489 = vlaneseq
      %v490 = vshrl.u32 %v489, 7
      %v491 = vsub.s32 0, %v490
      %v492 = vrot.slane %v488, %v491
      %v493 = vmul.f32 %v324, %v492
      %v494 = vmul.f32 %v325, %v492
      %v495 = vmul.f32 %v326, %v492
      %v496 = vmul.f32 %v327, %v492
      %v497 = vmul.f32 %v328, %v492
      %v498 = vmul.f32 %v329, %v492
      %v499 = vmul.f32 %v330, %v492
      %v500 = vmul.f32 %v331, %v492
      %v501 = vmul.f32 %v332, %v492
      %v502 = vmul.f32 %v333, %v492
      %v503 = vmul.f32 %v334, %v492
      %v504 = vmul.f32 %v335, %v492
      %v505 = vmul.f32 %v336, %v492
      %v506 = vmul.f32 %v337, %v492
      %v507 = vmul.f32 %v338, %v492
      %v508 = vmul.f32 %v339, %v492
      %v509 = vadd.f32 %v472, %v493
      %v510 = vadd.f32 %v473, %v494
      %v511 = vadd.f32 %v474, %v495
      %v512 = vadd.f32 %v475, %v496
      %v513 = vadd.f32 %v476, %v497
      %v514 = vadd.f32 %v477, %v498
      %v515 = vadd.f32 %v478, %v499
      %v516 = vadd.f32 %v479, %v500
      %v517 = vadd.f32 %v480, %v501
      %v518 = vadd.f32 %v481, %v502
      %v519 = vadd.f32 %v482, %v503
      %v520 = vadd.f32 %v483, %v504
      %v521 = vadd.f32 %v484, %v505
      %v522 = vadd.f32 %v485, %v506
      %v523 = vadd.f32 %v486, %v507
      %v524 = vadd.f32 %v487, %v508
      %v525 = vld [vmem:[#allocation2 + $0x7] sm:$0xff]
      %v526 = vld [vmem:[#allocation2 + $0xf] sm:$0xff]
      %v527 = vld [vmem:[#allocation2 + $0x27] sm:$0xff]
      %v528 = vld [vmem:[#allocation2 + $0x2f] sm:$0xff]
      %v529 = vld [vmem:[#allocation2 + $0x47] sm:$0xff]
      %v530 = vld [vmem:[#allocation2 + $0x4f] sm:$0xff]
      %v531 = vld [vmem:[#allocation2 + $0x67] sm:$0xff]
      %v532 = vld [vmem:[#allocation2 + $0x6f] sm:$0xff]
      %v533 = vld [vmem:[#allocation2 + $0x87] sm:$0xff]
      %v534 = vld [vmem:[#allocation2 + $0x8f] sm:$0xff]
      %v535 = vld [vmem:[#allocation2 + $0xa7] sm:$0xff]
      %v536 = vld [vmem:[#allocation2 + $0xaf] sm:$0xff]
      %v537 = vld [vmem:[#allocation2 + $0xc7] sm:$0xff]
      %v538 = vld [vmem:[#allocation2 + $0xcf] sm:$0xff]
      %v539 = vld [vmem:[#allocation2 + $0xe7] sm:$0xff]
      %v540 = vld [vmem:[#allocation2 + $0xef] sm:$0xff]
      %v541 = vld [vmem:[#allocation2 + $0x107] sm:$0xff]
      %v542 = vld [vmem:[#allocation2 + $0x10f] sm:$0xff]
      %v543 = vld [vmem:[#allocation2 + $0x127] sm:$0xff]
      %v544 = vld [vmem:[#allocation2 + $0x12f] sm:$0xff]
      %v545 = vld [vmem:[#allocation2 + $0x147] sm:$0xff]
      %v546 = vld [vmem:[#allocation2 + $0x14f] sm:$0xff]
      %v547 = vld [vmem:[#allocation2 + $0x167] sm:$0xff]
      %v548 = vld [vmem:[#allocation2 + $0x16f] sm:$0xff]
      %v549 = vld [vmem:[%s175 + $0x1] sm:$0x1]
      %v550 = vlaneseq
      %v551 = vshrl.u32 %v550, 7
      %v552 = vsub.s32 0, %v551
      %v553 = vrot.slane %v549, %v552
      %v554 = vmul.f32 %v525, %v553
      %v555 = vmul.f32 %v526, %v553
      %v556 = vmul.f32 %v527, %v553
      %v557 = vmul.f32 %v528, %v553
      %v558 = vmul.f32 %v529, %v553
      %v559 = vmul.f32 %v530, %v553
      %v560 = vmul.f32 %v531, %v553
      %v561 = vmul.f32 %v532, %v553
      %v562 = vmul.f32 %v533, %v553
      %v563 = vmul.f32 %v534, %v553
      %v564 = vmul.f32 %v535, %v553
      %v565 = vmul.f32 %v536, %v553
      %v566 = vmul.f32 %v537, %v553
      %v567 = vmul.f32 %v538, %v553
      %v568 = vmul.f32 %v539, %v553
      %v569 = vmul.f32 %v540, %v553
      %v570 = vadd.f32 %v509, %v554
      %v571 = vadd.f32 %v510, %v555
      %v572 = vadd.f32 %v511, %v556
      %v573 = vadd.f32 %v512, %v557
      %v574 = vadd.f32 %v513, %v558
      %v575 = vadd.f32 %v514, %v559
      %v576 = vadd.f32 %v515, %v560
      %v577 = vadd.f32 %v516, %v561
      %v578 = vadd.f32 %v517, %v562
      %v579 = vadd.f32 %v518, %v563
      %v580 = vadd.f32 %v519, %v564
      %v581 = vadd.f32 %v520, %v565
      %v582 = vadd.f32 %v521, %v566
      %v583 = vadd.f32 %v522, %v567
      %v584 = vadd.f32 %v523, %v568
      %v585 = vadd.f32 %v524, %v569
      %v586 = vld [vmem:[%s175 + $0x6] sm:$0x1]
      %v587 = vlaneseq
      %v588 = vshrl.u32 %v587, 7
      %v589 = vsub.s32 0, %v588
      %v590 = vrot.slane %v586, %v589
      %v591 = vmul.f32 %v527, %v590
      %v592 = vmul.f32 %v528, %v590
      %v593 = vmul.f32 %v529, %v590
      %v594 = vmul.f32 %v530, %v590
      %v595 = vmul.f32 %v531, %v590
      %v596 = vmul.f32 %v532, %v590
      %v597 = vmul.f32 %v533, %v590
      %v598 = vmul.f32 %v534, %v590
      %v599 = vmul.f32 %v535, %v590
      %v600 = vmul.f32 %v536, %v590
      %v601 = vmul.f32 %v537, %v590
      %v602 = vmul.f32 %v538, %v590
      %v603 = vmul.f32 %v539, %v590
      %v604 = vmul.f32 %v540, %v590
      %v605 = vmul.f32 %v541, %v590
      %v606 = vmul.f32 %v542, %v590
      %v607 = vadd.f32 %v570, %v591
      %v608 = vadd.f32 %v571, %v592
      %v609 = vadd.f32 %v572, %v593
      %v610 = vadd.f32 %v573, %v594
      %v611 = vadd.f32 %v574, %v595
      %v612 = vadd.f32 %v575, %v596
      %v613 = vadd.f32 %v576, %v597
      %v614 = vadd.f32 %v577, %v598
      %v615 = vadd.f32 %v578, %v599
      %v616 = vadd.f32 %v579, %v600
      %v617 = vadd.f32 %v580, %v601
      %v618 = vadd.f32 %v581, %v602
      %v619 = vadd.f32 %v582, %v603
      %v620 = vadd.f32 %v583, %v604
      %v621 = vadd.f32 %v584, %v605
      %v622 = vadd.f32 %v585, %v606
      %v623 = vld [vmem:[%s175 + $0xb] sm:$0x1]
      %v624 = vlaneseq
      %v625 = vshrl.u32 %v624, 7
      %v626 = vsub.s32 0, %v625
      %v627 = vrot.slane %v623, %v626
      %v628 = vmul.f32 %v529, %v627
      %v629 = vmul.f32 %v530, %v627
      %v630 = vmul.f32 %v531, %v627
      %v631 = vmul.f32 %v532, %v627
      %v632 = vmul.f32 %v533, %v627
      %v633 = vmul.f32 %v534, %v627
      %v634 = vmul.f32 %v535, %v627
      %v635 = vmul.f32 %v536, %v627
      %v636 = vmul.f32 %v537, %v627
      %v637 = vmul.f32 %v538, %v627
      %v638 = vmul.f32 %v539, %v627
      %v639 = vmul.f32 %v540, %v627
      %v640 = vmul.f32 %v541, %v627
      %v641 = vmul.f32 %v542, %v627
      %v642 = vmul.f32 %v543, %v627
      %v643 = vmul.f32 %v544, %v627
      %v644 = vadd.f32 %v607, %v628
      %v645 = vadd.f32 %v608, %v629
      %v646 = vadd.f32 %v609, %v630
      %v647 = vadd.f32 %v610, %v631
      %v648 = vadd.f32 %v611, %v632
      %v649 = vadd.f32 %v612, %v633
      %v650 = vadd.f32 %v613, %v634
      %v651 = vadd.f32 %v614, %v635
      %v652 = vadd.f32 %v615, %v636
      %v653 = vadd.f32 %v616, %v637
      %v654 = vadd.f32 %v617, %v638
      %v655 = vadd.f32 %v618, %v639
      %v656 = vadd.f32 %v619, %v640
      %v657 = vadd.f32 %v620, %v641
      %v658 = vadd.f32 %v621, %v642
      %v659 = vadd.f32 %v622, %v643
      %v660 = vld [vmem:[%s175 + $0x10] sm:$0x1]
      %v661 = vlaneseq
      %v662 = vshrl.u32 %v661, 7
      %v663 = vsub.s32 0, %v662
      %v664 = vrot.slane %v660, %v663
      %v665 = vmul.f32 %v531, %v664
      %v666 = vmul.f32 %v532, %v664
      %v667 = vmul.f32 %v533, %v664
      %v668 = vmul.f32 %v534, %v664
      %v669 = vmul.f32 %v535, %v664
      %v670 = vmul.f32 %v536, %v664
      %v671 = vmul.f32 %v537, %v664
      %v672 = vmul.f32 %v538, %v664
      %v673 = vmul.f32 %v539, %v664
      %v674 = vmul.f32 %v540, %v664
      %v675 = vmul.f32 %v541, %v664
      %v676 = vmul.f32 %v542, %v664
      %v677 = vmul.f32 %v543, %v664
      %v678 = vmul.f32 %v544, %v664
      %v679 = vmul.f32 %v545, %v664
      %v680 = vmul.f32 %v546, %v664
      %v681 = vadd.f32 %v644, %v665
      %v682 = vadd.f32 %v645, %v666
      %v683 = vadd.f32 %v646, %v667
      %v684 = vadd.f32 %v647, %v668
      %v685 = vadd.f32 %v648, %v669
      %v686 = vadd.f32 %v649, %v670
      %v687 = vadd.f32 %v650, %v671
      %v688 = vadd.f32 %v651, %v672
      %v689 = vadd.f32 %v652, %v673
      %v690 = vadd.f32 %v653, %v674
      %v691 = vadd.f32 %v654, %v675
      %v692 = vadd.f32 %v655, %v676
      %v693 = vadd.f32 %v656, %v677
      %v694 = vadd.f32 %v657, %v678
      %v695 = vadd.f32 %v658, %v679
      %v696 = vadd.f32 %v659, %v680
      %v697 = vld [vmem:[%s175 + $0x15] sm:$0x1]
      %v698 = vlaneseq
      %v699 = vshrl.u32 %v698, 7
      %v700 = vsub.s32 0, %v699
      %v701 = vrot.slane %v697, %v700
      %v702 = vmul.f32 %v533, %v701
      %v703 = vmul.f32 %v534, %v701
      %v704 = vmul.f32 %v535, %v701
      %v705 = vmul.f32 %v536, %v701
      %v706 = vmul.f32 %v537, %v701
      %v707 = vmul.f32 %v538, %v701
      %v708 = vmul.f32 %v539, %v701
      %v709 = vmul.f32 %v540, %v701
      %v710 = vmul.f32 %v541, %v701
      %v711 = vmul.f32 %v542, %v701
      %v712 = vmul.f32 %v543, %v701
      %v713 = vmul.f32 %v544, %v701
      %v714 = vmul.f32 %v545, %v701
      %v715 = vmul.f32 %v546, %v701
      %v716 = vmul.f32 %v547, %v701
      %v717 = vmul.f32 %v548, %v701
      %v718 = vadd.f32 %v681, %v702
      %v719 = vadd.f32 %v682, %v703
      %v720 = vadd.f32 %v683, %v704
      %v721 = vadd.f32 %v684, %v705
      %v722 = vadd.f32 %v685, %v706
      %v723 = vadd.f32 %v686, %v707
      %v724 = vadd.f32 %v687, %v708
      %v725 = vadd.f32 %v688, %v709
      %v726 = vadd.f32 %v689, %v710
      %v727 = vadd.f32 %v690, %v711
      %v728 = vadd.f32 %v691, %v712
      %v729 = vadd.f32 %v692, %v713
      %v730 = vadd.f32 %v693, %v714
      %v731 = vadd.f32 %v694, %v715
      %v732 = vadd.f32 %v695, %v716
      %v733 = vadd.f32 %v696, %v717
      %v734 = vld [vmem:[#allocation2 + $0x8] sm:$0xff]
      %v735 = vld [vmem:[#allocation2 + $0x10] sm:$0xff]
      %v736 = vld [vmem:[#allocation2 + $0x28] sm:$0xff]
      %v737 = vld [vmem:[#allocation2 + $0x30] sm:$0xff]
      %v738 = vld [vmem:[#allocation2 + $0x48] sm:$0xff]
      %v739 = vld [vmem:[#allocation2 + $0x50] sm:$0xff]
      %v740 = vld [vmem:[#allocation2 + $0x68] sm:$0xff]
      %v741 = vld [vmem:[#allocation2 + $0x70] sm:$0xff]
      %v742 = vld [vmem:[#allocation2 + $0x88] sm:$0xff]
      %v743 = vld [vmem:[#allocation2 + $0x90] sm:$0xff]
      %v744 = vld [vmem:[#allocation2 + $0xa8] sm:$0xff]
      %v745 = vld [vmem:[#allocation2 + $0xb0] sm:$0xff]
      %v746 = vld [vmem:[#allocation2 + $0xc8] sm:$0xff]
      %v747 = vld [vmem:[#allocation2 + $0xd0] sm:$0xff]
      %v748 = vld [vmem:[#allocation2 + $0xe8] sm:$0xff]
      %v749 = vld [vmem:[#allocation2 + $0xf0] sm:$0xff]
      %v750 = vld [vmem:[#allocation2 + $0x108] sm:$0xff]
      %v751 = vld [vmem:[#allocation2 + $0x110] sm:$0xff]
      %v752 = vld [vmem:[#allocation2 + $0x128] sm:$0xff]
      %v753 = vld [vmem:[#allocation2 + $0x130] sm:$0xff]
      %v754 = vld [vmem:[#allocation2 + $0x148] sm:$0xff]
      %v755 = vld [vmem:[#allocation2 + $0x150] sm:$0xff]
      %v756 = vld [vmem:[#allocation2 + $0x168] sm:$0xff]
      %v757 = vld [vmem:[#allocation2 + $0x170] sm:$0xff]
      %v758 = vld [vmem:[%s175 + $0x2] sm:$0x1]
      %v759 = vlaneseq
      %v760 = vshrl.u32 %v759, 7
      %v761 = vsub.s32 0, %v760
      %v762 = vrot.slane %v758, %v761
      %v763 = vmul.f32 %v734, %v762
      %v764 = vmul.f32 %v735, %v762
      %v765 = vmul.f32 %v736, %v762
      %v766 = vmul.f32 %v737, %v762
      %v767 = vmul.f32 %v738, %v762
      %v768 = vmul.f32 %v739, %v762
      %v769 = vmul.f32 %v740, %v762
      %v770 = vmul.f32 %v741, %v762
      %v771 = vmul.f32 %v742, %v762
      %v772 = vmul.f32 %v743, %v762
      %v773 = vmul.f32 %v744, %v762
      %v774 = vmul.f32 %v745, %v762
      %v775 = vmul.f32 %v746, %v762
      %v776 = vmul.f32 %v747, %v762
      %v777 = vmul.f32 %v748, %v762
      %v778 = vmul.f32 %v749, %v762
      %v779 = vadd.f32 %v718, %v763
      %v780 = vadd.f32 %v719, %v764
      %v781 = vadd.f32 %v720, %v765
      %v782 = vadd.f32 %v721, %v766
      %v783 = vadd.f32 %v722, %v767
      %v784 = vadd.f32 %v723, %v768
      %v785 = vadd.f32 %v724, %v769
      %v786 = vadd.f32 %v725, %v770
      %v787 = vadd.f32 %v726, %v771
      %v788 = vadd.f32 %v727, %v772
      %v789 = vadd.f32 %v728, %v773
      %v790 = vadd.f32 %v729, %v774
      %v791 = vadd.f32 %v730, %v775
      %v792 = vadd.f32 %v731, %v776
      %v793 = vadd.f32 %v732, %v777
      %v794 = vadd.f32 %v733, %v778
      %v795 = vld [vmem:[%s175 + $0x7] sm:$0x1]
      %v796 = vlaneseq
      %v797 = vshrl.u32 %v796, 7
      %v798 = vsub.s32 0, %v797
      %v799 = vrot.slane %v795, %v798
      %v800 = vmul.f32 %v736, %v799
      %v801 = vmul.f32 %v737, %v799
      %v802 = vmul.f32 %v738, %v799
      %v803 = vmul.f32 %v739, %v799
      %v804 = vmul.f32 %v740, %v799
      %v805 = vmul.f32 %v741, %v799
      %v806 = vmul.f32 %v742, %v799
      %v807 = vmul.f32 %v743, %v799
      %v808 = vmul.f32 %v744, %v799
      %v809 = vmul.f32 %v745, %v799
      %v810 = vmul.f32 %v746, %v799
      %v811 = vmul.f32 %v747, %v799
      %v812 = vmul.f32 %v748, %v799
      %v813 = vmul.f32 %v749, %v799
      %v814 = vmul.f32 %v750, %v799
      %v815 = vmul.f32 %v751, %v799
      %v816 = vadd.f32 %v779, %v800
      %v817 = vadd.f32 %v780, %v801
      %v818 = vadd.f32 %v781, %v802
      %v819 = vadd.f32 %v782, %v803
      %v820 = vadd.f32 %v783, %v804
      %v821 = vadd.f32 %v784, %v805
      %v822 = vadd.f32 %v785, %v806
      %v823 = vadd.f32 %v786, %v807
      %v824 = vadd.f32 %v787, %v808
      %v825 = vadd.f32 %v788, %v809
      %v826 = vadd.f32 %v789, %v810
      %v827 = vadd.f32 %v790, %v811
      %v828 = vadd.f32 %v791, %v812
      %v829 = vadd.f32 %v792, %v813
      %v830 = vadd.f32 %v793, %v814
      %v831 = vadd.f32 %v794, %v815
      %v832 = vld [vmem:[%s175 + $0xc] sm:$0x1]
      %v833 = vlaneseq
      %v834 = vshrl.u32 %v833, 7
      %v835 = vsub.s32 0, %v834
      %v836 = vrot.slane %v832, %v835
      %v837 = vmul.f32 %v738, %v836
      %v838 = vmul.f32 %v739, %v836
      %v839 = vmul.f32 %v740, %v836
      %v840 = vmul.f32 %v741, %v836
      %v841 = vmul.f32 %v742, %v836
      %v842 = vmul.f32 %v743, %v836
      %v843 = vmul.f32 %v744, %v836
      %v844 = vmul.f32 %v745, %v836
      %v845 = vmul.f32 %v746, %v836
      %v846 = vmul.f32 %v747, %v836
      %v847 = vmul.f32 %v748, %v836
      %v848 = vmul.f32 %v749, %v836
      %v849 = vmul.f32 %v750, %v836
      %v850 = vmul.f32 %v751, %v836
      %v851 = vmul.f32 %v752, %v836
      %v852 = vmul.f32 %v753, %v836
      %v853 = vadd.f32 %v816, %v837
      %v854 = vadd.f32 %v817, %v838
      %v855 = vadd.f32 %v818, %v839
      %v856 = vadd.f32 %v819, %v840
      %v857 = vadd.f32 %v820, %v841
      %v858 = vadd.f32 %v821, %v842
      %v859 = vadd.f32 %v822, %v843
      %v860 = vadd.f32 %v823, %v844
      %v861 = vadd.f32 %v824, %v845
      %v862 = vadd.f32 %v825, %v846
      %v863 = vadd.f32 %v826, %v847
      %v864 = vadd.f32 %v827, %v848
      %v865 = vadd.f32 %v828, %v849
      %v866 = vadd.f32 %v829, %v850
      %v867 = vadd.f32 %v830, %v851
      %v868 = vadd.f32 %v831, %v852
      %v869 = vld [vmem:[%s175 + $0x11] sm:$0x1]
      %v870 = vlaneseq
      %v871 = vshrl.u32 %v870, 7
      %v872 = vsub.s32 0, %v871
      %v873 = vrot.slane %v869, %v872
      %v874 = vmul.f32 %v740, %v873
      %v875 = vmul.f32 %v741, %v873
      %v876 = vmul.f32 %v742, %v873
      %v877 = vmul.f32 %v743, %v873
      %v878 = vmul.f32 %v744, %v873
      %v879 = vmul.f32 %v745, %v873
      %v880 = vmul.f32 %v746, %v873
      %v881 = vmul.f32 %v747, %v873
      %v882 = vmul.f32 %v748, %v873
      %v883 = vmul.f32 %v749, %v873
      %v884 = vmul.f32 %v750, %v873
      %v885 = vmul.f32 %v751, %v873
      %v886 = vmul.f32 %v752, %v873
      %v887 = vmul.f32 %v753, %v873
      %v888 = vmul.f32 %v754, %v873
      %v889 = vmul.f32 %v755, %v873
      %v890 = vadd.f32 %v853, %v874
      %v891 = vadd.f32 %v854, %v875
      %v892 = vadd.f32 %v855, %v876
      %v893 = vadd.f32 %v856, %v877
      %v894 = vadd.f32 %v857, %v878
      %v895 = vadd.f32 %v858, %v879
      %v896 = vadd.f32 %v859, %v880
      %v897 = vadd.f32 %v860, %v881
      %v898 = vadd.f32 %v861, %v882
      %v899 = vadd.f32 %v862, %v883
      %v900 = vadd.f32 %v863, %v884
      %v901 = vadd.f32 %v864, %v885
      %v902 = vadd.f32 %v865, %v886
      %v903 = vadd.f32 %v866, %v887
      %v904 = vadd.f32 %v867, %v888
      %v905 = vadd.f32 %v868, %v889
      %v906 = vld [vmem:[%s175 + $0x16] sm:$0x1]
      %v907 = vlaneseq
      %v908 = vshrl.u32 %v907, 7
      %v909 = vsub.s32 0, %v908
      %v910 = vrot.slane %v906, %v909
      %v911 = vmul.f32 %v742, %v910
      %v912 = vmul.f32 %v743, %v910
      %v913 = vmul.f32 %v744, %v910
      %v914 = vmul.f32 %v745, %v910
      %v915 = vmul.f32 %v746, %v910
      %v916 = vmul.f32 %v747, %v910
      %v917 = vmul.f32 %v748, %v910
      %v918 = vmul.f32 %v749, %v910
      %v919 = vmul.f32 %v750, %v910
      %v920 = vmul.f32 %v751, %v910
      %v921 = vmul.f32 %v752, %v910
      %v922 = vmul.f32 %v753, %v910
      %v923 = vmul.f32 %v754, %v910
      %v924 = vmul.f32 %v755, %v910
      %v925 = vmul.f32 %v756, %v910
      %v926 = vmul.f32 %v757, %v910
      %v927 = vadd.f32 %v890, %v911
      %v928 = vadd.f32 %v891, %v912
      %v929 = vadd.f32 %v892, %v913
      %v930 = vadd.f32 %v893, %v914
      %v931 = vadd.f32 %v894, %v915
      %v932 = vadd.f32 %v895, %v916
      %v933 = vadd.f32 %v896, %v917
      %v934 = vadd.f32 %v897, %v918
      %v935 = vadd.f32 %v898, %v919
      %v936 = vadd.f32 %v899, %v920
      %v937 = vadd.f32 %v900, %v921
      %v938 = vadd.f32 %v901, %v922
      %v939 = vadd.f32 %v902, %v923
      %v940 = vadd.f32 %v903, %v924
      %v941 = vadd.f32 %v904, %v925
      %v942 = vadd.f32 %v905, %v926
      %v943 = vld [vmem:[#allocation2 + $0x9] sm:$0xff]
      %v944 = vld [vmem:[#allocation2 + $0x11] sm:$0xff]
      %v945 = vld [vmem:[#allocation2 + $0x29] sm:$0xff]
      %v946 = vld [vmem:[#allocation2 + $0x31] sm:$0xff]
      %v947 = vld [vmem:[#allocation2 + $0x49] sm:$0xff]
      %v948 = vld [vmem:[#allocation2 + $0x51] sm:$0xff]
      %v949 = vld [vmem:[#allocation2 + $0x69] sm:$0xff]
      %v950 = vld [vmem:[#allocation2 + $0x71] sm:$0xff]
      %v951 = vld [vmem:[#allocation2 + $0x89] sm:$0xff]
      %v952 = vld [vmem:[#allocation2 + $0x91] sm:$0xff]
      %v953 = vld [vmem:[#allocation2 + $0xa9] sm:$0xff]
      %v954 = vld [vmem:[#allocation2 + $0xb1] sm:$0xff]
      %v955 = vld [vmem:[#allocation2 + $0xc9] sm:$0xff]
      %v956 = vld [vmem:[#allocation2 + $0xd1] sm:$0xff]
      %v957 = vld [vmem:[#allocation2 + $0xe9] sm:$0xff]
      %v958 = vld [vmem:[#allocation2 + $0xf1] sm:$0xff]
      %v959 = vld [vmem:[#allocation2 + $0x109] sm:$0xff]
      %v960 = vld [vmem:[#allocation2 + $0x111] sm:$0xff]
      %v961 = vld [vmem:[#allocation2 + $0x129] sm:$0xff]
      %v962 = vld [vmem:[#allocation2 + $0x131] sm:$0xff]
      %v963 = vld [vmem:[#allocation2 + $0x149] sm:$0xff]
      %v964 = vld [vmem:[#allocation2 + $0x151] sm:$0xff]
      %v965 = vld [vmem:[#allocation2 + $0x169] sm:$0xff]
      %v966 = vld [vmem:[#allocation2 + $0x171] sm:$0xff]
      %v967 = vld [vmem:[%s175 + $0x3] sm:$0x1]
      %v968 = vlaneseq
      %v969 = vshrl.u32 %v968, 7
      %v970 = vsub.s32 0, %v969
      %v971 = vrot.slane %v967, %v970
      %v972 = vmul.f32 %v943, %v971
      %v973 = vmul.f32 %v944, %v971
      %v974 = vmul.f32 %v945, %v971
      %v975 = vmul.f32 %v946, %v971
      %v976 = vmul.f32 %v947, %v971
      %v977 = vmul.f32 %v948, %v971
      %v978 = vmul.f32 %v949, %v971
      %v979 = vmul.f32 %v950, %v971
      %v980 = vmul.f32 %v951, %v971
      %v981 = vmul.f32 %v952, %v971
      %v982 = vmul.f32 %v953, %v971
      %v983 = vmul.f32 %v954, %v971
      %v984 = vmul.f32 %v955, %v971
      %v985 = vmul.f32 %v956, %v971
      %v986 = vmul.f32 %v957, %v971
      %v987 = vmul.f32 %v958, %v971
      %v988 = vadd.f32 %v927, %v972
      %v989 = vadd.f32 %v928, %v973
      %v990 = vadd.f32 %v929, %v974
      %v991 = vadd.f32 %v930, %v975
      %v992 = vadd.f32 %v931, %v976
      %v993 = vadd.f32 %v932, %v977
      %v994 = vadd.f32 %v933, %v978
      %v995 = vadd.f32 %v934, %v979
      %v996 = vadd.f32 %v935, %v980
      %v997 = vadd.f32 %v936, %v981
      %v998 = vadd.f32 %v937, %v982
      %v999 = vadd.f32 %v938, %v983
      %v1000 = vadd.f32 %v939, %v984
      %v1001 = vadd.f32 %v940, %v985
      %v1002 = vadd.f32 %v941, %v986
      %v1003 = vadd.f32 %v942, %v987
      %v1004 = vld [vmem:[%s175 + $0x8] sm:$0x1]
      %v1005 = vlaneseq
      %v1006 = vshrl.u32 %v1005, 7
      %v1007 = vsub.s32 0, %v1006
      %v1008 = vrot.slane %v1004, %v1007
      %v1009 = vmul.f32 %v945, %v1008
      %v1010 = vmul.f32 %v946, %v1008
      %v1011 = vmul.f32 %v947, %v1008
      %v1012 = vmul.f32 %v948, %v1008
      %v1013 = vmul.f32 %v949, %v1008
      %v1014 = vmul.f32 %v950, %v1008
      %v1015 = vmul.f32 %v951, %v1008
      %v1016 = vmul.f32 %v952, %v1008
      %v1017 = vmul.f32 %v953, %v1008
      %v1018 = vmul.f32 %v954, %v1008
      %v1019 = vmul.f32 %v955, %v1008
      %v1020 = vmul.f32 %v956, %v1008
      %v1021 = vmul.f32 %v957, %v1008
      %v1022 = vmul.f32 %v958, %v1008
      %v1023 = vmul.f32 %v959, %v1008
      %v1024 = vmul.f32 %v960, %v1008
      %v1025 = vadd.f32 %v988, %v1009
      %v1026 = vadd.f32 %v989, %v1010
      %v1027 = vadd.f32 %v990, %v1011
      %v1028 = vadd.f32 %v991, %v1012
      %v1029 = vadd.f32 %v992, %v1013
      %v1030 = vadd.f32 %v993, %v1014
      %v1031 = vadd.f32 %v994, %v1015
      %v1032 = vadd.f32 %v995, %v1016
      %v1033 = vadd.f32 %v996, %v1017
      %v1034 = vadd.f32 %v997, %v1018
      %v1035 = vadd.f32 %v998, %v1019
      %v1036 = vadd.f32 %v999, %v1020
      %v1037 = vadd.f32 %v1000, %v1021
      %v1038 = vadd.f32 %v1001, %v1022
      %v1039 = vadd.f32 %v1002, %v1023
      %v1040 = vadd.f32 %v1003, %v1024
      %v1041 = vld [vmem:[%s175 + $0xd] sm:$0x1]
      %v1042 = vlaneseq
      %v1043 = vshrl.u32 %v1042, 7
      %v1044 = vsub.s32 0, %v1043
      %v1045 = vrot.slane %v1041, %v1044
      %v1046 = vmul.f32 %v947, %v1045
      %v1047 = vmul.f32 %v948, %v1045
      %v1048 = vmul.f32 %v949, %v1045
      %v1049 = vmul.f32 %v950, %v1045
      %v1050 = vmul.f32 %v951, %v1045
      %v1051 = vmul.f32 %v952, %v1045
      %v1052 = vmul.f32 %v953, %v1045
      %v1053 = vmul.f32 %v954, %v1045
      %v1054 = vmul.f32 %v955, %v1045
      %v1055 = vmul.f32 %v956, %v1045
      %v1056 = vmul.f32 %v957, %v1045
      %v1057 = vmul.f32 %v958, %v1045
      %v1058 = vmul.f32 %v959, %v1045
      %v1059 = vmul.f32 %v960, %v1045
      %v1060 = vmul.f32 %v961, %v1045
      %v1061 = vmul.f32 %v962, %v1045
      %v1062 = vadd.f32 %v1025, %v1046
      %v1063 = vadd.f32 %v1026, %v1047
      %v1064 = vadd.f32 %v1027, %v1048
      %v1065 = vadd.f32 %v1028, %v1049
      %v1066 = vadd.f32 %v1029, %v1050
      %v1067 = vadd.f32 %v1030, %v1051
      %v1068 = vadd.f32 %v1031, %v1052
      %v1069 = vadd.f32 %v1032, %v1053
      %v1070 = vadd.f32 %v1033, %v1054
      %v1071 = vadd.f32 %v1034, %v1055
      %v1072 = vadd.f32 %v1035, %v1056
      %v1073 = vadd.f32 %v1036, %v1057
      %v1074 = vadd.f32 %v1037, %v1058
      %v1075 = vadd.f32 %v1038, %v1059
      %v1076 = vadd.f32 %v1039, %v1060
      %v1077 = vadd.f32 %v1040, %v1061
      %v1078 = vld [vmem:[%s175 + $0x12] sm:$0x1]
      %v1079 = vlaneseq
      %v1080 = vshrl.u32 %v1079, 7
      %v1081 = vsub.s32 0, %v1080
      %v1082 = vrot.slane %v1078, %v1081
      %v1083 = vmul.f32 %v949, %v1082
      %v1084 = vmul.f32 %v950, %v1082
      %v1085 = vmul.f32 %v951, %v1082
      %v1086 = vmul.f32 %v952, %v1082
      %v1087 = vmul.f32 %v953, %v1082
      %v1088 = vmul.f32 %v954, %v1082
      %v1089 = vmul.f32 %v955, %v1082
      %v1090 = vmul.f32 %v956, %v1082
      %v1091 = vmul.f32 %v957, %v1082
      %v1092 = vmul.f32 %v958, %v1082
      %v1093 = vmul.f32 %v959, %v1082
      %v1094 = vmul.f32 %v960, %v1082
      %v1095 = vmul.f32 %v961, %v1082
      %v1096 = vmul.f32 %v962, %v1082
      %v1097 = vmul.f32 %v963, %v1082
      %v1098 = vmul.f32 %v964, %v1082
      %v1099 = vadd.f32 %v1062, %v1083
      %v1100 = vadd.f32 %v1063, %v1084
      %v1101 = vadd.f32 %v1064, %v1085
      %v1102 = vadd.f32 %v1065, %v1086
      %v1103 = vadd.f32 %v1066, %v1087
      %v1104 = vadd.f32 %v1067, %v1088
      %v1105 = vadd.f32 %v1068, %v1089
      %v1106 = vadd.f32 %v1069, %v1090
      %v1107 = vadd.f32 %v1070, %v1091
      %v1108 = vadd.f32 %v1071, %v1092
      %v1109 = vadd.f32 %v1072, %v1093
      %v1110 = vadd.f32 %v1073, %v1094
      %v1111 = vadd.f32 %v1074, %v1095
      %v1112 = vadd.f32 %v1075, %v1096
      %v1113 = vadd.f32 %v1076, %v1097
      %v1114 = vadd.f32 %v1077, %v1098
      %v1115 = vld [vmem:[%s175 + $0x17] sm:$0x1]
      %v1116 = vlaneseq
      %v1117 = vshrl.u32 %v1116, 7
      %v1118 = vsub.s32 0, %v1117
      %v1119 = vrot.slane %v1115, %v1118
      %v1120 = vmul.f32 %v951, %v1119
      %v1121 = vmul.f32 %v952, %v1119
      %v1122 = vmul.f32 %v953, %v1119
      %v1123 = vmul.f32 %v954, %v1119
      %v1124 = vmul.f32 %v955, %v1119
      %v1125 = vmul.f32 %v956, %v1119
      %v1126 = vmul.f32 %v957, %v1119
      %v1127 = vmul.f32 %v958, %v1119
      %v1128 = vmul.f32 %v959, %v1119
      %v1129 = vmul.f32 %v960, %v1119
      %v1130 = vmul.f32 %v961, %v1119
      %v1131 = vmul.f32 %v962, %v1119
      %v1132 = vmul.f32 %v963, %v1119
      %v1133 = vmul.f32 %v964, %v1119
      %v1134 = vmul.f32 %v965, %v1119
      %v1135 = vmul.f32 %v966, %v1119
      %v1136 = vadd.f32 %v1099, %v1120
      %v1137 = vadd.f32 %v1100, %v1121
      %v1138 = vadd.f32 %v1101, %v1122
      %v1139 = vadd.f32 %v1102, %v1123
      %v1140 = vadd.f32 %v1103, %v1124
      %v1141 = vadd.f32 %v1104, %v1125
      %v1142 = vadd.f32 %v1105, %v1126
      %v1143 = vadd.f32 %v1106, %v1127
      %v1144 = vadd.f32 %v1107, %v1128
      %v1145 = vadd.f32 %v1108, %v1129
      %v1146 = vadd.f32 %v1109, %v1130
      %v1147 = vadd.f32 %v1110, %v1131
      %v1148 = vadd.f32 %v1111, %v1132
      %v1149 = vadd.f32 %v1112, %v1133
      %v1150 = vadd.f32 %v1113, %v1134
      %v1151 = vadd.f32 %v1114, %v1135
      %v1152 = vld [vmem:[#allocation2 + $0xa] sm:$0xff]
      %v1153 = vld [vmem:[#allocation2 + $0x12] sm:$0xff]
      %v1154 = vld [vmem:[#allocation2 + $0x2a] sm:$0xff]
      %v1155 = vld [vmem:[#allocation2 + $0x32] sm:$0xff]
      %v1156 = vld [vmem:[#allocation2 + $0x4a] sm:$0xff]
      %v1157 = vld [vmem:[#allocation2 + $0x52] sm:$0xff]
      %v1158 = vld [vmem:[#allocation2 + $0x6a] sm:$0xff]
      %v1159 = vld [vmem:[#allocation2 + $0x72] sm:$0xff]
      %v1160 = vld [vmem:[#allocation2 + $0x8a] sm:$0xff]
      %v1161 = vld [vmem:[#allocation2 + $0x92] sm:$0xff]
      %v1162 = vld [vmem:[#allocation2 + $0xaa] sm:$0xff]
      %v1163 = vld [vmem:[#allocation2 + $0xb2] sm:$0xff]
      %v1164 = vld [vmem:[#allocation2 + $0xca] sm:$0xff]
      %v1165 = vld [vmem:[#allocation2 + $0xd2] sm:$0xff]
      %v1166 = vld [vmem:[#allocation2 + $0xea] sm:$0xff]
      %v1167 = vld [vmem:[#allocation2 + $0xf2] sm:$0xff]
      %v1168 = vld [vmem:[#allocation2 + $0x10a] sm:$0xff]
      %v1169 = vld [vmem:[#allocation2 + $0x112] sm:$0xff]
      %v1170 = vld [vmem:[#allocation2 + $0x12a] sm:$0xff]
      %v1171 = vld [vmem:[#allocation2 + $0x132] sm:$0xff]
      %v1172 = vld [vmem:[#allocation2 + $0x14a] sm:$0xff]
      %v1173 = vld [vmem:[#allocation2 + $0x152] sm:$0xff]
      %v1174 = vld [vmem:[#allocation2 + $0x16a] sm:$0xff]
      %v1175 = vld [vmem:[#allocation2 + $0x172] sm:$0xff]
      %v1176 = vld [vmem:[%s175 + $0x4] sm:$0x1]
      %v1177 = vlaneseq
      %v1178 = vshrl.u32 %v1177, 7
      %v1179 = vsub.s32 0, %v1178
      %v1180 = vrot.slane %v1176, %v1179
      %v1181 = vmul.f32 %v1152, %v1180
      %v1182 = vmul.f32 %v1153, %v1180
      %v1183 = vmul.f32 %v1154, %v1180
      %v1184 = vmul.f32 %v1155, %v1180
      %v1185 = vmul.f32 %v1156, %v1180
      %v1186 = vmul.f32 %v1157, %v1180
      %v1187 = vmul.f32 %v1158, %v1180
      %v1188 = vmul.f32 %v1159, %v1180
      %v1189 = vmul.f32 %v1160, %v1180
      %v1190 = vmul.f32 %v1161, %v1180
      %v1191 = vmul.f32 %v1162, %v1180
      %v1192 = vmul.f32 %v1163, %v1180
      %v1193 = vmul.f32 %v1164, %v1180
      %v1194 = vmul.f32 %v1165, %v1180
      %v1195 = vmul.f32 %v1166, %v1180
      %v1196 = vmul.f32 %v1167, %v1180
      %v1197 = vadd.f32 %v1136, %v1181
      %v1198 = vadd.f32 %v1137, %v1182
      %v1199 = vadd.f32 %v1138, %v1183
      %v1200 = vadd.f32 %v1139, %v1184
      %v1201 = vadd.f32 %v1140, %v1185
      %v1202 = vadd.f32 %v1141, %v1186
      %v1203 = vadd.f32 %v1142, %v1187
      %v1204 = vadd.f32 %v1143, %v1188
      %v1205 = vadd.f32 %v1144, %v1189
      %v1206 = vadd.f32 %v1145, %v1190
      %v1207 = vadd.f32 %v1146, %v1191
      %v1208 = vadd.f32 %v1147, %v1192
      %v1209 = vadd.f32 %v1148, %v1193
      %v1210 = vadd.f32 %v1149, %v1194
      %v1211 = vadd.f32 %v1150, %v1195
      %v1212 = vadd.f32 %v1151, %v1196
      %v1213 = vld [vmem:[%s175 + $0x9] sm:$0x1]
      %v1214 = vlaneseq
      %v1215 = vshrl.u32 %v1214, 7
      %v1216 = vsub.s32 0, %v1215
      %v1217 = vrot.slane %v1213, %v1216
      %v1218 = vmul.f32 %v1154, %v1217
      %v1219 = vmul.f32 %v1155, %v1217
      %v1220 = vmul.f32 %v1156, %v1217
      %v1221 = vmul.f32 %v1157, %v1217
      %v1222 = vmul.f32 %v1158, %v1217
      %v1223 = vmul.f32 %v1159, %v1217
      %v1224 = vmul.f32 %v1160, %v1217
      %v1225 = vmul.f32 %v1161, %v1217
      %v1226 = vmul.f32 %v1162, %v1217
      %v1227 = vmul.f32 %v1163, %v1217
      %v1228 = vmul.f32 %v1164, %v1217
      %v1229 = vmul.f32 %v1165, %v1217
      %v1230 = vmul.f32 %v1166, %v1217
      %v1231 = vmul.f32 %v1167, %v1217
      %v1232 = vmul.f32 %v1168, %v1217
      %v1233 = vmul.f32 %v1169, %v1217
      %v1234 = vadd.f32 %v1197, %v1218
      %v1235 = vadd.f32 %v1198, %v1219
      %v1236 = vadd.f32 %v1199, %v1220
      %v1237 = vadd.f32 %v1200, %v1221
      %v1238 = vadd.f32 %v1201, %v1222
      %v1239 = vadd.f32 %v1202, %v1223
      %v1240 = vadd.f32 %v1203, %v1224
      %v1241 = vadd.f32 %v1204, %v1225
      %v1242 = vadd.f32 %v1205, %v1226
      %v1243 = vadd.f32 %v1206, %v1227
      %v1244 = vadd.f32 %v1207, %v1228
      %v1245 = vadd.f32 %v1208, %v1229
      %v1246 = vadd.f32 %v1209, %v1230
      %v1247 = vadd.f32 %v1210, %v1231
      %v1248 = vadd.f32 %v1211, %v1232
      %v1249 = vadd.f32 %v1212, %v1233
      %v1250 = vld [vmem:[%s175 + $0xe] sm:$0x1]
      %v1251 = vlaneseq
      %v1252 = vshrl.u32 %v1251, 7
      %v1253 = vsub.s32 0, %v1252
      %v1254 = vrot.slane %v1250, %v1253
      %v1255 = vmul.f32 %v1156, %v1254
      %v1256 = vmul.f32 %v1157, %v1254
      %v1257 = vmul.f32 %v1158, %v1254
      %v1258 = vmul.f32 %v1159, %v1254
      %v1259 = vmul.f32 %v1160, %v1254
      %v1260 = vmul.f32 %v1161, %v1254
      %v1261 = vmul.f32 %v1162, %v1254
      %v1262 = vmul.f32 %v1163, %v1254
      %v1263 = vmul.f32 %v1164, %v1254
      %v1264 = vmul.f32 %v1165, %v1254
      %v1265 = vmul.f32 %v1166, %v1254
      %v1266 = vmul.f32 %v1167, %v1254
      %v1267 = vmul.f32 %v1168, %v1254
      %v1268 = vmul.f32 %v1169, %v1254
      %v1269 = vmul.f32 %v1170, %v1254
      %v1270 = vmul.f32 %v1171, %v1254
      %v1271 = vadd.f32 %v1234, %v1255
      %v1272 = vadd.f32 %v1235, %v1256
      %v1273 = vadd.f32 %v1236, %v1257
      %v1274 = vadd.f32 %v1237, %v1258
      %v1275 = vadd.f32 %v1238, %v1259
      %v1276 = vadd.f32 %v1239, %v1260
      %v1277 = vadd.f32 %v1240, %v1261
      %v1278 = vadd.f32 %v1241, %v1262
      %v1279 = vadd.f32 %v1242, %v1263
      %v1280 = vadd.f32 %v1243, %v1264
      %v1281 = vadd.f32 %v1244, %v1265
      %v1282 = vadd.f32 %v1245, %v1266
      %v1283 = vadd.f32 %v1246, %v1267
      %v1284 = vadd.f32 %v1247, %v1268
      %v1285 = vadd.f32 %v1248, %v1269
      %v1286 = vadd.f32 %v1249, %v1270
      %v1287 = vld [vmem:[%s175 + $0x13] sm:$0x1]
      %v1288 = vlaneseq
      %v1289 = vshrl.u32 %v1288, 7
      %v1290 = vsub.s32 0, %v1289
      %v1291 = vrot.slane %v1287, %v1290
      %v1292 = vmul.f32 %v1158, %v1291
      %v1293 = vmul.f32 %v1159, %v1291
      %v1294 = vmul.f32 %v1160, %v1291
      %v1295 = vmul.f32 %v1161, %v1291
      %v1296 = vmul.f32 %v1162, %v1291
      %v1297 = vmul.f32 %v1163, %v1291
      %v1298 = vmul.f32 %v1164, %v1291
      %v1299 = vmul.f32 %v1165, %v1291
      %v1300 = vmul.f32 %v1166, %v1291
      %v1301 = vmul.f32 %v1167, %v1291
      %v1302 = vmul.f32 %v1168, %v1291
      %v1303 = vmul.f32 %v1169, %v1291
      %v1304 = vmul.f32 %v1170, %v1291
      %v1305 = vmul.f32 %v1171, %v1291
      %v1306 = vmul.f32 %v1172, %v1291
      %v1307 = vmul.f32 %v1173, %v1291
      %v1308 = vadd.f32 %v1271, %v1292
      %v1309 = vadd.f32 %v1272, %v1293
      %v1310 = vadd.f32 %v1273, %v1294
      %v1311 = vadd.f32 %v1274, %v1295
      %v1312 = vadd.f32 %v1275, %v1296
      %v1313 = vadd.f32 %v1276, %v1297
      %v1314 = vadd.f32 %v1277, %v1298
      %v1315 = vadd.f32 %v1278, %v1299
      %v1316 = vadd.f32 %v1279, %v1300
      %v1317 = vadd.f32 %v1280, %v1301
      %v1318 = vadd.f32 %v1281, %v1302
      %v1319 = vadd.f32 %v1282, %v1303
      %v1320 = vadd.f32 %v1283, %v1304
      %v1321 = vadd.f32 %v1284, %v1305
      %v1322 = vadd.f32 %v1285, %v1306
      %v1323 = vadd.f32 %v1286, %v1307
      %v1324 = vld [vmem:[%s175 + $0x18] sm:$0x1]
      %v1325 = vlaneseq
      %v1326 = vshrl.u32 %v1325, 7
      %v1327 = vsub.s32 0, %v1326
      %v1328 = vrot.slane %v1324, %v1327
      %v1329 = vmul.f32 %v1160, %v1328
      %v1330 = vmul.f32 %v1161, %v1328
      %v1331 = vmul.f32 %v1162, %v1328
      %v1332 = vmul.f32 %v1163, %v1328
      %v1333 = vmul.f32 %v1164, %v1328
      %v1334 = vmul.f32 %v1165, %v1328
      %v1335 = vmul.f32 %v1166, %v1328
      %v1336 = vmul.f32 %v1167, %v1328
      %v1337 = vmul.f32 %v1168, %v1328
      %v1338 = vmul.f32 %v1169, %v1328
      %v1339 = vmul.f32 %v1170, %v1328
      %v1340 = vmul.f32 %v1171, %v1328
      %v1341 = vmul.f32 %v1172, %v1328
      %v1342 = vmul.f32 %v1173, %v1328
      %v1343 = vmul.f32 %v1174, %v1328
      %v1344 = vmul.f32 %v1175, %v1328
      %v1345 = vadd.f32 %v1308, %v1329
      %v1346 = vadd.f32 %v1309, %v1330
      %v1347 = vadd.f32 %v1310, %v1331
      %v1348 = vadd.f32 %v1311, %v1332
      %v1349 = vadd.f32 %v1312, %v1333
      %v1350 = vadd.f32 %v1313, %v1334
      %v1351 = vadd.f32 %v1314, %v1335
      %v1352 = vadd.f32 %v1315, %v1336
      %v1353 = vadd.f32 %v1316, %v1337
      %v1354 = vadd.f32 %v1317, %v1338
      %v1355 = vadd.f32 %v1318, %v1339
      %v1356 = vadd.f32 %v1319, %v1340
      %v1357 = vadd.f32 %v1320, %v1341
      %v1358 = vadd.f32 %v1321, %v1342
      %v1359 = vadd.f32 %v1322, %v1343
      %v1360 = vadd.f32 %v1323, %v1344
      %1361 = vst.msk [vmem:[%s191] sm:$0xff] %vm192, %v1345
      %1362 = vst.msk [vmem:[%s191 + $0x8] sm:$0xff] %vm192, %v1346
      %1363 = vst.msk [vmem:[%s191 + $0x10] sm:$0xff] %vm192, %v1347
      %1364 = vst.msk [vmem:[%s191 + $0x18] sm:$0xff] %vm192, %v1348
      %1365 = vst.msk [vmem:[%s191 + $0x20] sm:$0xff] %vm192, %v1349
      %1366 = vst.msk [vmem:[%s191 + $0x28] sm:$0xff] %vm192, %v1350
      %1367 = vst.msk [vmem:[%s191 + $0x30] sm:$0xff] %vm192, %v1351
      %1368 = vst.msk [vmem:[%s191 + $0x38] sm:$0xff] %vm192, %v1352
      %1369 = vst.msk [vmem:[%s191 + $0x40] sm:$0xff] %vm192, %v1353
      %1370 = vst.msk [vmem:[%s191 + $0x48] sm:$0xff] %vm192, %v1354
      %1371 = vst.msk [vmem:[%s191 + $0x50] sm:$0xff] %vm192, %v1355
      %1372 = vst.msk [vmem:[%s191 + $0x58] sm:$0xff] %vm192, %v1356
      %1373 = vst.msk [vmem:[%s191 + $0x60] sm:$0xff] %vm192, %v1357
      %1374 = vst.msk [vmem:[%s191 + $0x68] sm:$0xff] %vm192, %v1358
      %1375 = vst.msk [vmem:[%s191 + $0x70] sm:$0xff] %vm192, %v1359
      %1376 = vst.msk [vmem:[%s191 + $0x78] sm:$0xff] %vm192, %v1360
      %s1377 = scalar_lea.vmem [#allocation2], 256
      %v1378 = vld [vmem:[%s1377 + $0x6] sm:$0xff]
      %v1379 = vld [vmem:[%s1377 + $0xe] sm:$0xff]
      %v1380 = vld [vmem:[%s1377 + $0x26] sm:$0xff]
      %v1381 = vld [vmem:[%s1377 + $0x2e] sm:$0xff]
      %v1382 = vld [vmem:[%s1377 + $0x46] sm:$0xff]
      %v1383 = vld [vmem:[%s1377 + $0x4e] sm:$0xff]
      %v1384 = vld [vmem:[%s1377 + $0x66] sm:$0xff]
      %v1385 = vld [vmem:[%s1377 + $0x6e] sm:$0xff]
      %v1386 = vld [vmem:[%s1377 + $0x86] sm:$0xff]
      %v1387 = vld [vmem:[%s1377 + $0x8e] sm:$0xff]
      %v1388 = vld [vmem:[%s1377 + $0xa6] sm:$0xff]
      %v1389 = vld [vmem:[%s1377 + $0xae] sm:$0xff]
      %v1390 = vld [vmem:[%s1377 + $0xc6] sm:$0xff]
      %v1391 = vld [vmem:[%s1377 + $0xce] sm:$0xff]
      %v1392 = vld [vmem:[%s1377 + $0xe6] sm:$0xff]
      %v1393 = vld [vmem:[%s1377 + $0xee] sm:$0xff]
      %v1394 = vld [vmem:[%s1377 + $0x106] sm:$0xff]
      %v1395 = vld [vmem:[%s1377 + $0x10e] sm:$0xff]
      %v1396 = vld [vmem:[%s1377 + $0x126] sm:$0xff]
      %v1397 = vld [vmem:[%s1377 + $0x12e] sm:$0xff]
      %v1398 = vld [vmem:[%s1377 + $0x146] sm:$0xff]
      %v1399 = vld [vmem:[%s1377 + $0x14e] sm:$0xff]
      %v1400 = vld [vmem:[%s1377 + $0x166] sm:$0xff]
      %v1401 = vld [vmem:[%s1377 + $0x16e] sm:$0xff]
      %v1402 = vld [vmem:[%s175] sm:$0x1]
      %v1403 = vlaneseq
      %v1404 = vshrl.u32 %v1403, 7
      %v1405 = vsub.s32 0, %v1404
      %v1406 = vrot.slane %v1402, %v1405
      %v1407 = vmul.f32 %v1378, %v1406
      %v1408 = vmul.f32 %v1379, %v1406
      %v1409 = vmul.f32 %v1380, %v1406
      %v1410 = vmul.f32 %v1381, %v1406
      %v1411 = vmul.f32 %v1382, %v1406
      %v1412 = vmul.f32 %v1383, %v1406
      %v1413 = vmul.f32 %v1384, %v1406
      %v1414 = vmul.f32 %v1385, %v1406
      %v1415 = vmul.f32 %v1386, %v1406
      %v1416 = vmul.f32 %v1387, %v1406
      %v1417 = vmul.f32 %v1388, %v1406
      %v1418 = vmul.f32 %v1389, %v1406
      %v1419 = vmul.f32 %v1390, %v1406
      %v1420 = vmul.f32 %v1391, %v1406
      %v1421 = vmul.f32 %v1392, %v1406
      %v1422 = vmul.f32 %v1393, %v1406
      %v1423 = vadd.f32 %v1407, 0.0
      %v1424 = vadd.f32 %v1408, 0.0
      %v1425 = vadd.f32 %v1409, 0.0
      %v1426 = vadd.f32 %v1410, 0.0
      %v1427 = vadd.f32 %v1411, 0.0
      %v1428 = vadd.f32 %v1412, 0.0
      %v1429 = vadd.f32 %v1413, 0.0
      %v1430 = vadd.f32 %v1414, 0.0
      %v1431 = vadd.f32 %v1415, 0.0
      %v1432 = vadd.f32 %v1416, 0.0
      %v1433 = vadd.f32 %v1417, 0.0
      %v1434 = vadd.f32 %v1418, 0.0
      %v1435 = vadd.f32 %v1419, 0.0
      %v1436 = vadd.f32 %v1420, 0.0
      %v1437 = vadd.f32 %v1421, 0.0
      %v1438 = vadd.f32 %v1422, 0.0
      %v1439 = vld [vmem:[%s175 + $0x5] sm:$0x1]
      %v1440 = vlaneseq
      %v1441 = vshrl.u32 %v1440, 7
      %v1442 = vsub.s32 0, %v1441
      %v1443 = vrot.slane %v1439, %v1442
      %v1444 = vmul.f32 %v1380, %v1443
      %v1445 = vmul.f32 %v1381, %v1443
      %v1446 = vmul.f32 %v1382, %v1443
      %v1447 = vmul.f32 %v1383, %v1443
      %v1448 = vmul.f32 %v1384, %v1443
      %v1449 = vmul.f32 %v1385, %v1443
      %v1450 = vmul.f32 %v1386, %v1443
      %v1451 = vmul.f32 %v1387, %v1443
      %v1452 = vmul.f32 %v1388, %v1443
      %v1453 = vmul.f32 %v1389, %v1443
      %v1454 = vmul.f32 %v1390, %v1443
      %v1455 = vmul.f32 %v1391, %v1443
      %v1456 = vmul.f32 %v1392, %v1443
      %v1457 = vmul.f32 %v1393, %v1443
      %v1458 = vmul.f32 %v1394, %v1443
      %v1459 = vmul.f32 %v1395, %v1443
      %v1460 = vadd.f32 %v1423, %v1444
      %v1461 = vadd.f32 %v1424, %v1445
      %v1462 = vadd.f32 %v1425, %v1446
      %v1463 = vadd.f32 %v1426, %v1447
      %v1464 = vadd.f32 %v1427, %v1448
      %v1465 = vadd.f32 %v1428, %v1449
      %v1466 = vadd.f32 %v1429, %v1450
      %v1467 = vadd.f32 %v1430, %v1451
      %v1468 = vadd.f32 %v1431, %v1452
      %v1469 = vadd.f32 %v1432, %v1453
      %v1470 = vadd.f32 %v1433, %v1454
      %v1471 = vadd.f32 %v1434, %v1455
      %v1472 = vadd.f32 %v1435, %v1456
      %v1473 = vadd.f32 %v1436, %v1457
      %v1474 = vadd.f32 %v1437, %v1458
      %v1475 = vadd.f32 %v1438, %v1459
      %v1476 = vld [vmem:[%s175 + $0xa] sm:$0x1]
      %v1477 = vlaneseq
      %v1478 = vshrl.u32 %v1477, 7
      %v1479 = vsub.s32 0, %v1478
      %v1480 = vrot.slane %v1476, %v1479
      %v1481 = vmul.f32 %v1382, %v1480
      %v1482 = vmul.f32 %v1383, %v1480
      %v1483 = vmul.f32 %v1384, %v1480
      %v1484 = vmul.f32 %v1385, %v1480
      %v1485 = vmul.f32 %v1386, %v1480
      %v1486 = vmul.f32 %v1387, %v1480
      %v1487 = vmul.f32 %v1388, %v1480
      %v1488 = vmul.f32 %v1389, %v1480
      %v1489 = vmul.f32 %v1390, %v1480
      %v1490 = vmul.f32 %v1391, %v1480
      %v1491 = vmul.f32 %v1392, %v1480
      %v1492 = vmul.f32 %v1393, %v1480
      %v1493 = vmul.f32 %v1394, %v1480
      %v1494 = vmul.f32 %v1395, %v1480
      %v1495 = vmul.f32 %v1396, %v1480
      %v1496 = vmul.f32 %v1397, %v1480
      %v1497 = vadd.f32 %v1460, %v1481
      %v1498 = vadd.f32 %v1461, %v1482
      %v1499 = vadd.f32 %v1462, %v1483
      %v1500 = vadd.f32 %v1463, %v1484
      %v1501 = vadd.f32 %v1464, %v1485
      %v1502 = vadd.f32 %v1465, %v1486
      %v1503 = vadd.f32 %v1466, %v1487
      %v1504 = vadd.f32 %v1467, %v1488
      %v1505 = vadd.f32 %v1468, %v1489
      %v1506 = vadd.f32 %v1469, %v1490
      %v1507 = vadd.f32 %v1470, %v1491
      %v1508 = vadd.f32 %v1471, %v1492
      %v1509 = vadd.f32 %v1472, %v1493
      %v1510 = vadd.f32 %v1473, %v1494
      %v1511 = vadd.f32 %v1474, %v1495
      %v1512 = vadd.f32 %v1475, %v1496
      %v1513 = vld [vmem:[%s175 + $0xf] sm:$0x1]
      %v1514 = vlaneseq
      %v1515 = vshrl.u32 %v1514, 7
      %v1516 = vsub.s32 0, %v1515
      %v1517 = vrot.slane %v1513, %v1516
      %v1518 = vmul.f32 %v1384, %v1517
      %v1519 = vmul.f32 %v1385, %v1517
      %v1520 = vmul.f32 %v1386, %v1517
      %v1521 = vmul.f32 %v1387, %v1517
      %v1522 = vmul.f32 %v1388, %v1517
      %v1523 = vmul.f32 %v1389, %v1517
      %v1524 = vmul.f32 %v1390, %v1517
      %v1525 = vmul.f32 %v1391, %v1517
      %v1526 = vmul.f32 %v1392, %v1517
      %v1527 = vmul.f32 %v1393, %v1517
      %v1528 = vmul.f32 %v1394, %v1517
      %v1529 = vmul.f32 %v1395, %v1517
      %v1530 = vmul.f32 %v1396, %v1517
      %v1531 = vmul.f32 %v1397, %v1517
      %v1532 = vmul.f32 %v1398, %v1517
      %v1533 = vmul.f32 %v1399, %v1517
      %v1534 = vadd.f32 %v1497, %v1518
      %v1535 = vadd.f32 %v1498, %v1519
      %v1536 = vadd.f32 %v1499, %v1520
      %v1537 = vadd.f32 %v1500, %v1521
      %v1538 = vadd.f32 %v1501, %v1522
      %v1539 = vadd.f32 %v1502, %v1523
      %v1540 = vadd.f32 %v1503, %v1524
      %v1541 = vadd.f32 %v1504, %v1525
      %v1542 = vadd.f32 %v1505, %v1526
      %v1543 = vadd.f32 %v1506, %v1527
      %v1544 = vadd.f32 %v1507, %v1528
      %v1545 = vadd.f32 %v1508, %v1529
      %v1546 = vadd.f32 %v1509, %v1530
      %v1547 = vadd.f32 %v1510, %v1531
      %v1548 = vadd.f32 %v1511, %v1532
      %v1549 = vadd.f32 %v1512, %v1533
      %v1550 = vld [vmem:[%s175 + $0x14] sm:$0x1]
      %v1551 = vlaneseq
      %v1552 = vshrl.u32 %v1551, 7
      %v1553 = vsub.s32 0, %v1552
      %v1554 = vrot.slane %v1550, %v1553
      %v1555 = vmul.f32 %v1386, %v1554
      %v1556 = vmul.f32 %v1387, %v1554
      %v1557 = vmul.f32 %v1388, %v1554
      %v1558 = vmul.f32 %v1389, %v1554
      %v1559 = vmul.f32 %v1390, %v1554
      %v1560 = vmul.f32 %v1391, %v1554
      %v1561 = vmul.f32 %v1392, %v1554
      %v1562 = vmul.f32 %v1393, %v1554
      %v1563 = vmul.f32 %v1394, %v1554
      %v1564 = vmul.f32 %v1395, %v1554
      %v1565 = vmul.f32 %v1396, %v1554
      %v1566 = vmul.f32 %v1397, %v1554
      %v1567 = vmul.f32 %v1398, %v1554
      %v1568 = vmul.f32 %v1399, %v1554
      %v1569 = vmul.f32 %v1400, %v1554
      %v1570 = vmul.f32 %v1401, %v1554
      %v1571 = vadd.f32 %v1534, %v1555
      %v1572 = vadd.f32 %v1535, %v1556
      %v1573 = vadd.f32 %v1536, %v1557
      %v1574 = vadd.f32 %v1537, %v1558
      %v1575 = vadd.f32 %v1538, %v1559
      %v1576 = vadd.f32 %v1539, %v1560
      %v1577 = vadd.f32 %v1540, %v1561
      %v1578 = vadd.f32 %v1541, %v1562
      %v1579 = vadd.f32 %v1542, %v1563
      %v1580 = vadd.f32 %v1543, %v1564
      %v1581 = vadd.f32 %v1544, %v1565
      %v1582 = vadd.f32 %v1545, %v1566
      %v1583 = vadd.f32 %v1546, %v1567
      %v1584 = vadd.f32 %v1547, %v1568
      %v1585 = vadd.f32 %v1548, %v1569
      %v1586 = vadd.f32 %v1549, %v1570
      %v1587 = vld [vmem:[%s1377 + $0x7] sm:$0xff]
      %v1588 = vld [vmem:[%s1377 + $0xf] sm:$0xff]
      %v1589 = vld [vmem:[%s1377 + $0x27] sm:$0xff]
      %v1590 = vld [vmem:[%s1377 + $0x2f] sm:$0xff]
      %v1591 = vld [vmem:[%s1377 + $0x47] sm:$0xff]
      %v1592 = vld [vmem:[%s1377 + $0x4f] sm:$0xff]
      %v1593 = vld [vmem:[%s1377 + $0x67] sm:$0xff]
      %v1594 = vld [vmem:[%s1377 + $0x6f] sm:$0xff]
      %v1595 = vld [vmem:[%s1377 + $0x87] sm:$0xff]
      %v1596 = vld [vmem:[%s1377 + $0x8f] sm:$0xff]
      %v1597 = vld [vmem:[%s1377 + $0xa7] sm:$0xff]
      %v1598 = vld [vmem:[%s1377 + $0xaf] sm:$0xff]
      %v1599 = vld [vmem:[%s1377 + $0xc7] sm:$0xff]
      %v1600 = vld [vmem:[%s1377 + $0xcf] sm:$0xff]
      %v1601 = vld [vmem:[%s1377 + $0xe7] sm:$0xff]
      %v1602 = vld [vmem:[%s1377 + $0xef] sm:$0xff]
      %v1603 = vld [vmem:[%s1377 + $0x107] sm:$0xff]
      %v1604 = vld [vmem:[%s1377 + $0x10f] sm:$0xff]
      %v1605 = vld [vmem:[%s1377 + $0x127] sm:$0xff]
      %v1606 = vld [vmem:[%s1377 + $0x12f] sm:$0xff]
      %v1607 = vld [vmem:[%s1377 + $0x147] sm:$0xff]
      %v1608 = vld [vmem:[%s1377 + $0x14f] sm:$0xff]
      %v1609 = vld [vmem:[%s1377 + $0x167] sm:$0xff]
      %v1610 = vld [vmem:[%s1377 + $0x16f] sm:$0xff]
      %v1611 = vld [vmem:[%s175 + $0x1] sm:$0x1]
      %v1612 = vlaneseq
      %v1613 = vshrl.u32 %v1612, 7
      %v1614 = vsub.s32 0, %v1613
      %v1615 = vrot.slane %v1611, %v1614
      %v1616 = vmul.f32 %v1587, %v1615
      %v1617 = vmul.f32 %v1588, %v1615
      %v1618 = vmul.f32 %v1589, %v1615
      %v1619 = vmul.f32 %v1590, %v1615
      %v1620 = vmul.f32 %v1591, %v1615
      %v1621 = vmul.f32 %v1592, %v1615
      %v1622 = vmul.f32 %v1593, %v1615
      %v1623 = vmul.f32 %v1594, %v1615
      %v1624 = vmul.f32 %v1595, %v1615
      %v1625 = vmul.f32 %v1596, %v1615
      %v1626 = vmul.f32 %v1597, %v1615
      %v1627 = vmul.f32 %v1598, %v1615
      %v1628 = vmul.f32 %v1599, %v1615
      %v1629 = vmul.f32 %v1600, %v1615
      %v1630 = vmul.f32 %v1601, %v1615
      %v1631 = vmul.f32 %v1602, %v1615
      %v1632 = vadd.f32 %v1571, %v1616
      %v1633 = vadd.f32 %v1572, %v1617
      %v1634 = vadd.f32 %v1573, %v1618
      %v1635 = vadd.f32 %v1574, %v1619
      %v1636 = vadd.f32 %v1575, %v1620
      %v1637 = vadd.f32 %v1576, %v1621
      %v1638 = vadd.f32 %v1577, %v1622
      %v1639 = vadd.f32 %v1578, %v1623
      %v1640 = vadd.f32 %v1579, %v1624
      %v1641 = vadd.f32 %v1580, %v1625
      %v1642 = vadd.f32 %v1581, %v1626
      %v1643 = vadd.f32 %v1582, %v1627
      %v1644 = vadd.f32 %v1583, %v1628
      %v1645 = vadd.f32 %v1584, %v1629
      %v1646 = vadd.f32 %v1585, %v1630
      %v1647 = vadd.f32 %v1586, %v1631
      %v1648 = vld [vmem:[%s175 + $0x6] sm:$0x1]
      %v1649 = vlaneseq
      %v1650 = vshrl.u32 %v1649, 7
      %v1651 = vsub.s32 0, %v1650
      %v1652 = vrot.slane %v1648, %v1651
      %v1653 = vmul.f32 %v1589, %v1652
      %v1654 = vmul.f32 %v1590, %v1652
      %v1655 = vmul.f32 %v1591, %v1652
      %v1656 = vmul.f32 %v1592, %v1652
      %v1657 = vmul.f32 %v1593, %v1652
      %v1658 = vmul.f32 %v1594, %v1652
      %v1659 = vmul.f32 %v1595, %v1652
      %v1660 = vmul.f32 %v1596, %v1652
      %v1661 = vmul.f32 %v1597, %v1652
      %v1662 = vmul.f32 %v1598, %v1652
      %v1663 = vmul.f32 %v1599, %v1652
      %v1664 = vmul.f32 %v1600, %v1652
      %v1665 = vmul.f32 %v1601, %v1652
      %v1666 = vmul.f32 %v1602, %v1652
      %v1667 = vmul.f32 %v1603, %v1652
      %v1668 = vmul.f32 %v1604, %v1652
      %v1669 = vadd.f32 %v1632, %v1653
      %v1670 = vadd.f32 %v1633, %v1654
      %v1671 = vadd.f32 %v1634, %v1655
      %v1672 = vadd.f32 %v1635, %v1656
      %v1673 = vadd.f32 %v1636, %v1657
      %v1674 = vadd.f32 %v1637, %v1658
      %v1675 = vadd.f32 %v1638, %v1659
      %v1676 = vadd.f32 %v1639, %v1660
      %v1677 = vadd.f32 %v1640, %v1661
      %v1678 = vadd.f32 %v1641, %v1662
      %v1679 = vadd.f32 %v1642, %v1663
      %v1680 = vadd.f32 %v1643, %v1664
      %v1681 = vadd.f32 %v1644, %v1665
      %v1682 = vadd.f32 %v1645, %v1666
      %v1683 = vadd.f32 %v1646, %v1667
      %v1684 = vadd.f32 %v1647, %v1668
      %v1685 = vld [vmem:[%s175 + $0xb] sm:$0x1]
      %v1686 = vlaneseq
      %v1687 = vshrl.u32 %v1686, 7
      %v1688 = vsub.s32 0, %v1687
      %v1689 = vrot.slane %v1685, %v1688
      %v1690 = vmul.f32 %v1591, %v1689
      %v1691 = vmul.f32 %v1592, %v1689
      %v1692 = vmul.f32 %v1593, %v1689
      %v1693 = vmul.f32 %v1594, %v1689
      %v1694 = vmul.f32 %v1595, %v1689
      %v1695 = vmul.f32 %v1596, %v1689
      %v1696 = vmul.f32 %v1597, %v1689
      %v1697 = vmul.f32 %v1598, %v1689
      %v1698 = vmul.f32 %v1599, %v1689
      %v1699 = vmul.f32 %v1600, %v1689
      %v1700 = vmul.f32 %v1601, %v1689
      %v1701 = vmul.f32 %v1602, %v1689
      %v1702 = vmul.f32 %v1603, %v1689
      %v1703 = vmul.f32 %v1604, %v1689
      %v1704 = vmul.f32 %v1605, %v1689
      %v1705 = vmul.f32 %v1606, %v1689
      %v1706 = vadd.f32 %v1669, %v1690
      %v1707 = vadd.f32 %v1670, %v1691
      %v1708 = vadd.f32 %v1671, %v1692
      %v1709 = vadd.f32 %v1672, %v1693
      %v1710 = vadd.f32 %v1673, %v1694
      %v1711 = vadd.f32 %v1674, %v1695
      %v1712 = vadd.f32 %v1675, %v1696
      %v1713 = vadd.f32 %v1676, %v1697
      %v1714 = vadd.f32 %v1677, %v1698
      %v1715 = vadd.f32 %v1678, %v1699
      %v1716 = vadd.f32 %v1679, %v1700
      %v1717 = vadd.f32 %v1680, %v1701
      %v1718 = vadd.f32 %v1681, %v1702
      %v1719 = vadd.f32 %v1682, %v1703
      %v1720 = vadd.f32 %v1683, %v1704
      %v1721 = vadd.f32 %v1684, %v1705
      %v1722 = vld [vmem:[%s175 + $0x10] sm:$0x1]
      %v1723 = vlaneseq
      %v1724 = vshrl.u32 %v1723, 7
      %v1725 = vsub.s32 0, %v1724
      %v1726 = vrot.slane %v1722, %v1725
      %v1727 = vmul.f32 %v1593, %v1726
      %v1728 = vmul.f32 %v1594, %v1726
      %v1729 = vmul.f32 %v1595, %v1726
      %v1730 = vmul.f32 %v1596, %v1726
      %v1731 = vmul.f32 %v1597, %v1726
      %v1732 = vmul.f32 %v1598, %v1726
      %v1733 = vmul.f32 %v1599, %v1726
      %v1734 = vmul.f32 %v1600, %v1726
      %v1735 = vmul.f32 %v1601, %v1726
      %v1736 = vmul.f32 %v1602, %v1726
      %v1737 = vmul.f32 %v1603, %v1726
      %v1738 = vmul.f32 %v1604, %v1726
      %v1739 = vmul.f32 %v1605, %v1726
      %v1740 = vmul.f32 %v1606, %v1726
      %v1741 = vmul.f32 %v1607, %v1726
      %v1742 = vmul.f32 %v1608, %v1726
      %v1743 = vadd.f32 %v1706, %v1727
      %v1744 = vadd.f32 %v1707, %v1728
      %v1745 = vadd.f32 %v1708, %v1729
      %v1746 = vadd.f32 %v1709, %v1730
      %v1747 = vadd.f32 %v1710, %v1731
      %v1748 = vadd.f32 %v1711, %v1732
      %v1749 = vadd.f32 %v1712, %v1733
      %v1750 = vadd.f32 %v1713, %v1734
      %v1751 = vadd.f32 %v1714, %v1735
      %v1752 = vadd.f32 %v1715, %v1736
      %v1753 = vadd.f32 %v1716, %v1737
      %v1754 = vadd.f32 %v1717, %v1738
      %v1755 = vadd.f32 %v1718, %v1739
      %v1756 = vadd.f32 %v1719, %v1740
      %v1757 = vadd.f32 %v1720, %v1741
      %v1758 = vadd.f32 %v1721, %v1742
      %v1759 = vld [vmem:[%s175 + $0x15] sm:$0x1]
      %v1760 = vlaneseq
      %v1761 = vshrl.u32 %v1760, 7
      %v1762 = vsub.s32 0, %v1761
      %v1763 = vrot.slane %v1759, %v1762
      %v1764 = vmul.f32 %v1595, %v1763
      %v1765 = vmul.f32 %v1596, %v1763
      %v1766 = vmul.f32 %v1597, %v1763
      %v1767 = vmul.f32 %v1598, %v1763
      %v1768 = vmul.f32 %v1599, %v1763
      %v1769 = vmul.f32 %v1600, %v1763
      %v1770 = vmul.f32 %v1601, %v1763
      %v1771 = vmul.f32 %v1602, %v1763
      %v1772 = vmul.f32 %v1603, %v1763
      %v1773 = vmul.f32 %v1604, %v1763
      %v1774 = vmul.f32 %v1605, %v1763
      %v1775 = vmul.f32 %v1606, %v1763
      %v1776 = vmul.f32 %v1607, %v1763
      %v1777 = vmul.f32 %v1608, %v1763
      %v1778 = vmul.f32 %v1609, %v1763
      %v1779 = vmul.f32 %v1610, %v1763
      %v1780 = vadd.f32 %v1743, %v1764
      %v1781 = vadd.f32 %v1744, %v1765
      %v1782 = vadd.f32 %v1745, %v1766
      %v1783 = vadd.f32 %v1746, %v1767
      %v1784 = vadd.f32 %v1747, %v1768
      %v1785 = vadd.f32 %v1748, %v1769
      %v1786 = vadd.f32 %v1749, %v1770
      %v1787 = vadd.f32 %v1750, %v1771
      %v1788 = vadd.f32 %v1751, %v1772
      %v1789 = vadd.f32 %v1752, %v1773
      %v1790 = vadd.f32 %v1753, %v1774
      %v1791 = vadd.f32 %v1754, %v1775
      %v1792 = vadd.f32 %v1755, %v1776
      %v1793 = vadd.f32 %v1756, %v1777
      %v1794 = vadd.f32 %v1757, %v1778
      %v1795 = vadd.f32 %v1758, %v1779
      %v1796 = vld [vmem:[%s1377 + $0x8] sm:$0xff]
      %v1797 = vld [vmem:[%s1377 + $0x10] sm:$0xff]
      %v1798 = vld [vmem:[%s1377 + $0x28] sm:$0xff]
      %v1799 = vld [vmem:[%s1377 + $0x30] sm:$0xff]
      %v1800 = vld [vmem:[%s1377 + $0x48] sm:$0xff]
      %v1801 = vld [vmem:[%s1377 + $0x50] sm:$0xff]
      %v1802 = vld [vmem:[%s1377 + $0x68] sm:$0xff]
      %v1803 = vld [vmem:[%s1377 + $0x70] sm:$0xff]
      %v1804 = vld [vmem:[%s1377 + $0x88] sm:$0xff]
      %v1805 = vld [vmem:[%s1377 + $0x90] sm:$0xff]
      %v1806 = vld [vmem:[%s1377 + $0xa8] sm:$0xff]
      %v1807 = vld [vmem:[%s1377 + $0xb0] sm:$0xff]
      %v1808 = vld [vmem:[%s1377 + $0xc8] sm:$0xff]
      %v1809 = vld [vmem:[%s1377 + $0xd0] sm:$0xff]
      %v1810 = vld [vmem:[%s1377 + $0xe8] sm:$0xff]
      %v1811 = vld [vmem:[%s1377 + $0xf0] sm:$0xff]
      %v1812 = vld [vmem:[%s1377 + $0x108] sm:$0xff]
      %v1813 = vld [vmem:[%s1377 + $0x110] sm:$0xff]
      %v1814 = vld [vmem:[%s1377 + $0x128] sm:$0xff]
      %v1815 = vld [vmem:[%s1377 + $0x130] sm:$0xff]
      %v1816 = vld [vmem:[%s1377 + $0x148] sm:$0xff]
      %v1817 = vld [vmem:[%s1377 + $0x150] sm:$0xff]
      %v1818 = vld [vmem:[%s1377 + $0x168] sm:$0xff]
      %v1819 = vld [vmem:[%s1377 + $0x170] sm:$0xff]
      %v1820 = vld [vmem:[%s175 + $0x2] sm:$0x1]
      %v1821 = vlaneseq
      %v1822 = vshrl.u32 %v1821, 7
      %v1823 = vsub.s32 0, %v1822
      %v1824 = vrot.slane %v1820, %v1823
      %v1825 = vmul.f32 %v1796, %v1824
      %v1826 = vmul.f32 %v1797, %v1824
      %v1827 = vmul.f32 %v1798, %v1824
      %v1828 = vmul.f32 %v1799, %v1824
      %v1829 = vmul.f32 %v1800, %v1824
      %v1830 = vmul.f32 %v1801, %v1824
      %v1831 = vmul.f32 %v1802, %v1824
      %v1832 = vmul.f32 %v1803, %v1824
      %v1833 = vmul.f32 %v1804, %v1824
      %v1834 = vmul.f32 %v1805, %v1824
      %v1835 = vmul.f32 %v1806, %v1824
      %v1836 = vmul.f32 %v1807, %v1824
      %v1837 = vmul.f32 %v1808, %v1824
      %v1838 = vmul.f32 %v1809, %v1824
      %v1839 = vmul.f32 %v1810, %v1824
      %v1840 = vmul.f32 %v1811, %v1824
      %v1841 = vadd.f32 %v1780, %v1825
      %v1842 = vadd.f32 %v1781, %v1826
      %v1843 = vadd.f32 %v1782, %v1827
      %v1844 = vadd.f32 %v1783, %v1828
      %v1845 = vadd.f32 %v1784, %v1829
      %v1846 = vadd.f32 %v1785, %v1830
      %v1847 = vadd.f32 %v1786, %v1831
      %v1848 = vadd.f32 %v1787, %v1832
      %v1849 = vadd.f32 %v1788, %v1833
      %v1850 = vadd.f32 %v1789, %v1834
      %v1851 = vadd.f32 %v1790, %v1835
      %v1852 = vadd.f32 %v1791, %v1836
      %v1853 = vadd.f32 %v1792, %v1837
      %v1854 = vadd.f32 %v1793, %v1838
      %v1855 = vadd.f32 %v1794, %v1839
      %v1856 = vadd.f32 %v1795, %v1840
      %v1857 = vld [vmem:[%s175 + $0x7] sm:$0x1]
      %v1858 = vlaneseq
      %v1859 = vshrl.u32 %v1858, 7
      %v1860 = vsub.s32 0, %v1859
      %v1861 = vrot.slane %v1857, %v1860
      %v1862 = vmul.f32 %v1798, %v1861
      %v1863 = vmul.f32 %v1799, %v1861
      %v1864 = vmul.f32 %v1800, %v1861
      %v1865 = vmul.f32 %v1801, %v1861
      %v1866 = vmul.f32 %v1802, %v1861
      %v1867 = vmul.f32 %v1803, %v1861
      %v1868 = vmul.f32 %v1804, %v1861
      %v1869 = vmul.f32 %v1805, %v1861
      %v1870 = vmul.f32 %v1806, %v1861
      %v1871 = vmul.f32 %v1807, %v1861
      %v1872 = vmul.f32 %v1808, %v1861
      %v1873 = vmul.f32 %v1809, %v1861
      %v1874 = vmul.f32 %v1810, %v1861
      %v1875 = vmul.f32 %v1811, %v1861
      %v1876 = vmul.f32 %v1812, %v1861
      %v1877 = vmul.f32 %v1813, %v1861
      %v1878 = vadd.f32 %v1841, %v1862
      %v1879 = vadd.f32 %v1842, %v1863
      %v1880 = vadd.f32 %v1843, %v1864
      %v1881 = vadd.f32 %v1844, %v1865
      %v1882 = vadd.f32 %v1845, %v1866
      %v1883 = vadd.f32 %v1846, %v1867
      %v1884 = vadd.f32 %v1847, %v1868
      %v1885 = vadd.f32 %v1848, %v1869
      %v1886 = vadd.f32 %v1849, %v1870
      %v1887 = vadd.f32 %v1850, %v1871
      %v1888 = vadd.f32 %v1851, %v1872
      %v1889 = vadd.f32 %v1852, %v1873
      %v1890 = vadd.f32 %v1853, %v1874
      %v1891 = vadd.f32 %v1854, %v1875
      %v1892 = vadd.f32 %v1855, %v1876
      %v1893 = vadd.f32 %v1856, %v1877
      %v1894 = vld [vmem:[%s175 + $0xc] sm:$0x1]
      %v1895 = vlaneseq
      %v1896 = vshrl.u32 %v1895, 7
      %v1897 = vsub.s32 0, %v1896
      %v1898 = vrot.slane %v1894, %v1897
      %v1899 = vmul.f32 %v1800, %v1898
      %v1900 = vmul.f32 %v1801, %v1898
      %v1901 = vmul.f32 %v1802, %v1898
      %v1902 = vmul.f32 %v1803, %v1898
      %v1903 = vmul.f32 %v1804, %v1898
      %v1904 = vmul.f32 %v1805, %v1898
      %v1905 = vmul.f32 %v1806, %v1898
      %v1906 = vmul.f32 %v1807, %v1898
      %v1907 = vmul.f32 %v1808, %v1898
      %v1908 = vmul.f32 %v1809, %v1898
      %v1909 = vmul.f32 %v1810, %v1898
      %v1910 = vmul.f32 %v1811, %v1898
      %v1911 = vmul.f32 %v1812, %v1898
      %v1912 = vmul.f32 %v1813, %v1898
      %v1913 = vmul.f32 %v1814, %v1898
      %v1914 = vmul.f32 %v1815, %v1898
      %v1915 = vadd.f32 %v1878, %v1899
      %v1916 = vadd.f32 %v1879, %v1900
      %v1917 = vadd.f32 %v1880, %v1901
      %v1918 = vadd.f32 %v1881, %v1902
      %v1919 = vadd.f32 %v1882, %v1903
      %v1920 = vadd.f32 %v1883, %v1904
      %v1921 = vadd.f32 %v1884, %v1905
      %v1922 = vadd.f32 %v1885, %v1906
      %v1923 = vadd.f32 %v1886, %v1907
      %v1924 = vadd.f32 %v1887, %v1908
      %v1925 = vadd.f32 %v1888, %v1909
      %v1926 = vadd.f32 %v1889, %v1910
      %v1927 = vadd.f32 %v1890, %v1911
      %v1928 = vadd.f32 %v1891, %v1912
      %v1929 = vadd.f32 %v1892, %v1913
      %v1930 = vadd.f32 %v1893, %v1914
      %v1931 = vld [vmem:[%s175 + $0x11] sm:$0x1]
      %v1932 = vlaneseq
      %v1933 = vshrl.u32 %v1932, 7
      %v1934 = vsub.s32 0, %v1933
      %v1935 = vrot.slane %v1931, %v1934
      %v1936 = vmul.f32 %v1802, %v1935
      %v1937 = vmul.f32 %v1803, %v1935
      %v1938 = vmul.f32 %v1804, %v1935
      %v1939 = vmul.f32 %v1805, %v1935
      %v1940 = vmul.f32 %v1806, %v1935
      %v1941 = vmul.f32 %v1807, %v1935
      %v1942 = vmul.f32 %v1808, %v1935
      %v1943 = vmul.f32 %v1809, %v1935
      %v1944 = vmul.f32 %v1810, %v1935
      %v1945 = vmul.f32 %v1811, %v1935
      %v1946 = vmul.f32 %v1812, %v1935
      %v1947 = vmul.f32 %v1813, %v1935
      %v1948 = vmul.f32 %v1814, %v1935
      %v1949 = vmul.f32 %v1815, %v1935
      %v1950 = vmul.f32 %v1816, %v1935
      %v1951 = vmul.f32 %v1817, %v1935
      %v1952 = vadd.f32 %v1915, %v1936
      %v1953 = vadd.f32 %v1916, %v1937
      %v1954 = vadd.f32 %v1917, %v1938
      %v1955 = vadd.f32 %v1918, %v1939
      %v1956 = vadd.f32 %v1919, %v1940
      %v1957 = vadd.f32 %v1920, %v1941
      %v1958 = vadd.f32 %v1921, %v1942
      %v1959 = vadd.f32 %v1922, %v1943
      %v1960 = vadd.f32 %v1923, %v1944
      %v1961 = vadd.f32 %v1924, %v1945
      %v1962 = vadd.f32 %v1925, %v1946
      %v1963 = vadd.f32 %v1926, %v1947
      %v1964 = vadd.f32 %v1927, %v1948
      %v1965 = vadd.f32 %v1928, %v1949
      %v1966 = vadd.f32 %v1929, %v1950
      %v1967 = vadd.f32 %v1930, %v1951
      %v1968 = vld [vmem:[%s175 + $0x16] sm:$0x1]
      %v1969 = vlaneseq
      %v1970 = vshrl.u32 %v1969, 7
      %v1971 = vsub.s32 0, %v1970
      %v1972 = vrot.slane %v1968, %v1971
      %v1973 = vmul.f32 %v1804, %v1972
      %v1974 = vmul.f32 %v1805, %v1972
      %v1975 = vmul.f32 %v1806, %v1972
      %v1976 = vmul.f32 %v1807, %v1972
      %v1977 = vmul.f32 %v1808, %v1972
      %v1978 = vmul.f32 %v1809, %v1972
      %v1979 = vmul.f32 %v1810, %v1972
      %v1980 = vmul.f32 %v1811, %v1972
      %v1981 = vmul.f32 %v1812, %v1972
      %v1982 = vmul.f32 %v1813, %v1972
      %v1983 = vmul.f32 %v1814, %v1972
      %v1984 = vmul.f32 %v1815, %v1972
      %v1985 = vmul.f32 %v1816, %v1972
      %v1986 = vmul.f32 %v1817, %v1972
      %v1987 = vmul.f32 %v1818, %v1972
      %v1988 = vmul.f32 %v1819, %v1972
      %v1989 = vadd.f32 %v1952, %v1973
      %v1990 = vadd.f32 %v1953, %v1974
      %v1991 = vadd.f32 %v1954, %v1975
      %v1992 = vadd.f32 %v1955, %v1976
      %v1993 = vadd.f32 %v1956, %v1977
      %v1994 = vadd.f32 %v1957, %v1978
      %v1995 = vadd.f32 %v1958, %v1979
      %v1996 = vadd.f32 %v1959, %v1980
      %v1997 = vadd.f32 %v1960, %v1981
      %v1998 = vadd.f32 %v1961, %v1982
      %v1999 = vadd.f32 %v1962, %v1983
      %v2000 = vadd.f32 %v1963, %v1984
      %v2001 = vadd.f32 %v1964, %v1985
      %v2002 = vadd.f32 %v1965, %v1986
      %v2003 = vadd.f32 %v1966, %v1987
      %v2004 = vadd.f32 %v1967, %v1988
      %v2005 = vld [vmem:[%s1377 + $0x9] sm:$0xff]
      %v2006 = vld [vmem:[%s1377 + $0x11] sm:$0xff]
      %v2007 = vld [vmem:[%s1377 + $0x29] sm:$0xff]
      %v2008 = vld [vmem:[%s1377 + $0x31] sm:$0xff]
      %v2009 = vld [vmem:[%s1377 + $0x49] sm:$0xff]
      %v2010 = vld [vmem:[%s1377 + $0x51] sm:$0xff]
      %v2011 = vld [vmem:[%s1377 + $0x69] sm:$0xff]
      %v2012 = vld [vmem:[%s1377 + $0x71] sm:$0xff]
      %v2013 = vld [vmem:[%s1377 + $0x89] sm:$0xff]
      %v2014 = vld [vmem:[%s1377 + $0x91] sm:$0xff]
      %v2015 = vld [vmem:[%s1377 + $0xa9] sm:$0xff]
      %v2016 = vld [vmem:[%s1377 + $0xb1] sm:$0xff]
      %v2017 = vld [vmem:[%s1377 + $0xc9] sm:$0xff]
      %v2018 = vld [vmem:[%s1377 + $0xd1] sm:$0xff]
      %v2019 = vld [vmem:[%s1377 + $0xe9] sm:$0xff]
      %v2020 = vld [vmem:[%s1377 + $0xf1] sm:$0xff]
      %v2021 = vld [vmem:[%s1377 + $0x109] sm:$0xff]
      %v2022 = vld [vmem:[%s1377 + $0x111] sm:$0xff]
      %v2023 = vld [vmem:[%s1377 + $0x129] sm:$0xff]
      %v2024 = vld [vmem:[%s1377 + $0x131] sm:$0xff]
      %v2025 = vld [vmem:[%s1377 + $0x149] sm:$0xff]
      %v2026 = vld [vmem:[%s1377 + $0x151] sm:$0xff]
      %v2027 = vld [vmem:[%s1377 + $0x169] sm:$0xff]
      %v2028 = vld [vmem:[%s1377 + $0x171] sm:$0xff]
      %v2029 = vld [vmem:[%s175 + $0x3] sm:$0x1]
      %v2030 = vlaneseq
      %v2031 = vshrl.u32 %v2030, 7
      %v2032 = vsub.s32 0, %v2031
      %v2033 = vrot.slane %v2029, %v2032
      %v2034 = vmul.f32 %v2005, %v2033
      %v2035 = vmul.f32 %v2006, %v2033
      %v2036 = vmul.f32 %v2007, %v2033
      %v2037 = vmul.f32 %v2008, %v2033
      %v2038 = vmul.f32 %v2009, %v2033
      %v2039 = vmul.f32 %v2010, %v2033
      %v2040 = vmul.f32 %v2011, %v2033
      %v2041 = vmul.f32 %v2012, %v2033
      %v2042 = vmul.f32 %v2013, %v2033
      %v2043 = vmul.f32 %v2014, %v2033
      %v2044 = vmul.f32 %v2015, %v2033
      %v2045 = vmul.f32 %v2016, %v2033
      %v2046 = vmul.f32 %v2017, %v2033
      %v2047 = vmul.f32 %v2018, %v2033
      %v2048 = vmul.f32 %v2019, %v2033
      %v2049 = vmul.f32 %v2020, %v2033
      %v2050 = vadd.f32 %v1989, %v2034
      %v2051 = vadd.f32 %v1990, %v2035
      %v2052 = vadd.f32 %v1991, %v2036
      %v2053 = vadd.f32 %v1992, %v2037
      %v2054 = vadd.f32 %v1993, %v2038
      %v2055 = vadd.f32 %v1994, %v2039
      %v2056 = vadd.f32 %v1995, %v2040
      %v2057 = vadd.f32 %v1996, %v2041
      %v2058 = vadd.f32 %v1997, %v2042
      %v2059 = vadd.f32 %v1998, %v2043
      %v2060 = vadd.f32 %v1999, %v2044
      %v2061 = vadd.f32 %v2000, %v2045
      %v2062 = vadd.f32 %v2001, %v2046
      %v2063 = vadd.f32 %v2002, %v2047
      %v2064 = vadd.f32 %v2003, %v2048
      %v2065 = vadd.f32 %v2004, %v2049
      %v2066 = vld [vmem:[%s175 + $0x8] sm:$0x1]
      %v2067 = vlaneseq
      %v2068 = vshrl.u32 %v2067, 7
      %v2069 = vsub.s32 0, %v2068
      %v2070 = vrot.slane %v2066, %v2069
      %v2071 = vmul.f32 %v2007, %v2070
      %v2072 = vmul.f32 %v2008, %v2070
      %v2073 = vmul.f32 %v2009, %v2070
      %v2074 = vmul.f32 %v2010, %v2070
      %v2075 = vmul.f32 %v2011, %v2070
      %v2076 = vmul.f32 %v2012, %v2070
      %v2077 = vmul.f32 %v2013, %v2070
      %v2078 = vmul.f32 %v2014, %v2070
      %v2079 = vmul.f32 %v2015, %v2070
      %v2080 = vmul.f32 %v2016, %v2070
      %v2081 = vmul.f32 %v2017, %v2070
      %v2082 = vmul.f32 %v2018, %v2070
      %v2083 = vmul.f32 %v2019, %v2070
      %v2084 = vmul.f32 %v2020, %v2070
      %v2085 = vmul.f32 %v2021, %v2070
      %v2086 = vmul.f32 %v2022, %v2070
      %v2087 = vadd.f32 %v2050, %v2071
      %v2088 = vadd.f32 %v2051, %v2072
      %v2089 = vadd.f32 %v2052, %v2073
      %v2090 = vadd.f32 %v2053, %v2074
      %v2091 = vadd.f32 %v2054, %v2075
      %v2092 = vadd.f32 %v2055, %v2076
      %v2093 = vadd.f32 %v2056, %v2077
      %v2094 = vadd.f32 %v2057, %v2078
      %v2095 = vadd.f32 %v2058, %v2079
      %v2096 = vadd.f32 %v2059, %v2080
      %v2097 = vadd.f32 %v2060, %v2081
      %v2098 = vadd.f32 %v2061, %v2082
      %v2099 = vadd.f32 %v2062, %v2083
      %v2100 = vadd.f32 %v2063, %v2084
      %v2101 = vadd.f32 %v2064, %v2085
      %v2102 = vadd.f32 %v2065, %v2086
      %v2103 = vld [vmem:[%s175 + $0xd] sm:$0x1]
      %v2104 = vlaneseq
      %v2105 = vshrl.u32 %v2104, 7
      %v2106 = vsub.s32 0, %v2105
      %v2107 = vrot.slane %v2103, %v2106
      %v2108 = vmul.f32 %v2009, %v2107
      %v2109 = vmul.f32 %v2010, %v2107
      %v2110 = vmul.f32 %v2011, %v2107
      %v2111 = vmul.f32 %v2012, %v2107
      %v2112 = vmul.f32 %v2013, %v2107
      %v2113 = vmul.f32 %v2014, %v2107
      %v2114 = vmul.f32 %v2015, %v2107
      %v2115 = vmul.f32 %v2016, %v2107
      %v2116 = vmul.f32 %v2017, %v2107
      %v2117 = vmul.f32 %v2018, %v2107
      %v2118 = vmul.f32 %v2019, %v2107
      %v2119 = vmul.f32 %v2020, %v2107
      %v2120 = vmul.f32 %v2021, %v2107
      %v2121 = vmul.f32 %v2022, %v2107
      %v2122 = vmul.f32 %v2023, %v2107
      %v2123 = vmul.f32 %v2024, %v2107
      %v2124 = vadd.f32 %v2087, %v2108
      %v2125 = vadd.f32 %v2088, %v2109
      %v2126 = vadd.f32 %v2089, %v2110
      %v2127 = vadd.f32 %v2090, %v2111
      %v2128 = vadd.f32 %v2091, %v2112
      %v2129 = vadd.f32 %v2092, %v2113
      %v2130 = vadd.f32 %v2093, %v2114
      %v2131 = vadd.f32 %v2094, %v2115
      %v2132 = vadd.f32 %v2095, %v2116
      %v2133 = vadd.f32 %v2096, %v2117
      %v2134 = vadd.f32 %v2097, %v2118
      %v2135 = vadd.f32 %v2098, %v2119
      %v2136 = vadd.f32 %v2099, %v2120
      %v2137 = vadd.f32 %v2100, %v2121
      %v2138 = vadd.f32 %v2101, %v2122
      %v2139 = vadd.f32 %v2102, %v2123
      %v2140 = vld [vmem:[%s175 + $0x12] sm:$0x1]
      %v2141 = vlaneseq
      %v2142 = vshrl.u32 %v2141, 7
      %v2143 = vsub.s32 0, %v2142
      %v2144 = vrot.slane %v2140, %v2143
      %v2145 = vmul.f32 %v2011, %v2144
      %v2146 = vmul.f32 %v2012, %v2144
      %v2147 = vmul.f32 %v2013, %v2144
      %v2148 = vmul.f32 %v2014, %v2144
      %v2149 = vmul.f32 %v2015, %v2144
      %v2150 = vmul.f32 %v2016, %v2144
      %v2151 = vmul.f32 %v2017, %v2144
      %v2152 = vmul.f32 %v2018, %v2144
      %v2153 = vmul.f32 %v2019, %v2144
      %v2154 = vmul.f32 %v2020, %v2144
      %v2155 = vmul.f32 %v2021, %v2144
      %v2156 = vmul.f32 %v2022, %v2144
      %v2157 = vmul.f32 %v2023, %v2144
      %v2158 = vmul.f32 %v2024, %v2144
      %v2159 = vmul.f32 %v2025, %v2144
      %v2160 = vmul.f32 %v2026, %v2144
      %v2161 = vadd.f32 %v2124, %v2145
      %v2162 = vadd.f32 %v2125, %v2146
      %v2163 = vadd.f32 %v2126, %v2147
      %v2164 = vadd.f32 %v2127, %v2148
      %v2165 = vadd.f32 %v2128, %v2149
      %v2166 = vadd.f32 %v2129, %v2150
      %v2167 = vadd.f32 %v2130, %v2151
      %v2168 = vadd.f32 %v2131, %v2152
      %v2169 = vadd.f32 %v2132, %v2153
      %v2170 = vadd.f32 %v2133, %v2154
      %v2171 = vadd.f32 %v2134, %v2155
      %v2172 = vadd.f32 %v2135, %v2156
      %v2173 = vadd.f32 %v2136, %v2157
      %v2174 = vadd.f32 %v2137, %v2158
      %v2175 = vadd.f32 %v2138, %v2159
      %v2176 = vadd.f32 %v2139, %v2160
      %v2177 = vld [vmem:[%s175 + $0x17] sm:$0x1]
      %v2178 = vlaneseq
      %v2179 = vshrl.u32 %v2178, 7
      %v2180 = vsub.s32 0, %v2179
      %v2181 = vrot.slane %v2177, %v2180
      %v2182 = vmul.f32 %v2013, %v2181
      %v2183 = vmul.f32 %v2014, %v2181
      %v2184 = vmul.f32 %v2015, %v2181
      %v2185 = vmul.f32 %v2016, %v2181
      %v2186 = vmul.f32 %v2017, %v2181
      %v2187 = vmul.f32 %v2018, %v2181
      %v2188 = vmul.f32 %v2019, %v2181
      %v2189 = vmul.f32 %v2020, %v2181
      %v2190 = vmul.f32 %v2021, %v2181
      %v2191 = vmul.f32 %v2022, %v2181
      %v2192 = vmul.f32 %v2023, %v2181
      %v2193 = vmul.f32 %v2024, %v2181
      %v2194 = vmul.f32 %v2025, %v2181
      %v2195 = vmul.f32 %v2026, %v2181
      %v2196 = vmul.f32 %v2027, %v2181
      %v2197 = vmul.f32 %v2028, %v2181
      %v2198 = vadd.f32 %v2161, %v2182
      %v2199 = vadd.f32 %v2162, %v2183
      %v2200 = vadd.f32 %v2163, %v2184
      %v2201 = vadd.f32 %v2164, %v2185
      %v2202 = vadd.f32 %v2165, %v2186
      %v2203 = vadd.f32 %v2166, %v2187
      %v2204 = vadd.f32 %v2167, %v2188
      %v2205 = vadd.f32 %v2168, %v2189
      %v2206 = vadd.f32 %v2169, %v2190
      %v2207 = vadd.f32 %v2170, %v2191
      %v2208 = vadd.f32 %v2171, %v2192
      %v2209 = vadd.f32 %v2172, %v2193
      %v2210 = vadd.f32 %v2173, %v2194
      %v2211 = vadd.f32 %v2174, %v2195
      %v2212 = vadd.f32 %v2175, %v2196
      %v2213 = vadd.f32 %v2176, %v2197
      %v2214 = vld [vmem:[%s1377 + $0xa] sm:$0xff]
      %v2215 = vld [vmem:[%s1377 + $0x12] sm:$0xff]
      %v2216 = vld [vmem:[%s1377 + $0x2a] sm:$0xff]
      %v2217 = vld [vmem:[%s1377 + $0x32] sm:$0xff]
      %v2218 = vld [vmem:[%s1377 + $0x4a] sm:$0xff]
      %v2219 = vld [vmem:[%s1377 + $0x52] sm:$0xff]
      %v2220 = vld [vmem:[%s1377 + $0x6a] sm:$0xff]
      %v2221 = vld [vmem:[%s1377 + $0x72] sm:$0xff]
      %v2222 = vld [vmem:[%s1377 + $0x8a] sm:$0xff]
      %v2223 = vld [vmem:[%s1377 + $0x92] sm:$0xff]
      %v2224 = vld [vmem:[%s1377 + $0xaa] sm:$0xff]
      %v2225 = vld [vmem:[%s1377 + $0xb2] sm:$0xff]
      %v2226 = vld [vmem:[%s1377 + $0xca] sm:$0xff]
      %v2227 = vld [vmem:[%s1377 + $0xd2] sm:$0xff]
      %v2228 = vld [vmem:[%s1377 + $0xea] sm:$0xff]
      %v2229 = vld [vmem:[%s1377 + $0xf2] sm:$0xff]
      %v2230 = vld [vmem:[%s1377 + $0x10a] sm:$0xff]
      %v2231 = vld [vmem:[%s1377 + $0x112] sm:$0xff]
      %v2232 = vld [vmem:[%s1377 + $0x12a] sm:$0xff]
      %v2233 = vld [vmem:[%s1377 + $0x132] sm:$0xff]
      %v2234 = vld [vmem:[%s1377 + $0x14a] sm:$0xff]
      %v2235 = vld [vmem:[%s1377 + $0x152] sm:$0xff]
      %v2236 = vld [vmem:[%s1377 + $0x16a] sm:$0xff]
      %v2237 = vld [vmem:[%s1377 + $0x172] sm:$0xff]
      %v2238 = vld [vmem:[%s175 + $0x4] sm:$0x1]
      %v2239 = vlaneseq
      %v2240 = vshrl.u32 %v2239, 7
      %v2241 = vsub.s32 0, %v2240
      %v2242 = vrot.slane %v2238, %v2241
      %v2243 = vmul.f32 %v2214, %v2242
      %v2244 = vmul.f32 %v2215, %v2242
      %v2245 = vmul.f32 %v2216, %v2242
      %v2246 = vmul.f32 %v2217, %v2242
      %v2247 = vmul.f32 %v2218, %v2242
      %v2248 = vmul.f32 %v2219, %v2242
      %v2249 = vmul.f32 %v2220, %v2242
      %v2250 = vmul.f32 %v2221, %v2242
      %v2251 = vmul.f32 %v2222, %v2242
      %v2252 = vmul.f32 %v2223, %v2242
      %v2253 = vmul.f32 %v2224, %v2242
      %v2254 = vmul.f32 %v2225, %v2242
      %v2255 = vmul.f32 %v2226, %v2242
      %v2256 = vmul.f32 %v2227, %v2242
      %v2257 = vmul.f32 %v2228, %v2242
      %v2258 = vmul.f32 %v2229, %v2242
      %v2259 = vadd.f32 %v2198, %v2243
      %v2260 = vadd.f32 %v2199, %v2244
      %v2261 = vadd.f32 %v2200, %v2245
      %v2262 = vadd.f32 %v2201, %v2246
      %v2263 = vadd.f32 %v2202, %v2247
      %v2264 = vadd.f32 %v2203, %v2248
      %v2265 = vadd.f32 %v2204, %v2249
      %v2266 = vadd.f32 %v2205, %v2250
      %v2267 = vadd.f32 %v2206, %v2251
      %v2268 = vadd.f32 %v2207, %v2252
      %v2269 = vadd.f32 %v2208, %v2253
      %v2270 = vadd.f32 %v2209, %v2254
      %v2271 = vadd.f32 %v2210, %v2255
      %v2272 = vadd.f32 %v2211, %v2256
      %v2273 = vadd.f32 %v2212, %v2257
      %v2274 = vadd.f32 %v2213, %v2258
      %v2275 = vld [vmem:[%s175 + $0x9] sm:$0x1]
      %v2276 = vlaneseq
      %v2277 = vshrl.u32 %v2276, 7
      %v2278 = vsub.s32 0, %v2277
      %v2279 = vrot.slane %v2275, %v2278
      %v2280 = vmul.f32 %v2216, %v2279
      %v2281 = vmul.f32 %v2217, %v2279
      %v2282 = vmul.f32 %v2218, %v2279
      %v2283 = vmul.f32 %v2219, %v2279
      %v2284 = vmul.f32 %v2220, %v2279
      %v2285 = vmul.f32 %v2221, %v2279
      %v2286 = vmul.f32 %v2222, %v2279
      %v2287 = vmul.f32 %v2223, %v2279
      %v2288 = vmul.f32 %v2224, %v2279
      %v2289 = vmul.f32 %v2225, %v2279
      %v2290 = vmul.f32 %v2226, %v2279
      %v2291 = vmul.f32 %v2227, %v2279
      %v2292 = vmul.f32 %v2228, %v2279
      %v2293 = vmul.f32 %v2229, %v2279
      %v2294 = vmul.f32 %v2230, %v2279
      %v2295 = vmul.f32 %v2231, %v2279
      %v2296 = vadd.f32 %v2259, %v2280
      %v2297 = vadd.f32 %v2260, %v2281
      %v2298 = vadd.f32 %v2261, %v2282
      %v2299 = vadd.f32 %v2262, %v2283
      %v2300 = vadd.f32 %v2263, %v2284
      %v2301 = vadd.f32 %v2264, %v2285
      %v2302 = vadd.f32 %v2265, %v2286
      %v2303 = vadd.f32 %v2266, %v2287
      %v2304 = vadd.f32 %v2267, %v2288
      %v2305 = vadd.f32 %v2268, %v2289
      %v2306 = vadd.f32 %v2269, %v2290
      %v2307 = vadd.f32 %v2270, %v2291
      %v2308 = vadd.f32 %v2271, %v2292
      %v2309 = vadd.f32 %v2272, %v2293
      %v2310 = vadd.f32 %v2273, %v2294
      %v2311 = vadd.f32 %v2274, %v2295
      %v2312 = vld [vmem:[%s175 + $0xe] sm:$0x1]
      %v2313 = vlaneseq
      %v2314 = vshrl.u32 %v2313, 7
      %v2315 = vsub.s32 0, %v2314
      %v2316 = vrot.slane %v2312, %v2315
      %v2317 = vmul.f32 %v2218, %v2316
      %v2318 = vmul.f32 %v2219, %v2316
      %v2319 = vmul.f32 %v2220, %v2316
      %v2320 = vmul.f32 %v2221, %v2316
      %v2321 = vmul.f32 %v2222, %v2316
      %v2322 = vmul.f32 %v2223, %v2316
      %v2323 = vmul.f32 %v2224, %v2316
      %v2324 = vmul.f32 %v2225, %v2316
      %v2325 = vmul.f32 %v2226, %v2316
      %v2326 = vmul.f32 %v2227, %v2316
      %v2327 = vmul.f32 %v2228, %v2316
      %v2328 = vmul.f32 %v2229, %v2316
      %v2329 = vmul.f32 %v2230, %v2316
      %v2330 = vmul.f32 %v2231, %v2316
      %v2331 = vmul.f32 %v2232, %v2316
      %v2332 = vmul.f32 %v2233, %v2316
      %v2333 = vadd.f32 %v2296, %v2317
      %v2334 = vadd.f32 %v2297, %v2318
      %v2335 = vadd.f32 %v2298, %v2319
      %v2336 = vadd.f32 %v2299, %v2320
      %v2337 = vadd.f32 %v2300, %v2321
      %v2338 = vadd.f32 %v2301, %v2322
      %v2339 = vadd.f32 %v2302, %v2323
      %v2340 = vadd.f32 %v2303, %v2324
      %v2341 = vadd.f32 %v2304, %v2325
      %v2342 = vadd.f32 %v2305, %v2326
      %v2343 = vadd.f32 %v2306, %v2327
      %v2344 = vadd.f32 %v2307, %v2328
      %v2345 = vadd.f32 %v2308, %v2329
      %v2346 = vadd.f32 %v2309, %v2330
      %v2347 = vadd.f32 %v2310, %v2331
      %v2348 = vadd.f32 %v2311, %v2332
      %v2349 = vld [vmem:[%s175 + $0x13] sm:$0x1]
      %v2350 = vlaneseq
      %v2351 = vshrl.u32 %v2350, 7
      %v2352 = vsub.s32 0, %v2351
      %v2353 = vrot.slane %v2349, %v2352
      %v2354 = vmul.f32 %v2220, %v2353
      %v2355 = vmul.f32 %v2221, %v2353
      %v2356 = vmul.f32 %v2222, %v2353
      %v2357 = vmul.f32 %v2223, %v2353
      %v2358 = vmul.f32 %v2224, %v2353
      %v2359 = vmul.f32 %v2225, %v2353
      %v2360 = vmul.f32 %v2226, %v2353
      %v2361 = vmul.f32 %v2227, %v2353
      %v2362 = vmul.f32 %v2228, %v2353
      %v2363 = vmul.f32 %v2229, %v2353
      %v2364 = vmul.f32 %v2230, %v2353
      %v2365 = vmul.f32 %v2231, %v2353
      %v2366 = vmul.f32 %v2232, %v2353
      %v2367 = vmul.f32 %v2233, %v2353
      %v2368 = vmul.f32 %v2234, %v2353
      %v2369 = vmul.f32 %v2235, %v2353
      %v2370 = vadd.f32 %v2333, %v2354
      %v2371 = vadd.f32 %v2334, %v2355
      %v2372 = vadd.f32 %v2335, %v2356
      %v2373 = vadd.f32 %v2336, %v2357
      %v2374 = vadd.f32 %v2337, %v2358
      %v2375 = vadd.f32 %v2338, %v2359
      %v2376 = vadd.f32 %v2339, %v2360
      %v2377 = vadd.f32 %v2340, %v2361
      %v2378 = vadd.f32 %v2341, %v2362
      %v2379 = vadd.f32 %v2342, %v2363
      %v2380 = vadd.f32 %v2343, %v2364
      %v2381 = vadd.f32 %v2344, %v2365
      %v2382 = vadd.f32 %v2345, %v2366
      %v2383 = vadd.f32 %v2346, %v2367
      %v2384 = vadd.f32 %v2347, %v2368
      %v2385 = vadd.f32 %v2348, %v2369
      %v2386 = vld [vmem:[%s175 + $0x18] sm:$0x1]
      %v2387 = vlaneseq
      %v2388 = vshrl.u32 %v2387, 7
      %v2389 = vsub.s32 0, %v2388
      %v2390 = vrot.slane %v2386, %v2389
      %v2391 = vmul.f32 %v2222, %v2390
      %v2392 = vmul.f32 %v2223, %v2390
      %v2393 = vmul.f32 %v2224, %v2390
      %v2394 = vmul.f32 %v2225, %v2390
      %v2395 = vmul.f32 %v2226, %v2390
      %v2396 = vmul.f32 %v2227, %v2390
      %v2397 = vmul.f32 %v2228, %v2390
      %v2398 = vmul.f32 %v2229, %v2390
      %v2399 = vmul.f32 %v2230, %v2390
      %v2400 = vmul.f32 %v2231, %v2390
      %v2401 = vmul.f32 %v2232, %v2390
      %v2402 = vmul.f32 %v2233, %v2390
      %v2403 = vmul.f32 %v2234, %v2390
      %v2404 = vmul.f32 %v2235, %v2390
      %v2405 = vmul.f32 %v2236, %v2390
      %v2406 = vmul.f32 %v2237, %v2390
      %v2407 = vadd.f32 %v2370, %v2391
      %v2408 = vadd.f32 %v2371, %v2392
      %v2409 = vadd.f32 %v2372, %v2393
      %v2410 = vadd.f32 %v2373, %v2394
      %v2411 = vadd.f32 %v2374, %v2395
      %v2412 = vadd.f32 %v2375, %v2396
      %v2413 = vadd.f32 %v2376, %v2397
      %v2414 = vadd.f32 %v2377, %v2398
      %v2415 = vadd.f32 %v2378, %v2399
      %v2416 = vadd.f32 %v2379, %v2400
      %v2417 = vadd.f32 %v2380, %v2401
      %v2418 = vadd.f32 %v2381, %v2402
      %v2419 = vadd.f32 %v2382, %v2403
      %v2420 = vadd.f32 %v2383, %v2404
      %v2421 = vadd.f32 %v2384, %v2405
      %v2422 = vadd.f32 %v2385, %v2406
      %s2423 = scalar_lea.vmem %s191, 128
      %2424 = vst.msk [vmem:[%s2423] sm:$0xff] %vm192, %v2407
      %2425 = vst.msk [vmem:[%s2423 + $0x8] sm:$0xff] %vm192, %v2408
      %2426 = vst.msk [vmem:[%s2423 + $0x10] sm:$0xff] %vm192, %v2409
      %2427 = vst.msk [vmem:[%s2423 + $0x18] sm:$0xff] %vm192, %v2410
      %2428 = vst.msk [vmem:[%s2423 + $0x20] sm:$0xff] %vm192, %v2411
      %2429 = vst.msk [vmem:[%s2423 + $0x28] sm:$0xff] %vm192, %v2412
      %2430 = vst.msk [vmem:[%s2423 + $0x30] sm:$0xff] %vm192, %v2413
      %2431 = vst.msk [vmem:[%s2423 + $0x38] sm:$0xff] %vm192, %v2414
      %2432 = vst.msk [vmem:[%s2423 + $0x40] sm:$0xff] %vm192, %v2415
      %2433 = vst.msk [vmem:[%s2423 + $0x48] sm:$0xff] %vm192, %v2416
      %2434 = vst.msk [vmem:[%s2423 + $0x50] sm:$0xff] %vm192, %v2417
      %2435 = vst.msk [vmem:[%s2423 + $0x58] sm:$0xff] %vm192, %v2418
      %2436 = vst.msk [vmem:[%s2423 + $0x60] sm:$0xff] %vm192, %v2419
      %2437 = vst.msk [vmem:[%s2423 + $0x68] sm:$0xff] %vm192, %v2420
      %2438 = vst.msk [vmem:[%s2423 + $0x70] sm:$0xff] %vm192, %v2421
      %2439 = vst.msk [vmem:[%s2423 + $0x78] sm:$0xff] %vm192, %v2422
      %p2440 = scmp.lt.s32.totalorder %s17, 1
      %s2441 = scalar_select %p2440, %s17, 1
      %p2442 = scmp.lt.s32.totalorder %s18, 0
      %s2443 = scalar_select %p2442, %s18, 0
      %s2444 = smul.addr %s2441, 32
      %s2445 = sadd.s32 %s2443, %s2444
      %s2446 = smul.addr %s2445, 8
      %s2447 = scalar_lea.vmem %s2, %s2446
      // Predicated region
      $region29: #{tpu_custom_call.1} parent=27 // pred_check
        %p2448 = pneg %p99
      $region30: #{tpu_custom_call.1} parent=27 // pred_check_branch
        %2450 = sbr.rel (%p2448) target = $region32
      $region31: #{tpu_custom_call.1} parent=27 // pred_region
        _
      $region32: #{tpu_custom_call.1} parent=27 // pred_fallthru
        _
    $region28: #{tpu_custom_call.1} parent=5 // pred_fallthru
      _
    %p2451 = scmp.le.s32.totalorder 2, %s8
    // Predicated region
    $region33: #{tpu_custom_call.1} parent=5 // pred_check
      %p2452 = pneg %p2451
    $region34: #{tpu_custom_call.1} parent=5 // pred_check_branch
      %2454 = sbr.rel (%p2452) target = $region36
    $region35: #{tpu_custom_call.1} parent=5 // pred_region
      %s2455 = ssub.s32 %s8, 2
      // Predicated region
      $region37: #{tpu_custom_call.1} parent=35 // pred_check
        %p2456 = pneg %p105
      $region38: #{tpu_custom_call.1} parent=35 // pred_check_branch
        %2458 = sbr.rel (%p2456) target = $region40
      $region39: #{tpu_custom_call.1} parent=35 // pred_region
        %p2459 = scmp.lt.s32.totalorder %s19, 1
        %s2460 = scalar_select %p2459, %s19, 1
        %p2461 = scmp.lt.s32.totalorder %s20, 0
        %s2462 = scalar_select %p2461, %s20, 0
        %s2463 = smul.addr %s2460, 32
        %s2464 = sadd.s32 %s2462, %s2463
        %s2465 = smul.addr %s2464, 8
        %s2466 = scalar_lea.vmem %s2, %s2465
      $region40: #{tpu_custom_call.1} parent=35 // pred_fallthru
        _
    $region36: #{tpu_custom_call.1} parent=5 // pred_fallthru
      _
  $region6: #{tpu_custom_call.1} parent=0 // loop_footer
    %s12 = sadd.s32 1, %s8
  $region7: #{tpu_custom_call.1} parent=0 // loop_footer_branch
    %7 = sbr.rel target = $region3
  $region8: #{tpu_custom_call.1} parent=0 // loop_exit
    _

</llo_original>
